<compile_context>
chip_gen: v6e
topology: v6e:2x2x1
jax: 0.10.0
libtpu: 0.0.40
codegen_flags: <defaults>
</compile_context>

<pallas_src>
import numpy as np
import jax
import jax.numpy as jnp
from jax import lax
from jax.experimental import pallas as pl
from jax.experimental.pallas import tpu as pltpu

F32 = jnp.float32

# ----- model hyper-parameters (small, consistent with the module's __init__) -----
BATCH = 2
SEQ_LEN = 8            # == _config['num_context_sequence'] (required by the reshape)
LEN_MAX_SEQ = 8        # n_position = LEN_MAX_SEQ + 1
N_SRC_FEATURES = 6
F_IN_PAD = 8           # feature dim zero-padded to 8 (aligned K for the embedding matmul)
D_MODEL = 32
D_INNER = 64
N_LAYERS = 2
N_HEAD = 4
D_K = 8
D_V = 8
MEM_SIZE = 16          # _config['mfn_configs'][0]['memsize']

BS = BATCH * SEQ_LEN   # 16 rows of activations
LANE = 128
SUBLANE = 8
NEG_INF = -1e30        # additive mask value (finite: no inf-inf NaN hazard)

# fused Q | K | V' lane layout (V' = V with the head-output fc folded in)
KOFF = N_HEAD * D_K                 # 32
VOFF = 2 * N_HEAD * D_K             # 64
QKV_W = VOFF + N_HEAD * D_MODEL     # 192

# per-layer packed row-vector block (8, QKV_W): row indices
LV_FCB, LV_LN1G, LV_LN1B, LV_LN2G, LV_LN2B, LV_FFB2, LV_FFB1, LV_QKVB = range(8)

# final-projection pack (FP_ROWS, LANE): row offsets (all multiples of 8)
FP_W = 0                        # (D_MODEL, 128)  Wcat[d, s*16+m] = fc_mem_w[s*D+d, m]
FP_MSK = FP_W + D_MODEL         # 32: (BS, 128)   block-diagonal select mask
FP_SEL = FP_MSK + BS            # 48: (8, BS)     per-batch row-sum selector
FP_FOLD = FP_SEL + SUBLANE      # 56: (128, 128)  lane fold  l -> l % MEM_SIZE
FP_BIAS = FP_FOLD + LANE        # 184: (1, 128)   fc_mem_b zero-padded
FP_ROWS = 192

assert SEQ_LEN * MEM_SIZE == LANE


# ---------------------------- fused Pallas kernel ----------------------------

def _fused_transformer_kernel(data_ref, srcw_ref, qkvw_ref, lvecs_ref,
                              w1_ref, w2_ref, fp_ref, o_ref):
    scale = 1.0 / float(np.sqrt(D_K))

    # unpack the per-call data slab (all slice offsets are multiples of 8, lane off 0)
    x      = data_ref[0:BS, 0:F_IN_PAD]        # (16, 8)  zero-padded source features
    posb   = data_ref[BS:2 * BS, :]            # (16, 32) pos-enc + src_emb bias
    mask_b = data_ref[2 * BS:3 * BS, :]        # (16, 32) non-pad mask, pre-broadcast
    amask  = data_ref[3 * BS:4 * BS, 0:BS]     # (16, 16) additive attention mask

    def add_ln_mask(val, res, g, b):
        # LayerNorm(val + residual) * non_pad_mask   (eps = 1e-5, biased var, as torch)
        y = val + res
        mu = jnp.mean(y, axis=-1, keepdims=True)
        var = jnp.mean(jnp.square(y - mu), axis=-1, keepdims=True)
        return ((y - mu) * lax.rsqrt(var + 1e-5) * g + b) * mask_b

    # ---- src_word_emb(X) + position_enc(X_pos) ----
    enc = jnp.dot(x, srcw_ref[...], preferred_element_type=F32) + posb    # (16, 32)

    # Layers unrolled; everything stays in vregs / VMEM values.
    for l in range(N_LAYERS):
        # ---------------- multi-head self-attention ----------------
        residual = enc
        # fused Q | K | V' projection for all heads: ONE matmul per layer
        qkv = (jnp.dot(enc, qkvw_ref[l], preferred_element_type=F32)
               + lvecs_ref[l, LV_QKVB:LV_QKVB + 1, :])                     # (16, 192)
        attn = jnp.zeros((BS, D_MODEL), F32)
        for h in range(N_HEAD):
            q_h = qkv[:, h * D_K:(h + 1) * D_K]                            # (16, 8)
            k_h = qkv[:, KOFF + h * D_K:KOFF + (h + 1) * D_K]              # (16, 8)
            v_h = qkv[:, VOFF + h * D_MODEL:VOFF + (h + 1) * D_MODEL]      # (16, 32)
            # both batches in one score matmul; cross-batch / padded keys masked
            sc = lax.dot_general(q_h, k_h, (((1,), (1,)), ((), ())),
                                 preferred_element_type=F32) * scale + amask
            sc = sc - jnp.max(sc, axis=-1, keepdims=True)
            p = jnp.exp(sc)
            p = p * pl.reciprocal(jnp.sum(p, axis=-1, keepdims=True), approx=True)
            # head-output fc is folded into V' -> direct per-head accumulation
            attn = attn + jnp.dot(p, v_h, preferred_element_type=F32)
        attn = attn + lvecs_ref[l, LV_FCB:LV_FCB + 1, 0:D_MODEL]
        enc = add_ln_mask(attn, residual,
                          lvecs_ref[l, LV_LN1G:LV_LN1G + 1, 0:D_MODEL],
                          lvecs_ref[l, LV_LN1B:LV_LN1B + 1, 0:D_MODEL])

        # ---------------- position-wise feed-forward (Conv1d k=1 == Linear) ----------------
        residual = enc
        hmid = jnp.maximum(
            jnp.dot(enc, w1_ref[l], preferred_element_type=F32)
            + lvecs_ref[l, LV_FFB1:LV_FFB1 + 1, 0:D_INNER], 0.0)
        ffn = (jnp.dot(hmid, w2_ref[l], preferred_element_type=F32)
               + lvecs_ref[l, LV_FFB2:LV_FFB2 + 1, 0:D_MODEL])
        enc = add_ln_mask(ffn, residual,
                          lvecs_ref[l, LV_LN2G:LV_LN2G + 1, 0:D_MODEL],
                          lvecs_ref[l, LV_LN2B:LV_LN2B + 1, 0:D_MODEL])

    # ---- final projection: enc.reshape(B, S*D) @ fc_mem_w, without any reshape ----
    #   Z[bs, s*16+m] = enc[bs,:] @ W[s*D:(s+1)*D, m]
    #   out[b, m]     = sum_s Z[b*S+s, s*16+m]   (block-diag select + row-sum + lane fold)
    wcat  = fp_ref[FP_W:FP_W + D_MODEL, :]            # (32, 128)
    fmsk  = fp_ref[FP_MSK:FP_MSK + BS, :]             # (16, 128)
    rsel  = fp_ref[FP_SEL:FP_SEL + SUBLANE, 0:BS]     # (8, 16)
    ffold = fp_ref[FP_FOLD:FP_FOLD + LANE, :]         # (128, 128)
    membp = fp_ref[FP_BIAS:FP_BIAS + 1, :]            # (1, 128)

    z = jnp.dot(enc, wcat, preferred_element_type=F32) * fmsk      # (16, 128)
    half = jnp.dot(rsel, z, preferred_element_type=F32)            # (8, 128)
    # single full lane-dense store; rows >= BATCH / lanes >= MEM_SIZE are don't-care
    o_ref[...] = jnp.dot(half, ffold, preferred_element_type=F32) + membp


_VMEM = pl.BlockSpec(memory_space=pltpu.MemorySpace.VMEM)


# ---------------------------- parameter setup (deterministic) ----------------------------

def get_sinusoid_encoding_table(n_position, d_hid, padding_idx=None):
    def cal_angle(position, hid_idx):
        return position / np.power(10000, 2 * (hid_idx // 2) / d_hid)

    table = np.array([[cal_angle(p, j) for j in range(d_hid)]
                      for p in range(n_position)])
    table[:, 0::2] = np.sin(table[:, 0::2])
    table[:, 1::2] = np.cos(table[:, 1::2])
    if padding_idx is not None:
        table[padding_idx] = 0.0
    return jnp.asarray(table, dtype=F32)


def make_params(key):
    keys = jax.random.split(key, 64)
    ki = iter(keys)

    def w(shape, scale=0.1):
        return scale * jax.random.normal(next(ki), shape, dtype=F32)

    params = {
        'src_emb_w': w((N_SRC_FEATURES, D_MODEL)),
        'src_emb_b': w((D_MODEL,), 0.01),
        'pos_table': get_sinusoid_encoding_table(LEN_MAX_SEQ + 1, D_MODEL, padding_idx=0),
        'fc_mem_w': w((SEQ_LEN * D_MODEL, MEM_SIZE)),
        'fc_mem_b': w((MEM_SIZE,), 0.01),
        'layers': [],
    }
    for _ in range(N_LAYERS):
        params['layers'].append(dict(
            w_qs=w((D_MODEL, N_HEAD * D_K)), b_qs=w((N_HEAD * D_K,), 0.01),
            w_ks=w((D_MODEL, N_HEAD * D_K)), b_ks=w((N_HEAD * D_K,), 0.01),
            w_vs=w((D_MODEL, N_HEAD * D_V)), b_vs=w((N_HEAD * D_V,), 0.01),
            fc_w=w((N_HEAD * D_V, D_MODEL)), fc_b=w((D_MODEL,), 0.01),
            ln1_g=jnp.ones((D_MODEL,), F32), ln1_b=jnp.zeros((D_MODEL,), F32),
            ffn_w1=w((D_MODEL, D_INNER)), ffn_b1=w((D_INNER,), 0.01),
            ffn_w2=w((D_INNER, D_MODEL)), ffn_b2=w((D_MODEL,), 0.01),
            ln2_g=jnp.ones((D_MODEL,), F32), ln2_b=jnp.zeros((D_MODEL,), F32),
        ))
    return params


# ---------------------------- forward (single fused Pallas call) ----------------------------

def transformer_forward(params, X, X_pos):
    """Reproduces Transformer.forward(X, X_pos, Y); Y is unused by the reference forward."""
    B, S, F_in = X.shape
    assert (B, S, F_in) == (BATCH, SEQ_LEN, N_SRC_FEATURES)
    D = D_MODEL
    L = params['layers']

    # ---- per-call data slab (mirrors the numpy-on-CPU mask building of the reference) ----
    non_pad = jnp.any(X != 0, axis=2)                              # (B, S) bool
    npf = non_pad.reshape(BS).astype(F32)                          # (B*S,)
    mask_b = jnp.broadcast_to(npf[:, None], (BS, D))               # pre-broadcast non-pad mask
    batch_id = jnp.arange(BS, dtype=jnp.int32) // S
    same_b = batch_id[:, None] == batch_id[None, :]
    amask = jnp.where(same_b & (npf[None, :] > 0.5), 0.0, NEG_INF).astype(F32)  # (16,16)
    amask_pad = jnp.zeros((BS, D), F32).at[:, :BS].set(amask)

    pos = jnp.take(params['pos_table'], X_pos, axis=0).reshape(BS, D)
    posb = pos + params['src_emb_b'][None, :]
    x_pad = jnp.zeros((BS, D), F32).at[:, :F_in].set(X.reshape(BS, F_in))
    datapack = jnp.concatenate([x_pad, posb, mask_b, amask_pad], axis=0)   # (64, 32)

    # source embedding weight, K zero-padded to 8
    src_w = jnp.zeros((F_IN_PAD, D), F32).at[:F_in, :].set(params['src_emb_w'])

    # ---- fused per-layer weights: Q | K | V' (head-output fc folded into V) ----
    def fused_qkv_w(lp):
        v_fold = jnp.concatenate(
            [lp['w_vs'][:, h * D_V:(h + 1) * D_V] @ lp['fc_w'][h * D_V:(h + 1) * D_V, :]
             for h in range(N_HEAD)], axis=1)                      # (D, N_HEAD*D)
        return jnp.concatenate([lp['w_qs'], lp['w_ks'], v_fold], axis=1)   # (D, 192)

    def fused_qkv_b(lp):
        vb_fold = jnp.concatenate(
            [lp['b_vs'][h * D_V:(h + 1) * D_V] @ lp['fc_w'][h * D_V:(h + 1) * D_V, :]
             for h in range(N_HEAD)], axis=0)                      # (N_HEAD*D,)
        return jnp.concatenate([lp['b_qs'], lp['b_ks'], vb_fold], axis=0)  # (192,)

    def layer_vecs(lp):
        v = jnp.zeros((SUBLANE, QKV_W), F32)
        v = v.at[LV_FCB, :D].set(lp['fc_b'])
        v = v.at[LV_LN1G, :D].set(lp['ln1_g'])
        v = v.at[LV_LN1B, :D].set(lp['ln1_b'])
        v = v.at[LV_LN2G, :D].set(lp['ln2_g'])
        v = v.at[LV_LN2B, :D].set(lp['ln2_b'])
        v = v.at[LV_FFB2, :D].set(lp['ffn_b2'])
        v = v.at[LV_FFB1, :D_INNER].set(lp['ffn_b1'])
        v = v.at[LV_QKVB, :].set(fused_qkv_b(lp))
        return v

    qkvw = jnp.stack([fused_qkv_w(lp) for lp in L])                # (L, 32, 192)
    lvecs = jnp.stack([layer_vecs(lp) for lp in L])                # (L, 8, 192)
    w1s = jnp.stack([lp['ffn_w1'] for lp in L])                    # (L, 32, 64)
    w2s = jnp.stack([lp['ffn_w2'] for lp in L])                    # (L, 64, 32)

    # ---- final-projection pack (constant selectors built in numpy, one DMA) ----
    wcat = jnp.transpose(params['fc_mem_w'].reshape(S, D, MEM_SIZE),
                         (1, 0, 2)).reshape(D, S * MEM_SIZE)       # (32, 128)
    fmsk = jnp.asarray(
        (np.arange(LANE)[None, :] // MEM_SIZE
         == np.arange(BS)[:, None] % S).astype(np.float32))        # (16, 128)
    rsel = np.zeros((SUBLANE, BS), np.float32)
    for b in range(B):
        rsel[b, b * S:(b + 1) * S] = 1.0
    ffold = np.zeros((LANE, LANE), np.float32)
    for j in range(LANE):
        ffold[j, j % MEM_SIZE] = 1.0

    fppack = jnp.zeros((FP_ROWS, LANE), F32)
    fppack = fppack.at[FP_W:FP_W + D, :].set(wcat)
    fppack = fppack.at[FP_MSK:FP_MSK + BS, :].set(fmsk)
    fppack = fppack.at[FP_SEL:FP_SEL + SUBLANE, :BS].set(jnp.asarray(rsel))
    fppack = fppack.at[FP_FOLD:FP_FOLD + LANE, :].set(jnp.asarray(ffold))
    fppack = fppack.at[FP_BIAS, :MEM_SIZE].set(params['fc_mem_b'])

    inputs = (datapack, src_w, qkvw, lvecs, w1s, w2s, fppack)

    out_full = pl.pallas_call(
        _fused_transformer_kernel,
        out_shape=jax.ShapeDtypeStruct((SUBLANE, LANE), F32),
        in_specs=[_VMEM] * len(inputs),
        out_specs=_VMEM,
    )(*inputs)
    return out_full[:B, :MEM_SIZE]                                 # (B, MEM_SIZE)


# ---------------------------- plain-JAX reference (for validation) ----------------------------

def reference_forward(params, X, X_pos):
    B, S, F_in = X.shape
    D = D_MODEL
    non_pad = jnp.any(X != 0, axis=2)
    non_pad_mask = non_pad.astype(F32)[:, :, None]
    attn_pad_mask = jnp.broadcast_to((~non_pad).astype(F32)[:, None, :], (B, S, S))

    def ln(x, g, b):
        mu = jnp.mean(x, -1, keepdims=True)
        var = jnp.mean((x - mu) ** 2, -1, keepdims=True)
        return (x - mu) / jnp.sqrt(var + 1e-5) * g + b

    emb = X.reshape(B * S, F_in) @ params['src_emb_w'] + params['src_emb_b']
    pos = jnp.take(params['pos_table'], X_pos, axis=0).reshape(B * S, D)
    enc = emb + pos
    mask_flat = non_pad_mask.reshape(B * S, 1)
    scale = 1.0 / np.sqrt(D_K)

    for lp in params['layers']:
        residual = enc
        q = (enc @ lp['w_qs'] + lp['b_qs']).reshape(B, S, N_HEAD, D_K).transpose(0, 2, 1, 3)
        k = (enc @ lp['w_ks'] + lp['b_ks']).reshape(B, S, N_HEAD, D_K).transpose(0, 2, 1, 3)
        v = (enc @ lp['w_vs'] + lp['b_vs']).reshape(B, S, N_HEAD, D_V).transpose(0, 2, 1, 3)
        s = jnp.einsum('bhqd,bhkd->bhqk', q, k) * scale
        s = jnp.where(attn_pad_mask[:, None, :, :] > 0, -jnp.inf, s)
        s = s - jnp.max(s, -1, keepdims=True)
        p = jnp.exp(s)
        p = p / jnp.sum(p, -1, keepdims=True)
        o = jnp.einsum('bhqk,bhkd->bhqd', p, v)
        o = o.transpose(0, 2, 1, 3).reshape(B * S, N_HEAD * D_V)
        o = o @ lp['fc_w'] + lp['fc_b']
        enc = ln(o + residual, lp['ln1_g'], lp['ln1_b']) * mask_flat
        residual = enc
        h = jnp.maximum(enc @ lp['ffn_w1'] + lp['ffn_b1'], 0.0)
        h = h @ lp['ffn_w2'] + lp['ffn_b2']
        enc = ln(h + residual, lp['ln2_g'], lp['ln2_b']) * mask_flat

    return enc.reshape(B, S * D) @ params['fc_mem_w'] + params['fc_mem_b']


# ---------------------------- main ----------------------------

if __name__ == "__main__":
    key = jax.random.PRNGKey(0)
    pkey, xkey = jax.random.split(key)
    params = make_params(pkey)

    # inputs: X has two all-zero (padding) timesteps to exercise the masks
    X = jax.random.normal(xkey, (BATCH, SEQ_LEN, N_SRC_FEATURES), dtype=F32)
    X = X.at[0, SEQ_LEN - 1, :].set(0.0)
    X = X.at[1, SEQ_LEN - 2, :].set(0.0)
    X_pos = jnp.broadcast_to(jnp.arange(1, SEQ_LEN + 1, dtype=jnp.int32),
                             (BATCH, SEQ_LEN))
    X_pos = X_pos.at[0, SEQ_LEN - 1].set(0)
    X_pos = X_pos.at[1, SEQ_LEN - 2].set(0)
    Y = jnp.zeros((BATCH, 1), dtype=F32)  # unused by the reference forward

    fwd = jax.jit(transformer_forward)
    out = fwd(params, X, X_pos)
    out = jax.block_until_ready(out)
    assert out.shape == (BATCH, MEM_SIZE)

    ref = reference_forward(params, X, X_pos)
    np.testing.assert_allclose(np.asarray(out), np.asarray(ref), atol=2e-2, rtol=2e-2)

    print("KERNEL_OK")
</pallas_src>

<mosaic_0001>
module attributes {stable_mosaic.version = 11 : i64} {
  func.func @_fused_transformer_kernel(%arg0: memref<64x32xf32, #tpu.memory_space<vmem>>, %arg1: memref<8x32xf32, #tpu.memory_space<vmem>>, %arg2: memref<2x32x192xf32, #tpu.memory_space<vmem>>, %arg3: memref<2x8x192xf32, #tpu.memory_space<vmem>>, %arg4: memref<2x32x64xf32, #tpu.memory_space<vmem>>, %arg5: memref<2x64x32xf32, #tpu.memory_space<vmem>>, %arg6: memref<192x128xf32, #tpu.memory_space<vmem>>, %arg7: memref<8x128xf32, #tpu.memory_space<vmem>>) attributes {dimension_semantics = [], scalar_prefetch = 0 : i64, scratch_operands = 0 : i64, tpu.core_type = #tpu.core_type<tc>} {
    %c0 = arith.constant 0 : index
    %c0_0 = arith.constant 0 : index
    %0 = vector.load %arg0[%c0, %c0_0] : memref<64x32xf32, #tpu.memory_space<vmem>>, vector<16x8xf32>
    %c16 = arith.constant 16 : index
    %c0_1 = arith.constant 0 : index
    %1 = vector.load %arg0[%c16, %c0_1] : memref<64x32xf32, #tpu.memory_space<vmem>>, vector<16x32xf32>
    %c32 = arith.constant 32 : index
    %c0_2 = arith.constant 0 : index
    %2 = vector.load %arg0[%c32, %c0_2] : memref<64x32xf32, #tpu.memory_space<vmem>>, vector<16x32xf32>
    %c48 = arith.constant 48 : index
    %c0_3 = arith.constant 0 : index
    %3 = vector.load %arg0[%c48, %c0_3] : memref<64x32xf32, #tpu.memory_space<vmem>>, vector<16x16xf32>
    %c0_4 = arith.constant 0 : index
    %c0_5 = arith.constant 0 : index
    %4 = vector.load %arg1[%c0_4, %c0_5] : memref<8x32xf32, #tpu.memory_space<vmem>>, vector<8x32xf32>
    %cst = arith.constant dense<0.000000e+00> : vector<16x32xf32>
    %5 = tpu.matmul %0, %4, %cst {dimension_numbers = #tpu.dot_dimension_numbers<[1], [0], [0], [1], [0, 0, 1, 1], [], []>} : vector<16x8xf32>, vector<8x32xf32>, vector<16x32xf32> -> vector<16x32xf32>
    %6 = arith.addf %5, %1 : vector<16x32xf32>
    %c0_6 = arith.constant 0 : index
    %c0_7 = arith.constant 0 : index
    %c0_8 = arith.constant 0 : index
    %7 = vector.load %arg2[%c0_6, %c0_7, %c0_8] : memref<2x32x192xf32, #tpu.memory_space<vmem>>, vector<1x32x192xf32>
    %8 = vector.shape_cast %7 : vector<1x32x192xf32> to vector<32x192xf32>
    %cst_9 = arith.constant dense<0.000000e+00> : vector<16x192xf32>
    %9 = tpu.matmul %6, %8, %cst_9 {dimension_numbers = #tpu.dot_dimension_numbers<[1], [0], [0], [1], [0, 0, 1, 1], [], []>} : vector<16x32xf32>, vector<32x192xf32>, vector<16x192xf32> -> vector<16x192xf32>
    %c0_10 = arith.constant 0 : index
    %c7 = arith.constant 7 : index
    %c0_11 = arith.constant 0 : index
    %10 = vector.load %arg3[%c0_10, %c7, %c0_11] : memref<2x8x192xf32, #tpu.memory_space<vmem>>, vector<1x1x192xf32>
    %11 = vector.shape_cast %10 : vector<1x1x192xf32> to vector<1x192xf32>
    %12 = vector.broadcast %11 : vector<1x192xf32> to vector<16x192xf32>
    %13 = arith.addf %9, %12 : vector<16x192xf32>
    %cst_12 = arith.constant 0.000000e+00 : f32
    %14 = vector.broadcast %cst_12 : f32 to vector<16x32xf32>
    %15 = vector.extract_strided_slice %13 {offsets = [0, 0], sizes = [16, 8], strides = [1, 1]} : vector<16x192xf32> to vector<16x8xf32>
    %16 = vector.extract_strided_slice %13 {offsets = [0, 32], sizes = [16, 8], strides = [1, 1]} : vector<16x192xf32> to vector<16x8xf32>
    %17 = vector.extract_strided_slice %13 {offsets = [0, 64], sizes = [16, 32], strides = [1, 1]} : vector<16x192xf32> to vector<16x32xf32>
    %cst_13 = arith.constant dense<0.000000e+00> : vector<16x16xf32>
    %18 = tpu.matmul %15, %16, %cst_13 {dimension_numbers = #tpu.dot_dimension_numbers<[1], [1], [0], [0], [0, 0, 1, 0], [], []>} : vector<16x8xf32>, vector<16x8xf32>, vector<16x16xf32> -> vector<16x16xf32>
    %cst_14 = arith.constant 0.353553385 : f32
    %19 = vector.broadcast %cst_14 : f32 to vector<16x16xf32>
    %20 = arith.mulf %18, %19 : vector<16x16xf32>
    %21 = arith.addf %20, %3 : vector<16x16xf32>
    %cst_15 = arith.constant dense<0xFF800000> : vector<16xf32>
    %22 = vector.multi_reduction <maximumf>, %21, %cst_15 [1] : vector<16x16xf32> to vector<16xf32>
    %23 = vector.shape_cast %22 : vector<16xf32> to vector<16x1xf32>
    %24 = vector.broadcast %23 : vector<16x1xf32> to vector<16x16xf32>
    %25 = arith.subf %21, %24 : vector<16x16xf32>
    %26 = math.exp %25 : vector<16x16xf32>
    %cst_16 = arith.constant dense<0.000000e+00> : vector<16xf32>
    %27 = vector.multi_reduction <add>, %26, %cst_16 [1] : vector<16x16xf32> to vector<16xf32>
    %28 = vector.shape_cast %27 : vector<16xf32> to vector<16x1xf32>
    %29 = tpu.reciprocal %28 {approx = true} : vector<16x1xf32> -> vector<16x1xf32>
    %30 = vector.broadcast %29 : vector<16x1xf32> to vector<16x16xf32>
    %31 = arith.mulf %26, %30 : vector<16x16xf32>
    %cst_17 = arith.constant dense<0.000000e+00> : vector<16x32xf32>
    %32 = tpu.matmul %31, %17, %cst_17 {dimension_numbers = #tpu.dot_dimension_numbers<[1], [0], [0], [1], [0, 0, 1, 1], [], []>} : vector<16x16xf32>, vector<16x32xf32>, vector<16x32xf32> -> vector<16x32xf32>
    %33 = arith.addf %14, %32 : vector<16x32xf32>
    %34 = vector.extract_strided_slice %13 {offsets = [0, 8], sizes = [16, 8], strides = [1, 1]} : vector<16x192xf32> to vector<16x8xf32>
    %35 = vector.extract_strided_slice %13 {offsets = [0, 40], sizes = [16, 8], strides = [1, 1]} : vector<16x192xf32> to vector<16x8xf32>
    %36 = vector.extract_strided_slice %13 {offsets = [0, 96], sizes = [16, 32], strides = [1, 1]} : vector<16x192xf32> to vector<16x32xf32>
    %cst_18 = arith.constant dense<0.000000e+00> : vector<16x16xf32>
    %37 = tpu.matmul %34, %35, %cst_18 {dimension_numbers = #tpu.dot_dimension_numbers<[1], [1], [0], [0], [0, 0, 1, 0], [], []>} : vector<16x8xf32>, vector<16x8xf32>, vector<16x16xf32> -> vector<16x16xf32>
    %cst_19 = arith.constant 0.353553385 : f32
    %38 = vector.broadcast %cst_19 : f32 to vector<16x16xf32>
    %39 = arith.mulf %37, %38 : vector<16x16xf32>
    %40 = arith.addf %39, %3 : vector<16x16xf32>
    %cst_20 = arith.constant dense<0xFF800000> : vector<16xf32>
    %41 = vector.multi_reduction <maximumf>, %40, %cst_20 [1] : vector<16x16xf32> to vector<16xf32>
    %42 = vector.shape_cast %41 : vector<16xf32> to vector<16x1xf32>
    %43 = vector.broadcast %42 : vector<16x1xf32> to vector<16x16xf32>
    %44 = arith.subf %40, %43 : vector<16x16xf32>
    %45 = math.exp %44 : vector<16x16xf32>
    %cst_21 = arith.constant dense<0.000000e+00> : vector<16xf32>
    %46 = vector.multi_reduction <add>, %45, %cst_21 [1] : vector<16x16xf32> to vector<16xf32>
    %47 = vector.shape_cast %46 : vector<16xf32> to vector<16x1xf32>
    %48 = tpu.reciprocal %47 {approx = true} : vector<16x1xf32> -> vector<16x1xf32>
    %49 = vector.broadcast %48 : vector<16x1xf32> to vector<16x16xf32>
    %50 = arith.mulf %45, %49 : vector<16x16xf32>
    %cst_22 = arith.constant dense<0.000000e+00> : vector<16x32xf32>
    %51 = tpu.matmul %50, %36, %cst_22 {dimension_numbers = #tpu.dot_dimension_numbers<[1], [0], [0], [1], [0, 0, 1, 1], [], []>} : vector<16x16xf32>, vector<16x32xf32>, vector<16x32xf32> -> vector<16x32xf32>
    %52 = arith.addf %33, %51 : vector<16x32xf32>
    %53 = vector.extract_strided_slice %13 {offsets = [0, 16], sizes = [16, 8], strides = [1, 1]} : vector<16x192xf32> to vector<16x8xf32>
    %54 = vector.extract_strided_slice %13 {offsets = [0, 48], sizes = [16, 8], strides = [1, 1]} : vector<16x192xf32> to vector<16x8xf32>
    %55 = vector.extract_strided_slice %13 {offsets = [0, 128], sizes = [16, 32], strides = [1, 1]} : vector<16x192xf32> to vector<16x32xf32>
    %cst_23 = arith.constant dense<0.000000e+00> : vector<16x16xf32>
    %56 = tpu.matmul %53, %54, %cst_23 {dimension_numbers = #tpu.dot_dimension_numbers<[1], [1], [0], [0], [0, 0, 1, 0], [], []>} : vector<16x8xf32>, vector<16x8xf32>, vector<16x16xf32> -> vector<16x16xf32>
    %cst_24 = arith.constant 0.353553385 : f32
    %57 = vector.broadcast %cst_24 : f32 to vector<16x16xf32>
    %58 = arith.mulf %56, %57 : vector<16x16xf32>
    %59 = arith.addf %58, %3 : vector<16x16xf32>
    %cst_25 = arith.constant dense<0xFF800000> : vector<16xf32>
    %60 = vector.multi_reduction <maximumf>, %59, %cst_25 [1] : vector<16x16xf32> to vector<16xf32>
    %61 = vector.shape_cast %60 : vector<16xf32> to vector<16x1xf32>
    %62 = vector.broadcast %61 : vector<16x1xf32> to vector<16x16xf32>
    %63 = arith.subf %59, %62 : vector<16x16xf32>
    %64 = math.exp %63 : vector<16x16xf32>
    %cst_26 = arith.constant dense<0.000000e+00> : vector<16xf32>
    %65 = vector.multi_reduction <add>, %64, %cst_26 [1] : vector<16x16xf32> to vector<16xf32>
    %66 = vector.shape_cast %65 : vector<16xf32> to vector<16x1xf32>
    %67 = tpu.reciprocal %66 {approx = true} : vector<16x1xf32> -> vector<16x1xf32>
    %68 = vector.broadcast %67 : vector<16x1xf32> to vector<16x16xf32>
    %69 = arith.mulf %64, %68 : vector<16x16xf32>
    %cst_27 = arith.constant dense<0.000000e+00> : vector<16x32xf32>
    %70 = tpu.matmul %69, %55, %cst_27 {dimension_numbers = #tpu.dot_dimension_numbers<[1], [0], [0], [1], [0, 0, 1, 1], [], []>} : vector<16x16xf32>, vector<16x32xf32>, vector<16x32xf32> -> vector<16x32xf32>
    %71 = arith.addf %52, %70 : vector<16x32xf32>
    %72 = vector.extract_strided_slice %13 {offsets = [0, 24], sizes = [16, 8], strides = [1, 1]} : vector<16x192xf32> to vector<16x8xf32>
    %73 = vector.extract_strided_slice %13 {offsets = [0, 56], sizes = [16, 8], strides = [1, 1]} : vector<16x192xf32> to vector<16x8xf32>
    %74 = vector.extract_strided_slice %13 {offsets = [0, 160], sizes = [16, 32], strides = [1, 1]} : vector<16x192xf32> to vector<16x32xf32>
    %cst_28 = arith.constant dense<0.000000e+00> : vector<16x16xf32>
    %75 = tpu.matmul %72, %73, %cst_28 {dimension_numbers = #tpu.dot_dimension_numbers<[1], [1], [0], [0], [0, 0, 1, 0], [], []>} : vector<16x8xf32>, vector<16x8xf32>, vector<16x16xf32> -> vector<16x16xf32>
    %cst_29 = arith.constant 0.353553385 : f32
    %76 = vector.broadcast %cst_29 : f32 to vector<16x16xf32>
    %77 = arith.mulf %75, %76 : vector<16x16xf32>
    %78 = arith.addf %77, %3 : vector<16x16xf32>
    %cst_30 = arith.constant dense<0xFF800000> : vector<16xf32>
    %79 = vector.multi_reduction <maximumf>, %78, %cst_30 [1] : vector<16x16xf32> to vector<16xf32>
    %80 = vector.shape_cast %79 : vector<16xf32> to vector<16x1xf32>
    %81 = vector.broadcast %80 : vector<16x1xf32> to vector<16x16xf32>
    %82 = arith.subf %78, %81 : vector<16x16xf32>
    %83 = math.exp %82 : vector<16x16xf32>
    %cst_31 = arith.constant dense<0.000000e+00> : vector<16xf32>
    %84 = vector.multi_reduction <add>, %83, %cst_31 [1] : vector<16x16xf32> to vector<16xf32>
    %85 = vector.shape_cast %84 : vector<16xf32> to vector<16x1xf32>
    %86 = tpu.reciprocal %85 {approx = true} : vector<16x1xf32> -> vector<16x1xf32>
    %87 = vector.broadcast %86 : vector<16x1xf32> to vector<16x16xf32>
    %88 = arith.mulf %83, %87 : vector<16x16xf32>
    %cst_32 = arith.constant dense<0.000000e+00> : vector<16x32xf32>
    %89 = tpu.matmul %88, %74, %cst_32 {dimension_numbers = #tpu.dot_dimension_numbers<[1], [0], [0], [1], [0, 0, 1, 1], [], []>} : vector<16x16xf32>, vector<16x32xf32>, vector<16x32xf32> -> vector<16x32xf32>
    %90 = arith.addf %71, %89 : vector<16x32xf32>
    %c0_33 = arith.constant 0 : index
    %c0_34 = arith.constant 0 : index
    %c0_35 = arith.constant 0 : index
    %91 = vector.load %arg3[%c0_33, %c0_34, %c0_35] : memref<2x8x192xf32, #tpu.memory_space<vmem>>, vector<1x1x32xf32>
    %92 = vector.shape_cast %91 : vector<1x1x32xf32> to vector<1x32xf32>
    %93 = vector.broadcast %92 : vector<1x32xf32> to vector<16x32xf32>
    %94 = arith.addf %90, %93 : vector<16x32xf32>
    %c0_36 = arith.constant 0 : index
    %c1 = arith.constant 1 : index
    %c0_37 = arith.constant 0 : index
    %95 = vector.load %arg3[%c0_36, %c1, %c0_37] : memref<2x8x192xf32, #tpu.memory_space<vmem>>, vector<1x1x32xf32>
    %96 = vector.shape_cast %95 : vector<1x1x32xf32> to vector<1x32xf32>
    %c0_38 = arith.constant 0 : index
    %c2 = arith.constant 2 : index
    %c0_39 = arith.constant 0 : index
    %97 = vector.load %arg3[%c0_38, %c2, %c0_39] : memref<2x8x192xf32, #tpu.memory_space<vmem>>, vector<1x1x32xf32>
    %98 = vector.shape_cast %97 : vector<1x1x32xf32> to vector<1x32xf32>
    %99 = arith.addf %94, %6 : vector<16x32xf32>
    %cst_40 = arith.constant dense<0.000000e+00> : vector<16xf32>
    %100 = vector.multi_reduction <add>, %99, %cst_40 [1] : vector<16x32xf32> to vector<16xf32>
    %101 = vector.shape_cast %100 : vector<16xf32> to vector<16x1xf32>
    %cst_41 = arith.constant 3.200000e+01 : f32
    %102 = vector.broadcast %cst_41 : f32 to vector<16x1xf32>
    %103 = arith.divf %101, %102 : vector<16x1xf32>
    %104 = vector.broadcast %103 : vector<16x1xf32> to vector<16x32xf32>
    %105 = arith.subf %99, %104 : vector<16x32xf32>
    %106 = arith.mulf %105, %105 : vector<16x32xf32>
    %cst_42 = arith.constant dense<0.000000e+00> : vector<16xf32>
    %107 = vector.multi_reduction <add>, %106, %cst_42 [1] : vector<16x32xf32> to vector<16xf32>
    %108 = vector.shape_cast %107 : vector<16xf32> to vector<16x1xf32>
    %cst_43 = arith.constant 3.200000e+01 : f32
    %109 = vector.broadcast %cst_43 : f32 to vector<16x1xf32>
    %110 = arith.divf %108, %109 : vector<16x1xf32>
    %111 = vector.broadcast %103 : vector<16x1xf32> to vector<16x32xf32>
    %112 = arith.subf %99, %111 : vector<16x32xf32>
    %cst_44 = arith.constant 9.99999974E-6 : f32
    %113 = vector.broadcast %cst_44 : f32 to vector<16x1xf32>
    %114 = arith.addf %110, %113 : vector<16x1xf32>
    %115 = math.rsqrt %114 : vector<16x1xf32>
    %116 = vector.broadcast %115 : vector<16x1xf32> to vector<16x32xf32>
    %117 = arith.mulf %112, %116 : vector<16x32xf32>
    %118 = vector.broadcast %96 : vector<1x32xf32> to vector<16x32xf32>
    %119 = arith.mulf %117, %118 : vector<16x32xf32>
    %120 = vector.broadcast %98 : vector<1x32xf32> to vector<16x32xf32>
    %121 = arith.addf %119, %120 : vector<16x32xf32>
    %122 = arith.mulf %121, %2 : vector<16x32xf32>
    %c0_45 = arith.constant 0 : index
    %c0_46 = arith.constant 0 : index
    %c0_47 = arith.constant 0 : index
    %123 = vector.load %arg4[%c0_45, %c0_46, %c0_47] : memref<2x32x64xf32, #tpu.memory_space<vmem>>, vector<1x32x64xf32>
    %124 = vector.shape_cast %123 : vector<1x32x64xf32> to vector<32x64xf32>
    %cst_48 = arith.constant dense<0.000000e+00> : vector<16x64xf32>
    %125 = tpu.matmul %122, %124, %cst_48 {dimension_numbers = #tpu.dot_dimension_numbers<[1], [0], [0], [1], [0, 0, 1, 1], [], []>} : vector<16x32xf32>, vector<32x64xf32>, vector<16x64xf32> -> vector<16x64xf32>
    %c0_49 = arith.constant 0 : index
    %c6 = arith.constant 6 : index
    %c0_50 = arith.constant 0 : index
    %126 = vector.load %arg3[%c0_49, %c6, %c0_50] : memref<2x8x192xf32, #tpu.memory_space<vmem>>, vector<1x1x64xf32>
    %127 = vector.shape_cast %126 : vector<1x1x64xf32> to vector<1x64xf32>
    %128 = vector.broadcast %127 : vector<1x64xf32> to vector<16x64xf32>
    %129 = arith.addf %125, %128 : vector<16x64xf32>
    %cst_51 = arith.constant 0.000000e+00 : f32
    %130 = vector.broadcast %cst_51 : f32 to vector<16x64xf32>
    %131 = arith.maximumf %129, %130 : vector<16x64xf32>
    %c0_52 = arith.constant 0 : index
    %c0_53 = arith.constant 0 : index
    %c0_54 = arith.constant 0 : index
    %132 = vector.load %arg5[%c0_52, %c0_53, %c0_54] : memref<2x64x32xf32, #tpu.memory_space<vmem>>, vector<1x64x32xf32>
    %133 = vector.shape_cast %132 : vector<1x64x32xf32> to vector<64x32xf32>
    %cst_55 = arith.constant dense<0.000000e+00> : vector<16x32xf32>
    %134 = tpu.matmul %131, %133, %cst_55 {dimension_numbers = #tpu.dot_dimension_numbers<[1], [0], [0], [1], [0, 0, 1, 1], [], []>} : vector<16x64xf32>, vector<64x32xf32>, vector<16x32xf32> -> vector<16x32xf32>
    %c0_56 = arith.constant 0 : index
    %c5 = arith.constant 5 : index
    %c0_57 = arith.constant 0 : index
    %135 = vector.load %arg3[%c0_56, %c5, %c0_57] : memref<2x8x192xf32, #tpu.memory_space<vmem>>, vector<1x1x32xf32>
    %136 = vector.shape_cast %135 : vector<1x1x32xf32> to vector<1x32xf32>
    %137 = vector.broadcast %136 : vector<1x32xf32> to vector<16x32xf32>
    %138 = arith.addf %134, %137 : vector<16x32xf32>
    %c0_58 = arith.constant 0 : index
    %c3 = arith.constant 3 : index
    %c0_59 = arith.constant 0 : index
    %139 = vector.load %arg3[%c0_58, %c3, %c0_59] : memref<2x8x192xf32, #tpu.memory_space<vmem>>, vector<1x1x32xf32>
    %140 = vector.shape_cast %139 : vector<1x1x32xf32> to vector<1x32xf32>
    %c0_60 = arith.constant 0 : index
    %c4 = arith.constant 4 : index
    %c0_61 = arith.constant 0 : index
    %141 = vector.load %arg3[%c0_60, %c4, %c0_61] : memref<2x8x192xf32, #tpu.memory_space<vmem>>, vector<1x1x32xf32>
    %142 = vector.shape_cast %141 : vector<1x1x32xf32> to vector<1x32xf32>
    %143 = arith.addf %138, %122 : vector<16x32xf32>
    %cst_62 = arith.constant dense<0.000000e+00> : vector<16xf32>
    %144 = vector.multi_reduction <add>, %143, %cst_62 [1] : vector<16x32xf32> to vector<16xf32>
    %145 = vector.shape_cast %144 : vector<16xf32> to vector<16x1xf32>
    %cst_63 = arith.constant 3.200000e+01 : f32
    %146 = vector.broadcast %cst_63 : f32 to vector<16x1xf32>
    %147 = arith.divf %145, %146 : vector<16x1xf32>
    %148 = vector.broadcast %147 : vector<16x1xf32> to vector<16x32xf32>
    %149 = arith.subf %143, %148 : vector<16x32xf32>
    %150 = arith.mulf %149, %149 : vector<16x32xf32>
    %cst_64 = arith.constant dense<0.000000e+00> : vector<16xf32>
    %151 = vector.multi_reduction <add>, %150, %cst_64 [1] : vector<16x32xf32> to vector<16xf32>
    %152 = vector.shape_cast %151 : vector<16xf32> to vector<16x1xf32>
    %cst_65 = arith.constant 3.200000e+01 : f32
    %153 = vector.broadcast %cst_65 : f32 to vector<16x1xf32>
    %154 = arith.divf %152, %153 : vector<16x1xf32>
    %155 = vector.broadcast %147 : vector<16x1xf32> to vector<16x32xf32>
    %156 = arith.subf %143, %155 : vector<16x32xf32>
    %cst_66 = arith.constant 9.99999974E-6 : f32
    %157 = vector.broadcast %cst_66 : f32 to vector<16x1xf32>
    %158 = arith.addf %154, %157 : vector<16x1xf32>
    %159 = math.rsqrt %158 : vector<16x1xf32>
    %160 = vector.broadcast %159 : vector<16x1xf32> to vector<16x32xf32>
    %161 = arith.mulf %156, %160 : vector<16x32xf32>
    %162 = vector.broadcast %140 : vector<1x32xf32> to vector<16x32xf32>
    %163 = arith.mulf %161, %162 : vector<16x32xf32>
    %164 = vector.broadcast %142 : vector<1x32xf32> to vector<16x32xf32>
    %165 = arith.addf %163, %164 : vector<16x32xf32>
    %166 = arith.mulf %165, %2 : vector<16x32xf32>
    %c1_67 = arith.constant 1 : index
    %c0_68 = arith.constant 0 : index
    %c0_69 = arith.constant 0 : index
    %167 = vector.load %arg2[%c1_67, %c0_68, %c0_69] : memref<2x32x192xf32, #tpu.memory_space<vmem>>, vector<1x32x192xf32>
    %168 = vector.shape_cast %167 : vector<1x32x192xf32> to vector<32x192xf32>
    %cst_70 = arith.constant dense<0.000000e+00> : vector<16x192xf32>
    %169 = tpu.matmul %166, %168, %cst_70 {dimension_numbers = #tpu.dot_dimension_numbers<[1], [0], [0], [1], [0, 0, 1, 1], [], []>} : vector<16x32xf32>, vector<32x192xf32>, vector<16x192xf32> -> vector<16x192xf32>
    %c1_71 = arith.constant 1 : index
    %c7_72 = arith.constant 7 : index
    %c0_73 = arith.constant 0 : index
    %170 = vector.load %arg3[%c1_71, %c7_72, %c0_73] : memref<2x8x192xf32, #tpu.memory_space<vmem>>, vector<1x1x192xf32>
    %171 = vector.shape_cast %170 : vector<1x1x192xf32> to vector<1x192xf32>
    %172 = vector.broadcast %171 : vector<1x192xf32> to vector<16x192xf32>
    %173 = arith.addf %169, %172 : vector<16x192xf32>
    %cst_74 = arith.constant 0.000000e+00 : f32
    %174 = vector.broadcast %cst_74 : f32 to vector<16x32xf32>
    %175 = vector.extract_strided_slice %173 {offsets = [0, 0], sizes = [16, 8], strides = [1, 1]} : vector<16x192xf32> to vector<16x8xf32>
    %176 = vector.extract_strided_slice %173 {offsets = [0, 32], sizes = [16, 8], strides = [1, 1]} : vector<16x192xf32> to vector<16x8xf32>
    %177 = vector.extract_strided_slice %173 {offsets = [0, 64], sizes = [16, 32], strides = [1, 1]} : vector<16x192xf32> to vector<16x32xf32>
    %cst_75 = arith.constant dense<0.000000e+00> : vector<16x16xf32>
    %178 = tpu.matmul %175, %176, %cst_75 {dimension_numbers = #tpu.dot_dimension_numbers<[1], [1], [0], [0], [0, 0, 1, 0], [], []>} : vector<16x8xf32>, vector<16x8xf32>, vector<16x16xf32> -> vector<16x16xf32>
    %cst_76 = arith.constant 0.353553385 : f32
    %179 = vector.broadcast %cst_76 : f32 to vector<16x16xf32>
    %180 = arith.mulf %178, %179 : vector<16x16xf32>
    %181 = arith.addf %180, %3 : vector<16x16xf32>
    %cst_77 = arith.constant dense<0xFF800000> : vector<16xf32>
    %182 = vector.multi_reduction <maximumf>, %181, %cst_77 [1] : vector<16x16xf32> to vector<16xf32>
    %183 = vector.shape_cast %182 : vector<16xf32> to vector<16x1xf32>
    %184 = vector.broadcast %183 : vector<16x1xf32> to vector<16x16xf32>
    %185 = arith.subf %181, %184 : vector<16x16xf32>
    %186 = math.exp %185 : vector<16x16xf32>
    %cst_78 = arith.constant dense<0.000000e+00> : vector<16xf32>
    %187 = vector.multi_reduction <add>, %186, %cst_78 [1] : vector<16x16xf32> to vector<16xf32>
    %188 = vector.shape_cast %187 : vector<16xf32> to vector<16x1xf32>
    %189 = tpu.reciprocal %188 {approx = true} : vector<16x1xf32> -> vector<16x1xf32>
    %190 = vector.broadcast %189 : vector<16x1xf32> to vector<16x16xf32>
    %191 = arith.mulf %186, %190 : vector<16x16xf32>
    %cst_79 = arith.constant dense<0.000000e+00> : vector<16x32xf32>
    %192 = tpu.matmul %191, %177, %cst_79 {dimension_numbers = #tpu.dot_dimension_numbers<[1], [0], [0], [1], [0, 0, 1, 1], [], []>} : vector<16x16xf32>, vector<16x32xf32>, vector<16x32xf32> -> vector<16x32xf32>
    %193 = arith.addf %174, %192 : vector<16x32xf32>
    %194 = vector.extract_strided_slice %173 {offsets = [0, 8], sizes = [16, 8], strides = [1, 1]} : vector<16x192xf32> to vector<16x8xf32>
    %195 = vector.extract_strided_slice %173 {offsets = [0, 40], sizes = [16, 8], strides = [1, 1]} : vector<16x192xf32> to vector<16x8xf32>
    %196 = vector.extract_strided_slice %173 {offsets = [0, 96], sizes = [16, 32], strides = [1, 1]} : vector<16x192xf32> to vector<16x32xf32>
    %cst_80 = arith.constant dense<0.000000e+00> : vector<16x16xf32>
    %197 = tpu.matmul %194, %195, %cst_80 {dimension_numbers = #tpu.dot_dimension_numbers<[1], [1], [0], [0], [0, 0, 1, 0], [], []>} : vector<16x8xf32>, vector<16x8xf32>, vector<16x16xf32> -> vector<16x16xf32>
    %cst_81 = arith.constant 0.353553385 : f32
    %198 = vector.broadcast %cst_81 : f32 to vector<16x16xf32>
    %199 = arith.mulf %197, %198 : vector<16x16xf32>
    %200 = arith.addf %199, %3 : vector<16x16xf32>
    %cst_82 = arith.constant dense<0xFF800000> : vector<16xf32>
    %201 = vector.multi_reduction <maximumf>, %200, %cst_82 [1] : vector<16x16xf32> to vector<16xf32>
    %202 = vector.shape_cast %201 : vector<16xf32> to vector<16x1xf32>
    %203 = vector.broadcast %202 : vector<16x1xf32> to vector<16x16xf32>
    %204 = arith.subf %200, %203 : vector<16x16xf32>
    %205 = math.exp %204 : vector<16x16xf32>
    %cst_83 = arith.constant dense<0.000000e+00> : vector<16xf32>
    %206 = vector.multi_reduction <add>, %205, %cst_83 [1] : vector<16x16xf32> to vector<16xf32>
    %207 = vector.shape_cast %206 : vector<16xf32> to vector<16x1xf32>
    %208 = tpu.reciprocal %207 {approx = true} : vector<16x1xf32> -> vector<16x1xf32>
    %209 = vector.broadcast %208 : vector<16x1xf32> to vector<16x16xf32>
    %210 = arith.mulf %205, %209 : vector<16x16xf32>
    %cst_84 = arith.constant dense<0.000000e+00> : vector<16x32xf32>
    %211 = tpu.matmul %210, %196, %cst_84 {dimension_numbers = #tpu.dot_dimension_numbers<[1], [0], [0], [1], [0, 0, 1, 1], [], []>} : vector<16x16xf32>, vector<16x32xf32>, vector<16x32xf32> -> vector<16x32xf32>
    %212 = arith.addf %193, %211 : vector<16x32xf32>
    %213 = vector.extract_strided_slice %173 {offsets = [0, 16], sizes = [16, 8], strides = [1, 1]} : vector<16x192xf32> to vector<16x8xf32>
    %214 = vector.extract_strided_slice %173 {offsets = [0, 48], sizes = [16, 8], strides = [1, 1]} : vector<16x192xf32> to vector<16x8xf32>
    %215 = vector.extract_strided_slice %173 {offsets = [0, 128], sizes = [16, 32], strides = [1, 1]} : vector<16x192xf32> to vector<16x32xf32>
    %cst_85 = arith.constant dense<0.000000e+00> : vector<16x16xf32>
    %216 = tpu.matmul %213, %214, %cst_85 {dimension_numbers = #tpu.dot_dimension_numbers<[1], [1], [0], [0], [0, 0, 1, 0], [], []>} : vector<16x8xf32>, vector<16x8xf32>, vector<16x16xf32> -> vector<16x16xf32>
    %cst_86 = arith.constant 0.353553385 : f32
    %217 = vector.broadcast %cst_86 : f32 to vector<16x16xf32>
    %218 = arith.mulf %216, %217 : vector<16x16xf32>
    %219 = arith.addf %218, %3 : vector<16x16xf32>
    %cst_87 = arith.constant dense<0xFF800000> : vector<16xf32>
    %220 = vector.multi_reduction <maximumf>, %219, %cst_87 [1] : vector<16x16xf32> to vector<16xf32>
    %221 = vector.shape_cast %220 : vector<16xf32> to vector<16x1xf32>
    %222 = vector.broadcast %221 : vector<16x1xf32> to vector<16x16xf32>
    %223 = arith.subf %219, %222 : vector<16x16xf32>
    %224 = math.exp %223 : vector<16x16xf32>
    %cst_88 = arith.constant dense<0.000000e+00> : vector<16xf32>
    %225 = vector.multi_reduction <add>, %224, %cst_88 [1] : vector<16x16xf32> to vector<16xf32>
    %226 = vector.shape_cast %225 : vector<16xf32> to vector<16x1xf32>
    %227 = tpu.reciprocal %226 {approx = true} : vector<16x1xf32> -> vector<16x1xf32>
    %228 = vector.broadcast %227 : vector<16x1xf32> to vector<16x16xf32>
    %229 = arith.mulf %224, %228 : vector<16x16xf32>
    %cst_89 = arith.constant dense<0.000000e+00> : vector<16x32xf32>
    %230 = tpu.matmul %229, %215, %cst_89 {dimension_numbers = #tpu.dot_dimension_numbers<[1], [0], [0], [1], [0, 0, 1, 1], [], []>} : vector<16x16xf32>, vector<16x32xf32>, vector<16x32xf32> -> vector<16x32xf32>
    %231 = arith.addf %212, %230 : vector<16x32xf32>
    %232 = vector.extract_strided_slice %173 {offsets = [0, 24], sizes = [16, 8], strides = [1, 1]} : vector<16x192xf32> to vector<16x8xf32>
    %233 = vector.extract_strided_slice %173 {offsets = [0, 56], sizes = [16, 8], strides = [1, 1]} : vector<16x192xf32> to vector<16x8xf32>
    %234 = vector.extract_strided_slice %173 {offsets = [0, 160], sizes = [16, 32], strides = [1, 1]} : vector<16x192xf32> to vector<16x32xf32>
    %cst_90 = arith.constant dense<0.000000e+00> : vector<16x16xf32>
    %235 = tpu.matmul %232, %233, %cst_90 {dimension_numbers = #tpu.dot_dimension_numbers<[1], [1], [0], [0], [0, 0, 1, 0], [], []>} : vector<16x8xf32>, vector<16x8xf32>, vector<16x16xf32> -> vector<16x16xf32>
    %cst_91 = arith.constant 0.353553385 : f32
    %236 = vector.broadcast %cst_91 : f32 to vector<16x16xf32>
    %237 = arith.mulf %235, %236 : vector<16x16xf32>
    %238 = arith.addf %237, %3 : vector<16x16xf32>
    %cst_92 = arith.constant dense<0xFF800000> : vector<16xf32>
    %239 = vector.multi_reduction <maximumf>, %238, %cst_92 [1] : vector<16x16xf32> to vector<16xf32>
    %240 = vector.shape_cast %239 : vector<16xf32> to vector<16x1xf32>
    %241 = vector.broadcast %240 : vector<16x1xf32> to vector<16x16xf32>
    %242 = arith.subf %238, %241 : vector<16x16xf32>
    %243 = math.exp %242 : vector<16x16xf32>
    %cst_93 = arith.constant dense<0.000000e+00> : vector<16xf32>
    %244 = vector.multi_reduction <add>, %243, %cst_93 [1] : vector<16x16xf32> to vector<16xf32>
    %245 = vector.shape_cast %244 : vector<16xf32> to vector<16x1xf32>
    %246 = tpu.reciprocal %245 {approx = true} : vector<16x1xf32> -> vector<16x1xf32>
    %247 = vector.broadcast %246 : vector<16x1xf32> to vector<16x16xf32>
    %248 = arith.mulf %243, %247 : vector<16x16xf32>
    %cst_94 = arith.constant dense<0.000000e+00> : vector<16x32xf32>
    %249 = tpu.matmul %248, %234, %cst_94 {dimension_numbers = #tpu.dot_dimension_numbers<[1], [0], [0], [1], [0, 0, 1, 1], [], []>} : vector<16x16xf32>, vector<16x32xf32>, vector<16x32xf32> -> vector<16x32xf32>
    %250 = arith.addf %231, %249 : vector<16x32xf32>
    %c1_95 = arith.constant 1 : index
    %c0_96 = arith.constant 0 : index
    %c0_97 = arith.constant 0 : index
    %251 = vector.load %arg3[%c1_95, %c0_96, %c0_97] : memref<2x8x192xf32, #tpu.memory_space<vmem>>, vector<1x1x32xf32>
    %252 = vector.shape_cast %251 : vector<1x1x32xf32> to vector<1x32xf32>
    %253 = vector.broadcast %252 : vector<1x32xf32> to vector<16x32xf32>
    %254 = arith.addf %250, %253 : vector<16x32xf32>
    %c1_98 = arith.constant 1 : index
    %c1_99 = arith.constant 1 : index
    %c0_100 = arith.constant 0 : index
    %255 = vector.load %arg3[%c1_98, %c1_99, %c0_100] : memref<2x8x192xf32, #tpu.memory_space<vmem>>, vector<1x1x32xf32>
    %256 = vector.shape_cast %255 : vector<1x1x32xf32> to vector<1x32xf32>
    %c1_101 = arith.constant 1 : index
    %c2_102 = arith.constant 2 : index
    %c0_103 = arith.constant 0 : index
    %257 = vector.load %arg3[%c1_101, %c2_102, %c0_103] : memref<2x8x192xf32, #tpu.memory_space<vmem>>, vector<1x1x32xf32>
    %258 = vector.shape_cast %257 : vector<1x1x32xf32> to vector<1x32xf32>
    %259 = arith.addf %254, %166 : vector<16x32xf32>
    %cst_104 = arith.constant dense<0.000000e+00> : vector<16xf32>
    %260 = vector.multi_reduction <add>, %259, %cst_104 [1] : vector<16x32xf32> to vector<16xf32>
    %261 = vector.shape_cast %260 : vector<16xf32> to vector<16x1xf32>
    %cst_105 = arith.constant 3.200000e+01 : f32
    %262 = vector.broadcast %cst_105 : f32 to vector<16x1xf32>
    %263 = arith.divf %261, %262 : vector<16x1xf32>
    %264 = vector.broadcast %263 : vector<16x1xf32> to vector<16x32xf32>
    %265 = arith.subf %259, %264 : vector<16x32xf32>
    %266 = arith.mulf %265, %265 : vector<16x32xf32>
    %cst_106 = arith.constant dense<0.000000e+00> : vector<16xf32>
    %267 = vector.multi_reduction <add>, %266, %cst_106 [1] : vector<16x32xf32> to vector<16xf32>
    %268 = vector.shape_cast %267 : vector<16xf32> to vector<16x1xf32>
    %cst_107 = arith.constant 3.200000e+01 : f32
    %269 = vector.broadcast %cst_107 : f32 to vector<16x1xf32>
    %270 = arith.divf %268, %269 : vector<16x1xf32>
    %271 = vector.broadcast %263 : vector<16x1xf32> to vector<16x32xf32>
    %272 = arith.subf %259, %271 : vector<16x32xf32>
    %cst_108 = arith.constant 9.99999974E-6 : f32
    %273 = vector.broadcast %cst_108 : f32 to vector<16x1xf32>
    %274 = arith.addf %270, %273 : vector<16x1xf32>
    %275 = math.rsqrt %274 : vector<16x1xf32>
    %276 = vector.broadcast %275 : vector<16x1xf32> to vector<16x32xf32>
    %277 = arith.mulf %272, %276 : vector<16x32xf32>
    %278 = vector.broadcast %256 : vector<1x32xf32> to vector<16x32xf32>
    %279 = arith.mulf %277, %278 : vector<16x32xf32>
    %280 = vector.broadcast %258 : vector<1x32xf32> to vector<16x32xf32>
    %281 = arith.addf %279, %280 : vector<16x32xf32>
    %282 = arith.mulf %281, %2 : vector<16x32xf32>
    %c1_109 = arith.constant 1 : index
    %c0_110 = arith.constant 0 : index
    %c0_111 = arith.constant 0 : index
    %283 = vector.load %arg4[%c1_109, %c0_110, %c0_111] : memref<2x32x64xf32, #tpu.memory_space<vmem>>, vector<1x32x64xf32>
    %284 = vector.shape_cast %283 : vector<1x32x64xf32> to vector<32x64xf32>
    %cst_112 = arith.constant dense<0.000000e+00> : vector<16x64xf32>
    %285 = tpu.matmul %282, %284, %cst_112 {dimension_numbers = #tpu.dot_dimension_numbers<[1], [0], [0], [1], [0, 0, 1, 1], [], []>} : vector<16x32xf32>, vector<32x64xf32>, vector<16x64xf32> -> vector<16x64xf32>
    %c1_113 = arith.constant 1 : index
    %c6_114 = arith.constant 6 : index
    %c0_115 = arith.constant 0 : index
    %286 = vector.load %arg3[%c1_113, %c6_114, %c0_115] : memref<2x8x192xf32, #tpu.memory_space<vmem>>, vector<1x1x64xf32>
    %287 = vector.shape_cast %286 : vector<1x1x64xf32> to vector<1x64xf32>
    %288 = vector.broadcast %287 : vector<1x64xf32> to vector<16x64xf32>
    %289 = arith.addf %285, %288 : vector<16x64xf32>
    %cst_116 = arith.constant 0.000000e+00 : f32
    %290 = vector.broadcast %cst_116 : f32 to vector<16x64xf32>
    %291 = arith.maximumf %289, %290 : vector<16x64xf32>
    %c1_117 = arith.constant 1 : index
    %c0_118 = arith.constant 0 : index
    %c0_119 = arith.constant 0 : index
    %292 = vector.load %arg5[%c1_117, %c0_118, %c0_119] : memref<2x64x32xf32, #tpu.memory_space<vmem>>, vector<1x64x32xf32>
    %293 = vector.shape_cast %292 : vector<1x64x32xf32> to vector<64x32xf32>
    %cst_120 = arith.constant dense<0.000000e+00> : vector<16x32xf32>
    %294 = tpu.matmul %291, %293, %cst_120 {dimension_numbers = #tpu.dot_dimension_numbers<[1], [0], [0], [1], [0, 0, 1, 1], [], []>} : vector<16x64xf32>, vector<64x32xf32>, vector<16x32xf32> -> vector<16x32xf32>
    %c1_121 = arith.constant 1 : index
    %c5_122 = arith.constant 5 : index
    %c0_123 = arith.constant 0 : index
    %295 = vector.load %arg3[%c1_121, %c5_122, %c0_123] : memref<2x8x192xf32, #tpu.memory_space<vmem>>, vector<1x1x32xf32>
    %296 = vector.shape_cast %295 : vector<1x1x32xf32> to vector<1x32xf32>
    %297 = vector.broadcast %296 : vector<1x32xf32> to vector<16x32xf32>
    %298 = arith.addf %294, %297 : vector<16x32xf32>
    %c1_124 = arith.constant 1 : index
    %c3_125 = arith.constant 3 : index
    %c0_126 = arith.constant 0 : index
    %299 = vector.load %arg3[%c1_124, %c3_125, %c0_126] : memref<2x8x192xf32, #tpu.memory_space<vmem>>, vector<1x1x32xf32>
    %300 = vector.shape_cast %299 : vector<1x1x32xf32> to vector<1x32xf32>
    %c1_127 = arith.constant 1 : index
    %c4_128 = arith.constant 4 : index
    %c0_129 = arith.constant 0 : index
    %301 = vector.load %arg3[%c1_127, %c4_128, %c0_129] : memref<2x8x192xf32, #tpu.memory_space<vmem>>, vector<1x1x32xf32>
    %302 = vector.shape_cast %301 : vector<1x1x32xf32> to vector<1x32xf32>
    %303 = arith.addf %298, %282 : vector<16x32xf32>
    %cst_130 = arith.constant dense<0.000000e+00> : vector<16xf32>
    %304 = vector.multi_reduction <add>, %303, %cst_130 [1] : vector<16x32xf32> to vector<16xf32>
    %305 = vector.shape_cast %304 : vector<16xf32> to vector<16x1xf32>
    %cst_131 = arith.constant 3.200000e+01 : f32
    %306 = vector.broadcast %cst_131 : f32 to vector<16x1xf32>
    %307 = arith.divf %305, %306 : vector<16x1xf32>
    %308 = vector.broadcast %307 : vector<16x1xf32> to vector<16x32xf32>
    %309 = arith.subf %303, %308 : vector<16x32xf32>
    %310 = arith.mulf %309, %309 : vector<16x32xf32>
    %cst_132 = arith.constant dense<0.000000e+00> : vector<16xf32>
    %311 = vector.multi_reduction <add>, %310, %cst_132 [1] : vector<16x32xf32> to vector<16xf32>
    %312 = vector.shape_cast %311 : vector<16xf32> to vector<16x1xf32>
    %cst_133 = arith.constant 3.200000e+01 : f32
    %313 = vector.broadcast %cst_133 : f32 to vector<16x1xf32>
    %314 = arith.divf %312, %313 : vector<16x1xf32>
    %315 = vector.broadcast %307 : vector<16x1xf32> to vector<16x32xf32>
    %316 = arith.subf %303, %315 : vector<16x32xf32>
    %cst_134 = arith.constant 9.99999974E-6 : f32
    %317 = vector.broadcast %cst_134 : f32 to vector<16x1xf32>
    %318 = arith.addf %314, %317 : vector<16x1xf32>
    %319 = math.rsqrt %318 : vector<16x1xf32>
    %320 = vector.broadcast %319 : vector<16x1xf32> to vector<16x32xf32>
    %321 = arith.mulf %316, %320 : vector<16x32xf32>
    %322 = vector.broadcast %300 : vector<1x32xf32> to vector<16x32xf32>
    %323 = arith.mulf %321, %322 : vector<16x32xf32>
    %324 = vector.broadcast %302 : vector<1x32xf32> to vector<16x32xf32>
    %325 = arith.addf %323, %324 : vector<16x32xf32>
    %326 = arith.mulf %325, %2 : vector<16x32xf32>
    %c0_135 = arith.constant 0 : index
    %c0_136 = arith.constant 0 : index
    %327 = vector.load %arg6[%c0_135, %c0_136] : memref<192x128xf32, #tpu.memory_space<vmem>>, vector<32x128xf32>
    %c32_137 = arith.constant 32 : index
    %c0_138 = arith.constant 0 : index
    %328 = vector.load %arg6[%c32_137, %c0_138] : memref<192x128xf32, #tpu.memory_space<vmem>>, vector<16x128xf32>
    %c48_139 = arith.constant 48 : index
    %c0_140 = arith.constant 0 : index
    %329 = vector.load %arg6[%c48_139, %c0_140] : memref<192x128xf32, #tpu.memory_space<vmem>>, vector<8x16xf32>
    %c56 = arith.constant 56 : index
    %c0_141 = arith.constant 0 : index
    %330 = vector.load %arg6[%c56, %c0_141] : memref<192x128xf32, #tpu.memory_space<vmem>>, vector<128x128xf32>
    %c184 = arith.constant 184 : index
    %c0_142 = arith.constant 0 : index
    %331 = vector.load %arg6[%c184, %c0_142] : memref<192x128xf32, #tpu.memory_space<vmem>>, vector<1x128xf32>
    %cst_143 = arith.constant dense<0.000000e+00> : vector<16x128xf32>
    %332 = tpu.matmul %326, %327, %cst_143 {dimension_numbers = #tpu.dot_dimension_numbers<[1], [0], [0], [1], [0, 0, 1, 1], [], []>} : vector<16x32xf32>, vector<32x128xf32>, vector<16x128xf32> -> vector<16x128xf32>
    %333 = arith.mulf %332, %328 : vector<16x128xf32>
    %cst_144 = arith.constant dense<0.000000e+00> : vector<8x128xf32>
    %334 = tpu.matmul %329, %333, %cst_144 {dimension_numbers = #tpu.dot_dimension_numbers<[1], [0], [0], [1], [0, 0, 1, 1], [], []>} : vector<8x16xf32>, vector<16x128xf32>, vector<8x128xf32> -> vector<8x128xf32>
    %cst_145 = arith.constant dense<0.000000e+00> : vector<8x128xf32>
    %335 = tpu.matmul %334, %330, %cst_145 {dimension_numbers = #tpu.dot_dimension_numbers<[1], [0], [0], [1], [0, 0, 1, 1], [], []>} : vector<8x128xf32>, vector<128x128xf32>, vector<8x128xf32> -> vector<8x128xf32>
    %336 = vector.broadcast %331 : vector<1x128xf32> to vector<8x128xf32>
    %337 = arith.addf %335, %336 : vector<8x128xf32>
    %c0_146 = arith.constant 0 : index
    %c0_147 = arith.constant 0 : index
    %338 = vector.load %arg7[%c0_146, %c0_147] : memref<8x128xf32, #tpu.memory_space<vmem>>, vector<8x128xf32>
    tpu.vector_store %arg7[%c0_146, %c0_147], %337 {strides = array<i32>} : memref<8x128xf32, #tpu.memory_space<vmem>>, vector<8x128xf32>,
    return
  }
}

</mosaic_0001>

<llo_original>
// kernel: transformer_forward.1
$region0: #{transformer_forward.1}
  #allocation0 [shape = 'u32[]', space=smem, size = 0x4, offset = 0x4, fixed_abs, tag = 'smem constant byte address 0x4 - core index']
  #allocation1 [shape = 'u32[144,128]{1,0:T(1,128)}', space=vmem, size = 0x12000, scoped, tag = 'internal scratch']
  %s0 = inlined_call_operand.vmem [shape: f32[64,32], index: 0, kind: input, shape index: {}]
  %s1 = inlined_call_operand.vmem [shape: f32[8,32], index: 1, kind: input, shape index: {}]
  %s2 = inlined_call_operand.vmem [shape: f32[2,32,192], index: 2, kind: input, shape index: {}]
  %s3 = inlined_call_operand.vmem [shape: f32[2,8,192], index: 3, kind: input, shape index: {}]
  %s4 = inlined_call_operand.vmem [shape: f32[2,32,64], index: 4, kind: input, shape index: {}]
  %s5 = inlined_call_operand.vmem [shape: f32[2,64,32], index: 5, kind: input, shape index: {}]
  %s6 = inlined_call_operand.vmem [shape: f32[192,128], index: 6, kind: input, shape index: {}]
  %s7 = inlined_call_operand.vmem [shape: f32[8,128], index: 7, kind: output, shape index: {}]
  %s8 = sld [smem:[#allocation0]]
  $region38: #{transformer_forward.1} parent=0
    _
  %s10 = ssub.s32 1, %s8
  %s11 = scalar_select 0, %s10, %s8
  // Predicated region
  $region2: #{transformer_forward.1} parent=0 // pred_check
    _
  $region3: #{transformer_forward.1} parent=0 // pred_check_branch
    %13 = sbr.rel (0) target = $region5
  $region4: #{transformer_forward.1} parent=0 // pred_region
    _
  $region5: #{transformer_forward.1} parent=0 // pred_fallthru
    _
  // Predicated region
  $region6: #{transformer_forward.1} parent=0 // pred_check
    _
  $region7: #{transformer_forward.1} parent=0 // pred_check_branch
    %15 = sbr.rel (0) target = $region9
  $region8: #{transformer_forward.1} parent=0 // pred_region
    _
  $region9: #{transformer_forward.1} parent=0 // pred_fallthru
    _
  // Predicated region
  $region10: #{transformer_forward.1} parent=0 // pred_check
    _
  $region11: #{transformer_forward.1} parent=0 // pred_check_branch
    %17 = sbr.rel (0) target = $region13
  $region12: #{transformer_forward.1} parent=0 // pred_region
    _
  $region13: #{transformer_forward.1} parent=0 // pred_fallthru
    _
  // Predicated region
  $region14: #{transformer_forward.1} parent=0 // pred_check
    _
  $region15: #{transformer_forward.1} parent=0 // pred_check_branch
    %19 = sbr.rel (0) target = $region17
  $region16: #{transformer_forward.1} parent=0 // pred_region
    _
  $region17: #{transformer_forward.1} parent=0 // pred_fallthru
    _
  // Predicated region
  $region18: #{transformer_forward.1} parent=0 // pred_check
    _
  $region19: #{transformer_forward.1} parent=0 // pred_check_branch
    %21 = sbr.rel (0) target = $region21
  $region20: #{transformer_forward.1} parent=0 // pred_region
    _
  $region21: #{transformer_forward.1} parent=0 // pred_fallthru
    _
  // Predicated region
  $region22: #{transformer_forward.1} parent=0 // pred_check
    _
  $region23: #{transformer_forward.1} parent=0 // pred_check_branch
    %23 = sbr.rel (0) target = $region25
  $region24: #{transformer_forward.1} parent=0 // pred_region
    _
  $region25: #{transformer_forward.1} parent=0 // pred_fallthru
    _
  // Predicated region
  $region26: #{transformer_forward.1} parent=0 // pred_check
    _
  $region27: #{transformer_forward.1} parent=0 // pred_check_branch
    %25 = sbr.rel (0) target = $region29
  $region28: #{transformer_forward.1} parent=0 // pred_region
    _
  $region29: #{transformer_forward.1} parent=0 // pred_fallthru
    _
  %v26 = vld [vmem:[%s0] sm:$0xff]
  %v27 = vld [vmem:[%s0 + $0x8] sm:$0xff]
  %v28 = vld [vmem:[%s0 + $0x10] sm:$0xff]
  %v29 = vld [vmem:[%s0 + $0x18] sm:$0xff]
  %v30 = vld [vmem:[%s0 + $0x20] sm:$0xff]
  %v31 = vld [vmem:[%s0 + $0x28] sm:$0xff]
  %v32 = vld [vmem:[%s0 + $0x30] sm:$0xff]
  %v33 = vld [vmem:[%s0 + $0x38] sm:$0xff]
  %v34 = vld [vmem:[%s1] sm:$0xff]
  %vm35 = vcmask 64512
  %v37 = vsel %vm35, %v26, 0
  %v40 = vsel %vm35, %v27, 0
  %42 = vmatprep.subr.mxu0 0.0
  %43 = vmatpush1.msra.mxu0 0.0
  %44 = vmatprep.subr.mxu0 0.0
  %45 = vmatpush1.msra.mxu0 0.0
  %46 = vmatprep.subr.mxu0 0.0
  %47 = vmatpush1.msra.mxu0 0.0
  %48 = vmatprep.subr.mxu0 0.0
  %49 = vmatpush1.msra.mxu0 0.0
  %50 = vmatprep.subr.mxu0 0.0
  %51 = vmatpush1.msra.mxu0 0.0
  %52 = vmatprep.subr.mxu0 0.0
  %53 = vmatpush1.msra.mxu0 0.0
  %54 = vmatprep.subr.mxu0 0.0
  %55 = vmatpush1.msra.mxu0 0.0
  %56 = vmatprep.subr.mxu0 0.0
  %57 = vmatpush1.msra.mxu0 0.0
  %58 = vmatprep.subr.mxu0 0.0
  %59 = vmatpush1.msra.mxu0 0.0
  %60 = vmatprep.subr.mxu0 0.0
  %61 = vmatpush1.msra.mxu0 0.0
  %62 = vmatprep.subr.mxu0 0.0
  %63 = vmatpush1.msra.mxu0 0.0
  %64 = vmatprep.subr.mxu0 0.0
  %65 = vmatpush1.msra.mxu0 0.0
  %66 = vmatprep.subr.mxu0 0.0
  %67 = vmatpush1.msra.mxu0 0.0
  %68 = vmatprep.subr.mxu0 0.0
  %69 = vmatpush1.msra.mxu0 0.0
  %70 = vmatprep.subr.mxu0 0.0
  %71 = vmatpush1.msra.mxu0 0.0
  %72 = vmatprep.subr.mxu0 0.0
  %73 = vmatpush1.msra.mxu0 %v34
  %74 = vmatprep.subr.mxu0 0.0
  %75 = vmatpush2.msra.mxu0 0.0
  %76 = vmatprep.subr.mxu0 0.0
  %77 = vmatpush2.msra.mxu0 0.0
  %78 = vmatprep.subr.mxu0 0.0
  %79 = vmatpush2.msra.mxu0 0.0
  %80 = vmatprep.subr.mxu0 0.0
  %81 = vmatpush2.msra.mxu0 0.0
  %82 = vmatprep.subr.mxu0 0.0
  %83 = vmatpush2.msra.mxu0 0.0
  %84 = vmatprep.subr.mxu0 0.0
  %85 = vmatpush2.msra.mxu0 0.0
  %86 = vmatprep.subr.mxu0 0.0
  %87 = vmatpush2.msra.mxu0 0.0
  %88 = vmatprep.subr.mxu0 0.0
  %89 = vmatpush2.msra.mxu0 0.0
  %90 = vmatprep.subr.mxu0 0.0
  %91 = vmatpush2.msra.mxu0 0.0
  %92 = vmatprep.subr.mxu0 0.0
  %93 = vmatpush2.msra.mxu0 0.0
  %94 = vmatprep.subr.mxu0 0.0
  %95 = vmatpush2.msra.mxu0 0.0
  %96 = vmatprep.subr.mxu0 0.0
  %97 = vmatpush2.msra.mxu0 0.0
  %98 = vmatprep.subr.mxu0 0.0
  %99 = vmatpush2.msra.mxu0 0.0
  %100 = vmatprep.subr.mxu0 0.0
  %101 = vmatpush2.msra.mxu0 0.0
  %102 = vmatprep.subr.mxu0 0.0
  %103 = vmatpush2.msra.mxu0 0.0
  %104 = vmatprep.subr.mxu0 0.0
  %105 = vmatpush2.msra.mxu0 0.0
  %106 = vmatprep.mubr.f32.mxu0 0.0
  %107 = vmatmul.mubr.f32.gmra.mxu0 %v37
  %v108 = vpop.f32.mrf.mxu0
  %v109 = vadd.f32 %v28, %v108
  %v110 = vpop.f32.mrf.mxu0
  %111 = vmatprep.mubr.f32.mxu0 0.0
  %112 = vmatmul.mubr.f32.gmra.mxu0 %v40
  %v113 = vpop.f32.mrf.mxu0
  %v114 = vadd.f32 %v29, %v113
  %v115 = vpop.f32.mrf.mxu0
  %116 = vdwg.mxu0
  %v117 = vld [vmem:[%s2] sm:$0xff]
  %v118 = vld [vmem:[%s2 + $0x8] sm:$0xff]
  %v119 = vld [vmem:[%s2 + $0x10] sm:$0xff]
  %v120 = vld [vmem:[%s2 + $0x18] sm:$0xff]
  %v121 = vld [vmem:[%s2 + $0x20] sm:$0xff]
  %v122 = vld [vmem:[%s2 + $0x28] sm:$0xff]
  %v123 = vld [vmem:[%s2 + $0x30] sm:$0xff]
  %v124 = vld [vmem:[%s2 + $0x38] sm:$0xff]
  %s125 = scalar_lea.vmem %s3, 7
  %v126 = vld [vmem:[%s125] ss:$8 sm:$0x3]
  %v128 = vlaneseq
  %v129 = vshrl.u32 %v128, 7
  %v130 = vsub.s32 0, %v129
  %v131 = vrot.slane %v126, %v130
  %v132 = vlaneseq
  %v133 = vshrl.u32 %v132, 7
  %v134 = vsub.s32 1, %v133
  %v135 = vrot.slane %v126, %v134
  %vm138 = vcmask 261120
  %v140 = vsel %vm138, %v109, 0
  %v143 = vsel %vm138, %v114, 0
  %145 = vmatprep.subr.mxu0 0.0
  %146 = vmatpush1.msra.mxu0 0.0
  %147 = vmatprep.subr.mxu0 0.0
  %148 = vmatpush1.msra.mxu0 0.0
  %149 = vmatprep.subr.mxu0 0.0
  %150 = vmatpush1.msra.mxu0 0.0
  %151 = vmatprep.subr.mxu0 0.0
  %152 = vmatpush1.msra.mxu0 0.0
  %153 = vmatprep.subr.mxu0 0.0
  %154 = vmatpush1.msra.mxu0 0.0
  %155 = vmatprep.subr.mxu0 0.0
  %156 = vmatpush1.msra.mxu0 0.0
  %157 = vmatprep.subr.mxu0 0.0
  %158 = vmatpush1.msra.mxu0 0.0
  %159 = vmatprep.subr.mxu0 0.0
  %160 = vmatpush1.msra.mxu0 0.0
  %161 = vmatprep.subr.mxu0 0.0
  %162 = vmatpush1.msra.mxu0 0.0
  %163 = vmatprep.subr.mxu0 0.0
  %164 = vmatpush1.msra.mxu0 0.0
  %165 = vmatprep.subr.mxu0 0.0
  %166 = vmatpush1.msra.mxu0 0.0
  %167 = vmatprep.subr.mxu0 0.0
  %168 = vmatpush1.msra.mxu0 0.0
  %169 = vmatprep.subr.mxu0 %v124
  %170 = vmatpush1.msra.mxu0 %v123
  %171 = vmatprep.subr.mxu0 %v122
  %172 = vmatpush1.msra.mxu0 %v121
  %173 = vmatprep.subr.mxu0 %v120
  %174 = vmatpush1.msra.mxu0 %v119
  %175 = vmatprep.subr.mxu0 %v118
  %176 = vmatpush1.msra.mxu0 %v117
  %177 = vmatprep.subr.mxu0 0.0
  %178 = vmatpush2.msra.mxu0 0.0
  %179 = vmatprep.subr.mxu0 0.0
  %180 = vmatpush2.msra.mxu0 0.0
  %181 = vmatprep.subr.mxu0 0.0
  %182 = vmatpush2.msra.mxu0 0.0
  %183 = vmatprep.subr.mxu0 0.0
  %184 = vmatpush2.msra.mxu0 0.0
  %185 = vmatprep.subr.mxu0 0.0
  %186 = vmatpush2.msra.mxu0 0.0
  %187 = vmatprep.subr.mxu0 0.0
  %188 = vmatpush2.msra.mxu0 0.0
  %189 = vmatprep.subr.mxu0 0.0
  %190 = vmatpush2.msra.mxu0 0.0
  %191 = vmatprep.subr.mxu0 0.0
  %192 = vmatpush2.msra.mxu0 0.0
  %193 = vmatprep.subr.mxu0 0.0
  %194 = vmatpush2.msra.mxu0 0.0
  %195 = vmatprep.subr.mxu0 0.0
  %196 = vmatpush2.msra.mxu0 0.0
  %197 = vmatprep.subr.mxu0 0.0
  %198 = vmatpush2.msra.mxu0 0.0
  %199 = vmatprep.subr.mxu0 0.0
  %200 = vmatpush2.msra.mxu0 0.0
  %201 = vmatprep.subr.mxu0 0.0
  %202 = vmatpush2.msra.mxu0 0.0
  %203 = vmatprep.subr.mxu0 0.0
  %204 = vmatpush2.msra.mxu0 0.0
  %205 = vmatprep.subr.mxu0 0.0
  %206 = vmatpush2.msra.mxu0 0.0
  %207 = vmatprep.subr.mxu0 0.0
  %208 = vmatpush2.msra.mxu0 0.0
  %209 = vmatprep.mubr.f32.mxu0 0.0
  %210 = vmatmul.mubr.f32.gmra.mxu0 %v140
  %v211 = vpop.f32.mrf.mxu0
  %v212 = vadd.f32 %v131, %v211
  %v213 = vpop.f32.mrf.mxu0
  %v214 = vadd.f32 %v135, %v213
  %215 = vmatprep.mubr.f32.mxu0 0.0
  %216 = vmatmul.mubr.f32.gmra.mxu0 %v143
  %v217 = vpop.f32.mrf.mxu0
  %v218 = vadd.f32 %v131, %v217
  %v219 = vpop.f32.mrf.mxu0
  %v220 = vadd.f32 %v135, %v219
  %221 = vdwg.mxu0
  %224 = vrot.lane.b32.xlu0 %v212, 96
  %v225 = vpop.permute.xlu0 %224
  %226 = vrot.lane.b32.xlu0 %v218, 96
  %v227 = vpop.permute.xlu0 %226
  %v228 = vsel %vm35, %v212, 0
  %v230 = vsel %vm35, %v218, 0
  %v232 = vsel %vm35, %v225, 0
  %v234 = vsel %vm35, %v227, 0
  %236 = vmatprep.subr.mxu0 0.0
  %237 = vmatpush1.xpose.msra.mxu0 0.0
  %238 = vmatprep.subr.mxu0 0.0
  %239 = vmatpush1.xpose.msra.mxu0 0.0
  %240 = vmatprep.subr.mxu0 0.0
  %241 = vmatpush1.xpose.msra.mxu0 0.0
  %242 = vmatprep.subr.mxu0 0.0
  %243 = vmatpush1.xpose.msra.mxu0 0.0
  %244 = vmatprep.subr.mxu0 0.0
  %245 = vmatpush1.xpose.msra.mxu0 0.0
  %246 = vmatprep.subr.mxu0 0.0
  %247 = vmatpush1.xpose.msra.mxu0 0.0
  %248 = vmatprep.subr.mxu0 0.0
  %249 = vmatpush1.xpose.msra.mxu0 0.0
  %250 = vmatprep.subr.mxu0 0.0
  %251 = vmatpush1.xpose.msra.mxu0 0.0
  %252 = vmatprep.subr.mxu0 0.0
  %253 = vmatpush1.xpose.msra.mxu0 0.0
  %254 = vmatprep.subr.mxu0 0.0
  %255 = vmatpush1.xpose.msra.mxu0 0.0
  %256 = vmatprep.subr.mxu0 0.0
  %257 = vmatpush1.xpose.msra.mxu0 0.0
  %258 = vmatprep.subr.mxu0 0.0
  %259 = vmatpush1.xpose.msra.mxu0 0.0
  %260 = vmatprep.subr.mxu0 0.0
  %261 = vmatpush1.xpose.msra.mxu0 0.0
  %262 = vmatprep.subr.mxu0 0.0
  %263 = vmatpush1.xpose.msra.mxu0 0.0
  %264 = vmatprep.subr.mxu0 0.0
  %265 = vmatpush1.xpose.msra.mxu0 %v234
  %266 = vmatprep.subr.mxu0 0.0
  %267 = vmatpush1.xpose.msra.mxu0 %v232
  %268 = vmatprep.subr.mxu0 0.0
  %269 = vmatpush2.xpose.msra.mxu0 0.0
  %270 = vmatprep.subr.mxu0 0.0
  %271 = vmatpush2.xpose.msra.mxu0 0.0
  %272 = vmatprep.subr.mxu0 0.0
  %273 = vmatpush2.xpose.msra.mxu0 0.0
  %274 = vmatprep.subr.mxu0 0.0
  %275 = vmatpush2.xpose.msra.mxu0 0.0
  %276 = vmatprep.subr.mxu0 0.0
  %277 = vmatpush2.xpose.msra.mxu0 0.0
  %278 = vmatprep.subr.mxu0 0.0
  %279 = vmatpush2.xpose.msra.mxu0 0.0
  %280 = vmatprep.subr.mxu0 0.0
  %281 = vmatpush2.xpose.msra.mxu0 0.0
  %282 = vmatprep.subr.mxu0 0.0
  %283 = vmatpush2.xpose.msra.mxu0 0.0
  %284 = vmatprep.subr.mxu0 0.0
  %285 = vmatpush2.xpose.msra.mxu0 0.0
  %286 = vmatprep.subr.mxu0 0.0
  %287 = vmatpush2.xpose.msra.mxu0 0.0
  %288 = vmatprep.subr.mxu0 0.0
  %289 = vmatpush2.xpose.msra.mxu0 0.0
  %290 = vmatprep.subr.mxu0 0.0
  %291 = vmatpush2.xpose.msra.mxu0 0.0
  %292 = vmatprep.subr.mxu0 0.0
  %293 = vmatpush2.xpose.msra.mxu0 0.0
  %294 = vmatprep.subr.mxu0 0.0
  %295 = vmatpush2.xpose.msra.mxu0 0.0
  %296 = vmatprep.subr.mxu0 0.0
  %297 = vmatpush2.xpose.msra.mxu0 0.0
  %298 = vmatprep.subr.mxu0 0.0
  %299 = vmatpush2.xpose.msra.mxu0 0.0
  %300 = vmatprep.mubr.f32.mxu0 0.0
  %301 = vmatmul.mubr.f32.gmra.mxu0 %v228
  %v302 = vpop.f32.mrf.mxu0
  %v303 = vadd.f32 0.0, %v302
  %v304 = vpop.f32.mrf.mxu0
  %305 = vmatprep.mubr.f32.mxu0 0.0
  %306 = vmatmul.mubr.f32.gmra.mxu0 %v230
  %v307 = vpop.f32.mrf.mxu0
  %v308 = vadd.f32 0.0, %v307
  %v309 = vpop.f32.mrf.mxu0
  %310 = vdwg.mxu0
  %v311 = vmul.f32 %v303, 0.35355338
  %v312 = vmul.f32 %v308, 0.35355338
  %v313 = vadd.f32 %v311, %v32
  %v314 = vadd.f32 %v312, %v33
  %vm315 = vcmask 130048
  %v316 = vsel %vm315, %v313, -inf
  %317 = vmax.xlane.f32.xlu0 %v316
  %v318 = vpop.xlane.xlu0 %317
  %v319 = vsel %vm315, %v314, -inf
  %320 = vmax.xlane.f32.xlu0 %v319
  %v321 = vpop.xlane.xlu0 %320
  %v322 = vsub.f32 %v313, %v318
  %v323 = vsub.f32 %v314, %v321
  %v324 = vmul.f32 %v322, 1.442695
  %v325 = vpow.pop %v324
  %v326 = vmul.f32 %v323, 1.442695
  %v327 = vpow.pop %v326
  %v328 = vsel %vm315, %v325, 0.0
  %329 = vadd.xlane.f32.xlu0 %v328
  %v330 = vpop.xlane.xlu0 %329
  %v331 = vsel %vm315, %v327, 0.0
  %332 = vadd.xlane.f32.xlu0 %v331
  %v333 = vpop.xlane.xlu0 %332
  %v334 = vrcp.pop %v330
  %v335 = vrcp.pop %v333
  %v336 = vmul.f32 %v325, %v334
  %v337 = vmul.f32 %v327, %v335
  %338 = vrot.lane.b32.xlu0 %v212, 120
  %v339 = vpop.permute.xlu0 %338
  %340 = vrot.lane.b32.xlu0 %v218, 120
  %v341 = vpop.permute.xlu0 %340
  %342 = vrot.lane.b32.xlu0 %v212, 88
  %v343 = vpop.permute.xlu0 %342
  %344 = vrot.lane.b32.xlu0 %v218, 88
  %v345 = vpop.permute.xlu0 %344
  %v346 = vsel %vm35, %v339, 0
  %v348 = vsel %vm35, %v341, 0
  %v350 = vsel %vm35, %v343, 0
  %v352 = vsel %vm35, %v345, 0
  %354 = vmatprep.subr.mxu0 0.0
  %355 = vmatpush1.xpose.msra.mxu0 0.0
  %356 = vmatprep.subr.mxu0 0.0
  %357 = vmatpush1.xpose.msra.mxu0 0.0
  %358 = vmatprep.subr.mxu0 0.0
  %359 = vmatpush1.xpose.msra.mxu0 0.0
  %360 = vmatprep.subr.mxu0 0.0
  %361 = vmatpush1.xpose.msra.mxu0 0.0
  %362 = vmatprep.subr.mxu0 0.0
  %363 = vmatpush1.xpose.msra.mxu0 0.0
  %364 = vmatprep.subr.mxu0 0.0
  %365 = vmatpush1.xpose.msra.mxu0 0.0
  %366 = vmatprep.subr.mxu0 0.0
  %367 = vmatpush1.xpose.msra.mxu0 0.0
  %368 = vmatprep.subr.mxu0 0.0
  %369 = vmatpush1.xpose.msra.mxu0 0.0
  %370 = vmatprep.subr.mxu0 0.0
  %371 = vmatpush1.xpose.msra.mxu0 0.0
  %372 = vmatprep.subr.mxu0 0.0
  %373 = vmatpush1.xpose.msra.mxu0 0.0
  %374 = vmatprep.subr.mxu0 0.0
  %375 = vmatpush1.xpose.msra.mxu0 0.0
  %376 = vmatprep.subr.mxu0 0.0
  %377 = vmatpush1.xpose.msra.mxu0 0.0
  %378 = vmatprep.subr.mxu0 0.0
  %379 = vmatpush1.xpose.msra.mxu0 0.0
  %380 = vmatprep.subr.mxu0 0.0
  %381 = vmatpush1.xpose.msra.mxu0 0.0
  %382 = vmatprep.subr.mxu0 0.0
  %383 = vmatpush1.xpose.msra.mxu0 %v352
  %384 = vmatprep.subr.mxu0 0.0
  %385 = vmatpush1.xpose.msra.mxu0 %v350
  %386 = vmatprep.subr.mxu0 0.0
  %387 = vmatpush2.xpose.msra.mxu0 0.0
  %388 = vmatprep.subr.mxu0 0.0
  %389 = vmatpush2.xpose.msra.mxu0 0.0
  %390 = vmatprep.subr.mxu0 0.0
  %391 = vmatpush2.xpose.msra.mxu0 0.0
  %392 = vmatprep.subr.mxu0 0.0
  %393 = vmatpush2.xpose.msra.mxu0 0.0
  %394 = vmatprep.subr.mxu0 0.0
  %395 = vmatpush2.xpose.msra.mxu0 0.0
  %396 = vmatprep.subr.mxu0 0.0
  %397 = vmatpush2.xpose.msra.mxu0 0.0
  %398 = vmatprep.subr.mxu0 0.0
  %399 = vmatpush2.xpose.msra.mxu0 0.0
  %400 = vmatprep.subr.mxu0 0.0
  %401 = vmatpush2.xpose.msra.mxu0 0.0
  %402 = vmatprep.subr.mxu0 0.0
  %403 = vmatpush2.xpose.msra.mxu0 0.0
  %404 = vmatprep.subr.mxu0 0.0
  %405 = vmatpush2.xpose.msra.mxu0 0.0
  %406 = vmatprep.subr.mxu0 0.0
  %407 = vmatpush2.xpose.msra.mxu0 0.0
  %408 = vmatprep.subr.mxu0 0.0
  %409 = vmatpush2.xpose.msra.mxu0 0.0
  %410 = vmatprep.subr.mxu0 0.0
  %411 = vmatpush2.xpose.msra.mxu0 0.0
  %412 = vmatprep.subr.mxu0 0.0
  %413 = vmatpush2.xpose.msra.mxu0 0.0
  %414 = vmatprep.subr.mxu0 0.0
  %415 = vmatpush2.xpose.msra.mxu0 0.0
  %416 = vmatprep.subr.mxu0 0.0
  %417 = vmatpush2.xpose.msra.mxu0 0.0
  %418 = vmatprep.mubr.f32.mxu0 0.0
  %419 = vmatmul.mubr.f32.gmra.mxu0 %v346
  %v420 = vpop.f32.mrf.mxu0
  %v421 = vadd.f32 0.0, %v420
  %v422 = vpop.f32.mrf.mxu0
  %423 = vmatprep.mubr.f32.mxu0 0.0
  %424 = vmatmul.mubr.f32.gmra.mxu0 %v348
  %v425 = vpop.f32.mrf.mxu0
  %v426 = vadd.f32 0.0, %v425
  %v427 = vpop.f32.mrf.mxu0
  %428 = vdwg.mxu0
  %v429 = vmul.f32 %v421, 0.35355338
  %v430 = vmul.f32 %v426, 0.35355338
  %v431 = vadd.f32 %v429, %v32
  %v432 = vadd.f32 %v430, %v33
  %v433 = vsel %vm315, %v431, -inf
  %434 = vmax.xlane.f32.xlu0 %v433
  %v435 = vpop.xlane.xlu0 %434
  %v436 = vsel %vm315, %v432, -inf
  %437 = vmax.xlane.f32.xlu0 %v436
  %v438 = vpop.xlane.xlu0 %437
  %v439 = vsub.f32 %v431, %v435
  %v440 = vsub.f32 %v432, %v438
  %v441 = vmul.f32 %v439, 1.442695
  %v442 = vpow.pop %v441
  %v443 = vmul.f32 %v440, 1.442695
  %v444 = vpow.pop %v443
  %v445 = vsel %vm315, %v442, 0.0
  %446 = vadd.xlane.f32.xlu0 %v445
  %v447 = vpop.xlane.xlu0 %446
  %v448 = vsel %vm315, %v444, 0.0
  %449 = vadd.xlane.f32.xlu0 %v448
  %v450 = vpop.xlane.xlu0 %449
  %v451 = vrcp.pop %v447
  %v452 = vrcp.pop %v450
  %v453 = vmul.f32 %v442, %v451
  %v454 = vmul.f32 %v444, %v452
  %455 = vrot.lane.b32.xlu0 %v212, 32
  %v456 = vpop.permute.xlu0 %455
  %457 = vrot.lane.b32.xlu0 %v218, 32
  %v458 = vpop.permute.xlu0 %457
  %v462 = vsel %vm315, %v453, 0
  %v465 = vsel %vm315, %v454, 0
  %467 = vmatprep.subr.mxu0 0.0
  %468 = vmatpush1.msra.mxu0 0.0
  %469 = vmatprep.subr.mxu0 0.0
  %470 = vmatpush1.msra.mxu0 0.0
  %471 = vmatprep.subr.mxu0 0.0
  %472 = vmatpush1.msra.mxu0 0.0
  %473 = vmatprep.subr.mxu0 0.0
  %474 = vmatpush1.msra.mxu0 0.0
  %475 = vmatprep.subr.mxu0 0.0
  %476 = vmatpush1.msra.mxu0 0.0
  %477 = vmatprep.subr.mxu0 0.0
  %478 = vmatpush1.msra.mxu0 0.0
  %479 = vmatprep.subr.mxu0 0.0
  %480 = vmatpush1.msra.mxu0 0.0
  %481 = vmatprep.subr.mxu0 0.0
  %482 = vmatpush1.msra.mxu0 0.0
  %483 = vmatprep.subr.mxu0 0.0
  %484 = vmatpush1.msra.mxu0 0.0
  %485 = vmatprep.subr.mxu0 0.0
  %486 = vmatpush1.msra.mxu0 0.0
  %487 = vmatprep.subr.mxu0 0.0
  %488 = vmatpush1.msra.mxu0 0.0
  %489 = vmatprep.subr.mxu0 0.0
  %490 = vmatpush1.msra.mxu0 0.0
  %491 = vmatprep.subr.mxu0 0.0
  %492 = vmatpush1.msra.mxu0 0.0
  %493 = vmatprep.subr.mxu0 0.0
  %494 = vmatpush1.msra.mxu0 0.0
  %495 = vmatprep.subr.mxu0 0.0
  %496 = vmatpush1.msra.mxu0 %v458
  %497 = vmatprep.subr.mxu0 0.0
  %498 = vmatpush1.msra.mxu0 %v456
  %499 = vmatprep.subr.mxu0 0.0
  %500 = vmatpush2.msra.mxu0 0.0
  %501 = vmatprep.subr.mxu0 0.0
  %502 = vmatpush2.msra.mxu0 0.0
  %503 = vmatprep.subr.mxu0 0.0
  %504 = vmatpush2.msra.mxu0 0.0
  %505 = vmatprep.subr.mxu0 0.0
  %506 = vmatpush2.msra.mxu0 0.0
  %507 = vmatprep.subr.mxu0 0.0
  %508 = vmatpush2.msra.mxu0 0.0
  %509 = vmatprep.subr.mxu0 0.0
  %510 = vmatpush2.msra.mxu0 0.0
  %511 = vmatprep.subr.mxu0 0.0
  %512 = vmatpush2.msra.mxu0 0.0
  %513 = vmatprep.subr.mxu0 0.0
  %514 = vmatpush2.msra.mxu0 0.0
  %515 = vmatprep.subr.mxu0 0.0
  %516 = vmatpush2.msra.mxu0 0.0
  %517 = vmatprep.subr.mxu0 0.0
  %518 = vmatpush2.msra.mxu0 0.0
  %519 = vmatprep.subr.mxu0 0.0
  %520 = vmatpush2.msra.mxu0 0.0
  %521 = vmatprep.subr.mxu0 0.0
  %522 = vmatpush2.msra.mxu0 0.0
  %523 = vmatprep.subr.mxu0 0.0
  %524 = vmatpush2.msra.mxu0 0.0
  %525 = vmatprep.subr.mxu0 0.0
  %526 = vmatpush2.msra.mxu0 0.0
  %527 = vmatprep.subr.mxu0 0.0
  %528 = vmatpush2.msra.mxu0 0.0
  %529 = vmatprep.subr.mxu0 0.0
  %530 = vmatpush2.msra.mxu0 0.0
  %531 = vmatprep.mubr.f32.mxu0 0.0
  %532 = vmatmul.mubr.f32.gmra.mxu0 %v462
  %v533 = vpop.f32.mrf.mxu0
  %v534 = vadd.f32 0.0, %v533
  %v535 = vpop.f32.mrf.mxu0
  %536 = vmatprep.mubr.f32.mxu0 0.0
  %537 = vmatmul.mubr.f32.gmra.mxu0 %v465
  %v538 = vpop.f32.mrf.mxu0
  %v539 = vadd.f32 0.0, %v538
  %v540 = vpop.f32.mrf.mxu0
  %541 = vdwg.mxu0
  %542 = vrot.lane.b32.xlu0 %v212, 64
  %v543 = vpop.permute.xlu0 %542
  %544 = vrot.lane.b32.xlu0 %v218, 64
  %v545 = vpop.permute.xlu0 %544
  %v549 = vsel %vm315, %v336, 0
  %v552 = vsel %vm315, %v337, 0
  %554 = vmatprep.subr.mxu0 0.0
  %555 = vmatpush1.msra.mxu0 0.0
  %556 = vmatprep.subr.mxu0 0.0
  %557 = vmatpush1.msra.mxu0 0.0
  %558 = vmatprep.subr.mxu0 0.0
  %559 = vmatpush1.msra.mxu0 0.0
  %560 = vmatprep.subr.mxu0 0.0
  %561 = vmatpush1.msra.mxu0 0.0
  %562 = vmatprep.subr.mxu0 0.0
  %563 = vmatpush1.msra.mxu0 0.0
  %564 = vmatprep.subr.mxu0 0.0
  %565 = vmatpush1.msra.mxu0 0.0
  %566 = vmatprep.subr.mxu0 0.0
  %567 = vmatpush1.msra.mxu0 0.0
  %568 = vmatprep.subr.mxu0 0.0
  %569 = vmatpush1.msra.mxu0 0.0
  %570 = vmatprep.subr.mxu0 0.0
  %571 = vmatpush1.msra.mxu0 0.0
  %572 = vmatprep.subr.mxu0 0.0
  %573 = vmatpush1.msra.mxu0 0.0
  %574 = vmatprep.subr.mxu0 0.0
  %575 = vmatpush1.msra.mxu0 0.0
  %576 = vmatprep.subr.mxu0 0.0
  %577 = vmatpush1.msra.mxu0 0.0
  %578 = vmatprep.subr.mxu0 0.0
  %579 = vmatpush1.msra.mxu0 0.0
  %580 = vmatprep.subr.mxu0 0.0
  %581 = vmatpush1.msra.mxu0 0.0
  %582 = vmatprep.subr.mxu0 0.0
  %583 = vmatpush1.msra.mxu0 %v545
  %584 = vmatprep.subr.mxu0 0.0
  %585 = vmatpush1.msra.mxu0 %v543
  %586 = vmatprep.subr.mxu0 0.0
  %587 = vmatpush2.msra.mxu0 0.0
  %588 = vmatprep.subr.mxu0 0.0
  %589 = vmatpush2.msra.mxu0 0.0
  %590 = vmatprep.subr.mxu0 0.0
  %591 = vmatpush2.msra.mxu0 0.0
  %592 = vmatprep.subr.mxu0 0.0
  %593 = vmatpush2.msra.mxu0 0.0
  %594 = vmatprep.subr.mxu0 0.0
  %595 = vmatpush2.msra.mxu0 0.0
  %596 = vmatprep.subr.mxu0 0.0
  %597 = vmatpush2.msra.mxu0 0.0
  %598 = vmatprep.subr.mxu0 0.0
  %599 = vmatpush2.msra.mxu0 0.0
  %600 = vmatprep.subr.mxu0 0.0
  %601 = vmatpush2.msra.mxu0 0.0
  %602 = vmatprep.subr.mxu0 0.0
  %603 = vmatpush2.msra.mxu0 0.0
  %604 = vmatprep.subr.mxu0 0.0
  %605 = vmatpush2.msra.mxu0 0.0
  %606 = vmatprep.subr.mxu0 0.0
  %607 = vmatpush2.msra.mxu0 0.0
  %608 = vmatprep.subr.mxu0 0.0
  %609 = vmatpush2.msra.mxu0 0.0
  %610 = vmatprep.subr.mxu0 0.0
  %611 = vmatpush2.msra.mxu0 0.0
  %612 = vmatprep.subr.mxu0 0.0
  %613 = vmatpush2.msra.mxu0 0.0
  %614 = vmatprep.subr.mxu0 0.0
  %615 = vmatpush2.msra.mxu0 0.0
  %616 = vmatprep.subr.mxu0 0.0
  %617 = vmatpush2.msra.mxu0 0.0
  %618 = vmatprep.mubr.f32.mxu0 0.0
  %619 = vmatmul.mubr.f32.gmra.mxu0 %v549
  %v620 = vpop.f32.mrf.mxu0
  %v621 = vadd.f32 %v534, %v620
  %v622 = vpop.f32.mrf.mxu0
  %623 = vmatprep.mubr.f32.mxu0 0.0
  %624 = vmatmul.mubr.f32.gmra.mxu0 %v552
  %v625 = vpop.f32.mrf.mxu0
  %v626 = vadd.f32 %v539, %v625
  %v627 = vpop.f32.mrf.mxu0
  %628 = vdwg.mxu0
  %629 = vrot.lane.b32.xlu0 %v212, 112
  %v630 = vpop.permute.xlu0 %629
  %631 = vrot.lane.b32.xlu0 %v218, 112
  %v632 = vpop.permute.xlu0 %631
  %633 = vrot.lane.b32.xlu0 %v212, 80
  %v634 = vpop.permute.xlu0 %633
  %635 = vrot.lane.b32.xlu0 %v218, 80
  %v636 = vpop.permute.xlu0 %635
  %v637 = vsel %vm35, %v630, 0
  %v639 = vsel %vm35, %v632, 0
  %v641 = vsel %vm35, %v634, 0
  %v643 = vsel %vm35, %v636, 0
  %645 = vmatprep.subr.mxu0 0.0
  %646 = vmatpush1.xpose.msra.mxu0 0.0
  %647 = vmatprep.subr.mxu0 0.0
  %648 = vmatpush1.xpose.msra.mxu0 0.0
  %649 = vmatprep.subr.mxu0 0.0
  %650 = vmatpush1.xpose.msra.mxu0 0.0
  %651 = vmatprep.subr.mxu0 0.0
  %652 = vmatpush1.xpose.msra.mxu0 0.0
  %653 = vmatprep.subr.mxu0 0.0
  %654 = vmatpush1.xpose.msra.mxu0 0.0
  %655 = vmatprep.subr.mxu0 0.0
  %656 = vmatpush1.xpose.msra.mxu0 0.0
  %657 = vmatprep.subr.mxu0 0.0
  %658 = vmatpush1.xpose.msra.mxu0 0.0
  %659 = vmatprep.subr.mxu0 0.0
  %660 = vmatpush1.xpose.msra.mxu0 0.0
  %661 = vmatprep.subr.mxu0 0.0
  %662 = vmatpush1.xpose.msra.mxu0 0.0
  %663 = vmatprep.subr.mxu0 0.0
  %664 = vmatpush1.xpose.msra.mxu0 0.0
  %665 = vmatprep.subr.mxu0 0.0
  %666 = vmatpush1.xpose.msra.mxu0 0.0
  %667 = vmatprep.subr.mxu0 0.0
  %668 = vmatpush1.xpose.msra.mxu0 0.0
  %669 = vmatprep.subr.mxu0 0.0
  %670 = vmatpush1.xpose.msra.mxu0 0.0
  %671 = vmatprep.subr.mxu0 0.0
  %672 = vmatpush1.xpose.msra.mxu0 0.0
  %673 = vmatprep.subr.mxu0 0.0
  %674 = vmatpush1.xpose.msra.mxu0 %v643
  %675 = vmatprep.subr.mxu0 0.0
  %676 = vmatpush1.xpose.msra.mxu0 %v641
  %677 = vmatprep.subr.mxu0 0.0
  %678 = vmatpush2.xpose.msra.mxu0 0.0
  %679 = vmatprep.subr.mxu0 0.0
  %680 = vmatpush2.xpose.msra.mxu0 0.0
  %681 = vmatprep.subr.mxu0 0.0
  %682 = vmatpush2.xpose.msra.mxu0 0.0
  %683 = vmatprep.subr.mxu0 0.0
  %684 = vmatpush2.xpose.msra.mxu0 0.0
  %685 = vmatprep.subr.mxu0 0.0
  %686 = vmatpush2.xpose.msra.mxu0 0.0
  %687 = vmatprep.subr.mxu0 0.0
  %688 = vmatpush2.xpose.msra.mxu0 0.0
  %689 = vmatprep.subr.mxu0 0.0
  %690 = vmatpush2.xpose.msra.mxu0 0.0
  %691 = vmatprep.subr.mxu0 0.0
  %692 = vmatpush2.xpose.msra.mxu0 0.0
  %693 = vmatprep.subr.mxu0 0.0
  %694 = vmatpush2.xpose.msra.mxu0 0.0
  %695 = vmatprep.subr.mxu0 0.0
  %696 = vmatpush2.xpose.msra.mxu0 0.0
  %697 = vmatprep.subr.mxu0 0.0
  %698 = vmatpush2.xpose.msra.mxu0 0.0
  %699 = vmatprep.subr.mxu0 0.0
  %700 = vmatpush2.xpose.msra.mxu0 0.0
  %701 = vmatprep.subr.mxu0 0.0
  %702 = vmatpush2.xpose.msra.mxu0 0.0
  %703 = vmatprep.subr.mxu0 0.0
  %704 = vmatpush2.xpose.msra.mxu0 0.0
  %705 = vmatprep.subr.mxu0 0.0
  %706 = vmatpush2.xpose.msra.mxu0 0.0
  %707 = vmatprep.subr.mxu0 0.0
  %708 = vmatpush2.xpose.msra.mxu0 0.0
  %709 = vmatprep.mubr.f32.mxu0 0.0
  %710 = vmatmul.mubr.f32.gmra.mxu0 %v637
  %v711 = vpop.f32.mrf.mxu0
  %v712 = vadd.f32 0.0, %v711
  %v713 = vpop.f32.mrf.mxu0
  %714 = vmatprep.mubr.f32.mxu0 0.0
  %715 = vmatmul.mubr.f32.gmra.mxu0 %v639
  %v716 = vpop.f32.mrf.mxu0
  %v717 = vadd.f32 0.0, %v716
  %v718 = vpop.f32.mrf.mxu0
  %719 = vdwg.mxu0
  %v720 = vmul.f32 %v712, 0.35355338
  %v721 = vmul.f32 %v717, 0.35355338
  %v722 = vadd.f32 %v720, %v32
  %v723 = vadd.f32 %v721, %v33
  %v724 = vsel %vm315, %v722, -inf
  %725 = vmax.xlane.f32.xlu0 %v724
  %v726 = vpop.xlane.xlu0 %725
  %v727 = vsel %vm315, %v723, -inf
  %728 = vmax.xlane.f32.xlu0 %v727
  %v729 = vpop.xlane.xlu0 %728
  %v730 = vsub.f32 %v722, %v726
  %v731 = vsub.f32 %v723, %v729
  %v732 = vmul.f32 %v730, 1.442695
  %v733 = vpow.pop %v732
  %v734 = vmul.f32 %v731, 1.442695
  %v735 = vpow.pop %v734
  %v736 = vsel %vm315, %v733, 0.0
  %737 = vadd.xlane.f32.xlu0 %v736
  %v738 = vpop.xlane.xlu0 %737
  %v739 = vsel %vm315, %v735, 0.0
  %740 = vadd.xlane.f32.xlu0 %v739
  %v741 = vpop.xlane.xlu0 %740
  %v742 = vrcp.pop %v738
  %v743 = vrcp.pop %v741
  %v744 = vmul.f32 %v733, %v742
  %v745 = vmul.f32 %v735, %v743
  %v747 = vsel %vm315, %v744, 0
  %v750 = vsel %vm315, %v745, 0
  %752 = vmatprep.subr.mxu0 0.0
  %753 = vmatpush1.msra.mxu0 0.0
  %754 = vmatprep.subr.mxu0 0.0
  %755 = vmatpush1.msra.mxu0 0.0
  %756 = vmatprep.subr.mxu0 0.0
  %757 = vmatpush1.msra.mxu0 0.0
  %758 = vmatprep.subr.mxu0 0.0
  %759 = vmatpush1.msra.mxu0 0.0
  %760 = vmatprep.subr.mxu0 0.0
  %761 = vmatpush1.msra.mxu0 0.0
  %762 = vmatprep.subr.mxu0 0.0
  %763 = vmatpush1.msra.mxu0 0.0
  %764 = vmatprep.subr.mxu0 0.0
  %765 = vmatpush1.msra.mxu0 0.0
  %766 = vmatprep.subr.mxu0 0.0
  %767 = vmatpush1.msra.mxu0 0.0
  %768 = vmatprep.subr.mxu0 0.0
  %769 = vmatpush1.msra.mxu0 0.0
  %770 = vmatprep.subr.mxu0 0.0
  %771 = vmatpush1.msra.mxu0 0.0
  %772 = vmatprep.subr.mxu0 0.0
  %773 = vmatpush1.msra.mxu0 0.0
  %774 = vmatprep.subr.mxu0 0.0
  %775 = vmatpush1.msra.mxu0 0.0
  %776 = vmatprep.subr.mxu0 0.0
  %777 = vmatpush1.msra.mxu0 0.0
  %778 = vmatprep.subr.mxu0 0.0
  %779 = vmatpush1.msra.mxu0 0.0
  %780 = vmatprep.subr.mxu0 0.0
  %781 = vmatpush1.msra.mxu0 %v220
  %782 = vmatprep.subr.mxu0 0.0
  %783 = vmatpush1.msra.mxu0 %v214
  %784 = vmatprep.subr.mxu0 0.0
  %785 = vmatpush2.msra.mxu0 0.0
  %786 = vmatprep.subr.mxu0 0.0
  %787 = vmatpush2.msra.mxu0 0.0
  %788 = vmatprep.subr.mxu0 0.0
  %789 = vmatpush2.msra.mxu0 0.0
  %790 = vmatprep.subr.mxu0 0.0
  %791 = vmatpush2.msra.mxu0 0.0
  %792 = vmatprep.subr.mxu0 0.0
  %793 = vmatpush2.msra.mxu0 0.0
  %794 = vmatprep.subr.mxu0 0.0
  %795 = vmatpush2.msra.mxu0 0.0
  %796 = vmatprep.subr.mxu0 0.0
  %797 = vmatpush2.msra.mxu0 0.0
  %798 = vmatprep.subr.mxu0 0.0
  %799 = vmatpush2.msra.mxu0 0.0
  %800 = vmatprep.subr.mxu0 0.0
  %801 = vmatpush2.msra.mxu0 0.0
  %802 = vmatprep.subr.mxu0 0.0
  %803 = vmatpush2.msra.mxu0 0.0
  %804 = vmatprep.subr.mxu0 0.0
  %805 = vmatpush2.msra.mxu0 0.0
  %806 = vmatprep.subr.mxu0 0.0
  %807 = vmatpush2.msra.mxu0 0.0
  %808 = vmatprep.subr.mxu0 0.0
  %809 = vmatpush2.msra.mxu0 0.0
  %810 = vmatprep.subr.mxu0 0.0
  %811 = vmatpush2.msra.mxu0 0.0
  %812 = vmatprep.subr.mxu0 0.0
  %813 = vmatpush2.msra.mxu0 0.0
  %814 = vmatprep.subr.mxu0 0.0
  %815 = vmatpush2.msra.mxu0 0.0
  %816 = vmatprep.mubr.f32.mxu0 0.0
  %817 = vmatmul.mubr.f32.gmra.mxu0 %v747
  %v818 = vpop.f32.mrf.mxu0
  %v819 = vadd.f32 0.0, %v818
  %v820 = vpop.f32.mrf.mxu0
  %821 = vmatprep.mubr.f32.mxu0 0.0
  %822 = vmatmul.mubr.f32.gmra.mxu0 %v750
  %v823 = vpop.f32.mrf.mxu0
  %v824 = vadd.f32 0.0, %v823
  %v825 = vpop.f32.mrf.mxu0
  %826 = vdwg.mxu0
  %v827 = vadd.f32 %v621, %v819
  %v828 = vadd.f32 %v626, %v824
  %829 = vrot.lane.b32.xlu0 %v212, 104
  %v830 = vpop.permute.xlu0 %829
  %831 = vrot.lane.b32.xlu0 %v218, 104
  %v832 = vpop.permute.xlu0 %831
  %833 = vrot.lane.b32.xlu0 %v212, 72
  %v834 = vpop.permute.xlu0 %833
  %835 = vrot.lane.b32.xlu0 %v218, 72
  %v836 = vpop.permute.xlu0 %835
  %v837 = vsel %vm35, %v830, 0
  %v839 = vsel %vm35, %v832, 0
  %v841 = vsel %vm35, %v834, 0
  %v843 = vsel %vm35, %v836, 0
  %845 = vmatprep.subr.mxu0 0.0
  %846 = vmatpush1.xpose.msra.mxu0 0.0
  %847 = vmatprep.subr.mxu0 0.0
  %848 = vmatpush1.xpose.msra.mxu0 0.0
  %849 = vmatprep.subr.mxu0 0.0
  %850 = vmatpush1.xpose.msra.mxu0 0.0
  %851 = vmatprep.subr.mxu0 0.0
  %852 = vmatpush1.xpose.msra.mxu0 0.0
  %853 = vmatprep.subr.mxu0 0.0
  %854 = vmatpush1.xpose.msra.mxu0 0.0
  %855 = vmatprep.subr.mxu0 0.0
  %856 = vmatpush1.xpose.msra.mxu0 0.0
  %857 = vmatprep.subr.mxu0 0.0
  %858 = vmatpush1.xpose.msra.mxu0 0.0
  %859 = vmatprep.subr.mxu0 0.0
  %860 = vmatpush1.xpose.msra.mxu0 0.0
  %861 = vmatprep.subr.mxu0 0.0
  %862 = vmatpush1.xpose.msra.mxu0 0.0
  %863 = vmatprep.subr.mxu0 0.0
  %864 = vmatpush1.xpose.msra.mxu0 0.0
  %865 = vmatprep.subr.mxu0 0.0
  %866 = vmatpush1.xpose.msra.mxu0 0.0
  %867 = vmatprep.subr.mxu0 0.0
  %868 = vmatpush1.xpose.msra.mxu0 0.0
  %869 = vmatprep.subr.mxu0 0.0
  %870 = vmatpush1.xpose.msra.mxu0 0.0
  %871 = vmatprep.subr.mxu0 0.0
  %872 = vmatpush1.xpose.msra.mxu0 0.0
  %873 = vmatprep.subr.mxu0 0.0
  %874 = vmatpush1.xpose.msra.mxu0 %v843
  %875 = vmatprep.subr.mxu0 0.0
  %876 = vmatpush1.xpose.msra.mxu0 %v841
  %877 = vmatprep.subr.mxu0 0.0
  %878 = vmatpush2.xpose.msra.mxu0 0.0
  %879 = vmatprep.subr.mxu0 0.0
  %880 = vmatpush2.xpose.msra.mxu0 0.0
  %881 = vmatprep.subr.mxu0 0.0
  %882 = vmatpush2.xpose.msra.mxu0 0.0
  %883 = vmatprep.subr.mxu0 0.0
  %884 = vmatpush2.xpose.msra.mxu0 0.0
  %885 = vmatprep.subr.mxu0 0.0
  %886 = vmatpush2.xpose.msra.mxu0 0.0
  %887 = vmatprep.subr.mxu0 0.0
  %888 = vmatpush2.xpose.msra.mxu0 0.0
  %889 = vmatprep.subr.mxu0 0.0
  %890 = vmatpush2.xpose.msra.mxu0 0.0
  %891 = vmatprep.subr.mxu0 0.0
  %892 = vmatpush2.xpose.msra.mxu0 0.0
  %893 = vmatprep.subr.mxu0 0.0
  %894 = vmatpush2.xpose.msra.mxu0 0.0
  %895 = vmatprep.subr.mxu0 0.0
  %896 = vmatpush2.xpose.msra.mxu0 0.0
  %897 = vmatprep.subr.mxu0 0.0
  %898 = vmatpush2.xpose.msra.mxu0 0.0
  %899 = vmatprep.subr.mxu0 0.0
  %900 = vmatpush2.xpose.msra.mxu0 0.0
  %901 = vmatprep.subr.mxu0 0.0
  %902 = vmatpush2.xpose.msra.mxu0 0.0
  %903 = vmatprep.subr.mxu0 0.0
  %904 = vmatpush2.xpose.msra.mxu0 0.0
  %905 = vmatprep.subr.mxu0 0.0
  %906 = vmatpush2.xpose.msra.mxu0 0.0
  %907 = vmatprep.subr.mxu0 0.0
  %908 = vmatpush2.xpose.msra.mxu0 0.0
  %909 = vmatprep.mubr.f32.mxu0 0.0
  %910 = vmatmul.mubr.f32.gmra.mxu0 %v837
  %v911 = vpop.f32.mrf.mxu0
  %v912 = vadd.f32 0.0, %v911
  %v913 = vpop.f32.mrf.mxu0
  %914 = vmatprep.mubr.f32.mxu0 0.0
  %915 = vmatmul.mubr.f32.gmra.mxu0 %v839
  %v916 = vpop.f32.mrf.mxu0
  %v917 = vadd.f32 0.0, %v916
  %v918 = vpop.f32.mrf.mxu0
  %919 = vdwg.mxu0
  %v920 = vmul.f32 %v912, 0.35355338
  %v921 = vmul.f32 %v917, 0.35355338
  %v922 = vadd.f32 %v920, %v32
  %v923 = vadd.f32 %v921, %v33
  %v924 = vsel %vm315, %v922, -inf
  %925 = vmax.xlane.f32.xlu0 %v924
  %v926 = vpop.xlane.xlu0 %925
  %v927 = vsel %vm315, %v923, -inf
  %928 = vmax.xlane.f32.xlu0 %v927
  %v929 = vpop.xlane.xlu0 %928
  %v930 = vsub.f32 %v922, %v926
  %v931 = vsub.f32 %v923, %v929
  %v932 = vmul.f32 %v930, 1.442695
  %v933 = vpow.pop %v932
  %v934 = vmul.f32 %v931, 1.442695
  %v935 = vpow.pop %v934
  %v936 = vsel %vm315, %v933, 0.0
  %937 = vadd.xlane.f32.xlu0 %v936
  %v938 = vpop.xlane.xlu0 %937
  %v939 = vsel %vm315, %v935, 0.0
  %940 = vadd.xlane.f32.xlu0 %v939
  %v941 = vpop.xlane.xlu0 %940
  %v942 = vrcp.pop %v938
  %v943 = vrcp.pop %v941
  %v944 = vmul.f32 %v933, %v942
  %v945 = vmul.f32 %v935, %v943
  %948 = vrot.lane.b32.xlu0 %v214, 96
  %v949 = vpop.permute.xlu0 %948
  %950 = vrot.lane.b32.xlu0 %v220, 96
  %v951 = vpop.permute.xlu0 %950
  %v955 = vsel %vm315, %v944, 0
  %v958 = vsel %vm315, %v945, 0
  %960 = vmatprep.subr.mxu0 0.0
  %961 = vmatpush1.msra.mxu0 0.0
  %962 = vmatprep.subr.mxu0 0.0
  %963 = vmatpush1.msra.mxu0 0.0
  %964 = vmatprep.subr.mxu0 0.0
  %965 = vmatpush1.msra.mxu0 0.0
  %966 = vmatprep.subr.mxu0 0.0
  %967 = vmatpush1.msra.mxu0 0.0
  %968 = vmatprep.subr.mxu0 0.0
  %969 = vmatpush1.msra.mxu0 0.0
  %970 = vmatprep.subr.mxu0 0.0
  %971 = vmatpush1.msra.mxu0 0.0
  %972 = vmatprep.subr.mxu0 0.0
  %973 = vmatpush1.msra.mxu0 0.0
  %974 = vmatprep.subr.mxu0 0.0
  %975 = vmatpush1.msra.mxu0 0.0
  %976 = vmatprep.subr.mxu0 0.0
  %977 = vmatpush1.msra.mxu0 0.0
  %978 = vmatprep.subr.mxu0 0.0
  %979 = vmatpush1.msra.mxu0 0.0
  %980 = vmatprep.subr.mxu0 0.0
  %981 = vmatpush1.msra.mxu0 0.0
  %982 = vmatprep.subr.mxu0 0.0
  %983 = vmatpush1.msra.mxu0 0.0
  %984 = vmatprep.subr.mxu0 0.0
  %985 = vmatpush1.msra.mxu0 0.0
  %986 = vmatprep.subr.mxu0 0.0
  %987 = vmatpush1.msra.mxu0 0.0
  %988 = vmatprep.subr.mxu0 0.0
  %989 = vmatpush1.msra.mxu0 %v951
  %990 = vmatprep.subr.mxu0 0.0
  %991 = vmatpush1.msra.mxu0 %v949
  %992 = vmatprep.subr.mxu0 0.0
  %993 = vmatpush2.msra.mxu0 0.0
  %994 = vmatprep.subr.mxu0 0.0
  %995 = vmatpush2.msra.mxu0 0.0
  %996 = vmatprep.subr.mxu0 0.0
  %997 = vmatpush2.msra.mxu0 0.0
  %998 = vmatprep.subr.mxu0 0.0
  %999 = vmatpush2.msra.mxu0 0.0
  %1000 = vmatprep.subr.mxu0 0.0
  %1001 = vmatpush2.msra.mxu0 0.0
  %1002 = vmatprep.subr.mxu0 0.0
  %1003 = vmatpush2.msra.mxu0 0.0
  %1004 = vmatprep.subr.mxu0 0.0
  %1005 = vmatpush2.msra.mxu0 0.0
  %1006 = vmatprep.subr.mxu0 0.0
  %1007 = vmatpush2.msra.mxu0 0.0
  %1008 = vmatprep.subr.mxu0 0.0
  %1009 = vmatpush2.msra.mxu0 0.0
  %1010 = vmatprep.subr.mxu0 0.0
  %1011 = vmatpush2.msra.mxu0 0.0
  %1012 = vmatprep.subr.mxu0 0.0
  %1013 = vmatpush2.msra.mxu0 0.0
  %1014 = vmatprep.subr.mxu0 0.0
  %1015 = vmatpush2.msra.mxu0 0.0
  %1016 = vmatprep.subr.mxu0 0.0
  %1017 = vmatpush2.msra.mxu0 0.0
  %1018 = vmatprep.subr.mxu0 0.0
  %1019 = vmatpush2.msra.mxu0 0.0
  %1020 = vmatprep.subr.mxu0 0.0
  %1021 = vmatpush2.msra.mxu0 0.0
  %1022 = vmatprep.subr.mxu0 0.0
  %1023 = vmatpush2.msra.mxu0 0.0
  %1024 = vmatprep.mubr.f32.mxu0 0.0
  %1025 = vmatmul.mubr.f32.gmra.mxu0 %v955
  %v1026 = vpop.f32.mrf.mxu0
  %v1027 = vadd.f32 0.0, %v1026
  %v1028 = vpop.f32.mrf.mxu0
  %1029 = vmatprep.mubr.f32.mxu0 0.0
  %1030 = vmatmul.mubr.f32.gmra.mxu0 %v958
  %v1031 = vpop.f32.mrf.mxu0
  %v1032 = vadd.f32 0.0, %v1031
  %v1033 = vpop.f32.mrf.mxu0
  %1034 = vdwg.mxu0
  %v1035 = vadd.f32 %v827, %v1027
  %v1036 = vadd.f32 %v828, %v1032
  %v1037 = vld [vmem:[%s3] ss:$0 sm:$0xff]
  %v1038 = vadd.f32 %v1035, %v1037
  %v1039 = vadd.f32 %v1036, %v1037
  %v1040 = vld [vmem:[%s3 + $0x1] ss:$0 sm:$0xff]
  %v1041 = vld [vmem:[%s3 + $0x2] ss:$0 sm:$0xff]
  %v1042 = vadd.f32 %v1038, %v109
  %v1043 = vadd.f32 %v1039, %v114
  %v1044 = vsel %vm138, %v1042, 0.0
  %1045 = vadd.xlane.f32.xlu0 %v1044
  %v1046 = vpop.xlane.xlu0 %1045
  %v1047 = vsel %vm138, %v1043, 0.0
  %1048 = vadd.xlane.f32.xlu0 %v1047
  %v1049 = vpop.xlane.xlu0 %1048
  %v1050 = vrcp.pop 32.0
  %v1051 = vmul.f32 %v1046, %v1050
  %v1052 = vmul.f32 %v1049, %v1050
  %v1053 = vsub.f32 %v1042, %v1051
  %v1054 = vsub.f32 %v1043, %v1052
  %v1055 = vmul.f32 %v1053, %v1053
  %v1056 = vmul.f32 %v1054, %v1054
  %v1057 = vsel %vm138, %v1055, 0.0
  %1058 = vadd.xlane.f32.xlu0 %v1057
  %v1059 = vpop.xlane.xlu0 %1058
  %v1060 = vsel %vm138, %v1056, 0.0
  %1061 = vadd.xlane.f32.xlu0 %v1060
  %v1062 = vpop.xlane.xlu0 %1061
  %v1063 = vmul.f32 %v1059, %v1050
  %v1064 = vmul.f32 %v1062, %v1050
  %v1065 = vadd.f32 %v1063, 1e-05
  %v1066 = vadd.f32 %v1064, 1e-05
  %v1067 = vrsqrt.pop %v1065
  %v1068 = vrsqrt.pop %v1066
  %v1069 = vmul.f32 %v1053, %v1067
  %v1070 = vmul.f32 %v1054, %v1068
  %v1071 = vmul.f32 %v1069, %v1040
  %v1072 = vmul.f32 %v1070, %v1040
  %v1073 = vadd.f32 %v1071, %v1041
  %v1074 = vadd.f32 %v1072, %v1041
  %v1075 = vmul.f32 %v1073, %v30
  %v1076 = vmul.f32 %v1074, %v31
  %v1077 = vld [vmem:[%s4] sm:$0xff]
  %v1078 = vld [vmem:[%s4 + $0x8] sm:$0xff]
  %v1079 = vld [vmem:[%s4 + $0x10] sm:$0xff]
  %v1080 = vld [vmem:[%s4 + $0x18] sm:$0xff]
  %v1081 = vld [vmem:[%s3 + $0x6] ss:$0 sm:$0xff]
  %v1083 = vsel %vm138, %v1075, 0
  %v1086 = vsel %vm138, %v1076, 0
  %1088 = vmatprep.subr.mxu0 0.0
  %1089 = vmatpush1.msra.mxu0 0.0
  %1090 = vmatprep.subr.mxu0 0.0
  %1091 = vmatpush1.msra.mxu0 0.0
  %1092 = vmatprep.subr.mxu0 0.0
  %1093 = vmatpush1.msra.mxu0 0.0
  %1094 = vmatprep.subr.mxu0 0.0
  %1095 = vmatpush1.msra.mxu0 0.0
  %1096 = vmatprep.subr.mxu0 0.0
  %1097 = vmatpush1.msra.mxu0 0.0
  %1098 = vmatprep.subr.mxu0 0.0
  %1099 = vmatpush1.msra.mxu0 0.0
  %1100 = vmatprep.subr.mxu0 0.0
  %1101 = vmatpush1.msra.mxu0 0.0
  %1102 = vmatprep.subr.mxu0 0.0
  %1103 = vmatpush1.msra.mxu0 0.0
  %1104 = vmatprep.subr.mxu0 0.0
  %1105 = vmatpush1.msra.mxu0 0.0
  %1106 = vmatprep.subr.mxu0 0.0
  %1107 = vmatpush1.msra.mxu0 0.0
  %1108 = vmatprep.subr.mxu0 0.0
  %1109 = vmatpush1.msra.mxu0 0.0
  %1110 = vmatprep.subr.mxu0 0.0
  %1111 = vmatpush1.msra.mxu0 0.0
  %1112 = vmatprep.subr.mxu0 0.0
  %1113 = vmatpush1.msra.mxu0 %v1080
  %1114 = vmatprep.subr.mxu0 0.0
  %1115 = vmatpush1.msra.mxu0 %v1079
  %1116 = vmatprep.subr.mxu0 0.0
  %1117 = vmatpush1.msra.mxu0 %v1078
  %1118 = vmatprep.subr.mxu0 0.0
  %1119 = vmatpush1.msra.mxu0 %v1077
  %1120 = vmatprep.subr.mxu0 0.0
  %1121 = vmatpush2.msra.mxu0 0.0
  %1122 = vmatprep.subr.mxu0 0.0
  %1123 = vmatpush2.msra.mxu0 0.0
  %1124 = vmatprep.subr.mxu0 0.0
  %1125 = vmatpush2.msra.mxu0 0.0
  %1126 = vmatprep.subr.mxu0 0.0
  %1127 = vmatpush2.msra.mxu0 0.0
  %1128 = vmatprep.subr.mxu0 0.0
  %1129 = vmatpush2.msra.mxu0 0.0
  %1130 = vmatprep.subr.mxu0 0.0
  %1131 = vmatpush2.msra.mxu0 0.0
  %1132 = vmatprep.subr.mxu0 0.0
  %1133 = vmatpush2.msra.mxu0 0.0
  %1134 = vmatprep.subr.mxu0 0.0
  %1135 = vmatpush2.msra.mxu0 0.0
  %1136 = vmatprep.subr.mxu0 0.0
  %1137 = vmatpush2.msra.mxu0 0.0
  %1138 = vmatprep.subr.mxu0 0.0
  %1139 = vmatpush2.msra.mxu0 0.0
  %1140 = vmatprep.subr.mxu0 0.0
  %1141 = vmatpush2.msra.mxu0 0.0
  %1142 = vmatprep.subr.mxu0 0.0
  %1143 = vmatpush2.msra.mxu0 0.0
  %1144 = vmatprep.subr.mxu0 0.0
  %1145 = vmatpush2.msra.mxu0 0.0
  %1146 = vmatprep.subr.mxu0 0.0
  %1147 = vmatpush2.msra.mxu0 0.0
  %1148 = vmatprep.subr.mxu0 0.0
  %1149 = vmatpush2.msra.mxu0 0.0
  %1150 = vmatprep.subr.mxu0 0.0
  %1151 = vmatpush2.msra.mxu0 0.0
  %1152 = vmatprep.mubr.f32.mxu0 0.0
  %1153 = vmatmul.mubr.f32.gmra.mxu0 %v1083
  %v1154 = vpop.f32.mrf.mxu0
  %v1155 = vadd.f32 %v1081, %v1154
  %v1156 = vpop.f32.mrf.mxu0
  %1157 = vmatprep.mubr.f32.mxu0 0.0
  %1158 = vmatmul.mubr.f32.gmra.mxu0 %v1086
  %v1159 = vpop.f32.mrf.mxu0
  %v1160 = vadd.f32 %v1081, %v1159
  %v1161 = vpop.f32.mrf.mxu0
  %1162 = vdwg.mxu0
  %v1163 = vmax.f32 %v1155, 0.0
  %v1164 = vmax.f32 %v1160, 0.0
  %v1165 = vld [vmem:[%s5] sm:$0xff]
  %v1166 = vld [vmem:[%s5 + $0x8] sm:$0xff]
  %v1167 = vld [vmem:[%s5 + $0x10] sm:$0xff]
  %v1168 = vld [vmem:[%s5 + $0x18] sm:$0xff]
  %v1169 = vld [vmem:[%s5 + $0x20] sm:$0xff]
  %v1170 = vld [vmem:[%s5 + $0x28] sm:$0xff]
  %v1171 = vld [vmem:[%s5 + $0x30] sm:$0xff]
  %v1172 = vld [vmem:[%s5 + $0x38] sm:$0xff]
  %v1173 = vld [vmem:[%s3 + $0x5] ss:$0 sm:$0xff]
  %vm1174 = vcmask 523264
  %v1176 = vsel %vm1174, %v1163, 0
  %v1179 = vsel %vm1174, %v1164, 0
  %1181 = vmatprep.subr.mxu0 0.0
  %1182 = vmatpush1.msra.mxu0 0.0
  %1183 = vmatprep.subr.mxu0 0.0
  %1184 = vmatpush1.msra.mxu0 0.0
  %1185 = vmatprep.subr.mxu0 0.0
  %1186 = vmatpush1.msra.mxu0 0.0
  %1187 = vmatprep.subr.mxu0 0.0
  %1188 = vmatpush1.msra.mxu0 0.0
  %1189 = vmatprep.subr.mxu0 0.0
  %1190 = vmatpush1.msra.mxu0 0.0
  %1191 = vmatprep.subr.mxu0 0.0
  %1192 = vmatpush1.msra.mxu0 0.0
  %1193 = vmatprep.subr.mxu0 0.0
  %1194 = vmatpush1.msra.mxu0 0.0
  %1195 = vmatprep.subr.mxu0 0.0
  %1196 = vmatpush1.msra.mxu0 0.0
  %1197 = vmatprep.subr.mxu0 0.0
  %1198 = vmatpush1.msra.mxu0 %v1172
  %1199 = vmatprep.subr.mxu0 0.0
  %1200 = vmatpush1.msra.mxu0 %v1171
  %1201 = vmatprep.subr.mxu0 0.0
  %1202 = vmatpush1.msra.mxu0 %v1170
  %1203 = vmatprep.subr.mxu0 0.0
  %1204 = vmatpush1.msra.mxu0 %v1169
  %1205 = vmatprep.subr.mxu0 0.0
  %1206 = vmatpush1.msra.mxu0 %v1168
  %1207 = vmatprep.subr.mxu0 0.0
  %1208 = vmatpush1.msra.mxu0 %v1167
  %1209 = vmatprep.subr.mxu0 0.0
  %1210 = vmatpush1.msra.mxu0 %v1166
  %1211 = vmatprep.subr.mxu0 0.0
  %1212 = vmatpush1.msra.mxu0 %v1165
  %1213 = vmatprep.subr.mxu0 0.0
  %1214 = vmatpush2.msra.mxu0 0.0
  %1215 = vmatprep.subr.mxu0 0.0
  %1216 = vmatpush2.msra.mxu0 0.0
  %1217 = vmatprep.subr.mxu0 0.0
  %1218 = vmatpush2.msra.mxu0 0.0
  %1219 = vmatprep.subr.mxu0 0.0
  %1220 = vmatpush2.msra.mxu0 0.0
  %1221 = vmatprep.subr.mxu0 0.0
  %1222 = vmatpush2.msra.mxu0 0.0
  %1223 = vmatprep.subr.mxu0 0.0
  %1224 = vmatpush2.msra.mxu0 0.0
  %1225 = vmatprep.subr.mxu0 0.0
  %1226 = vmatpush2.msra.mxu0 0.0
  %1227 = vmatprep.subr.mxu0 0.0
  %1228 = vmatpush2.msra.mxu0 0.0
  %1229 = vmatprep.subr.mxu0 0.0
  %1230 = vmatpush2.msra.mxu0 0.0
  %1231 = vmatprep.subr.mxu0 0.0
  %1232 = vmatpush2.msra.mxu0 0.0
  %1233 = vmatprep.subr.mxu0 0.0
  %1234 = vmatpush2.msra.mxu0 0.0
  %1235 = vmatprep.subr.mxu0 0.0
  %1236 = vmatpush2.msra.mxu0 0.0
  %1237 = vmatprep.subr.mxu0 0.0
  %1238 = vmatpush2.msra.mxu0 0.0
  %1239 = vmatprep.subr.mxu0 0.0
  %1240 = vmatpush2.msra.mxu0 0.0
  %1241 = vmatprep.subr.mxu0 0.0
  %1242 = vmatpush2.msra.mxu0 0.0
  %1243 = vmatprep.subr.mxu0 0.0
  %1244 = vmatpush2.msra.mxu0 0.0
  %1245 = vmatprep.mubr.f32.mxu0 0.0
  %1246 = vmatmul.mubr.f32.gmra.mxu0 %v1176
  %v1247 = vpop.f32.mrf.mxu0
  %v1248 = vadd.f32 %v1173, %v1247
  %v1249 = vpop.f32.mrf.mxu0
  %1250 = vmatprep.mubr.f32.mxu0 0.0
  %1251 = vmatmul.mubr.f32.gmra.mxu0 %v1179
  %v1252 = vpop.f32.mrf.mxu0
  %v1253 = vadd.f32 %v1173, %v1252
  %v1254 = vpop.f32.mrf.mxu0
  %1255 = vdwg.mxu0
  %v1256 = vld [vmem:[%s3 + $0x3] ss:$0 sm:$0xff]
  %v1257 = vld [vmem:[%s3 + $0x4] ss:$0 sm:$0xff]
  %v1258 = vadd.f32 %v1248, %v1075
  %v1259 = vadd.f32 %v1253, %v1076
  %v1260 = vsel %vm138, %v1258, 0.0
  %1261 = vadd.xlane.f32.xlu0 %v1260
  %v1262 = vpop.xlane.xlu0 %1261
  %v1263 = vsel %vm138, %v1259, 0.0
  %1264 = vadd.xlane.f32.xlu0 %v1263
  %v1265 = vpop.xlane.xlu0 %1264
  %v1266 = vmul.f32 %v1262, %v1050
  %v1267 = vmul.f32 %v1265, %v1050
  %v1268 = vsub.f32 %v1258, %v1266
  %v1269 = vsub.f32 %v1259, %v1267
  %v1270 = vmul.f32 %v1268, %v1268
  %v1271 = vmul.f32 %v1269, %v1269
  %v1272 = vsel %vm138, %v1270, 0.0
  %1273 = vadd.xlane.f32.xlu0 %v1272
  %v1274 = vpop.xlane.xlu0 %1273
  %v1275 = vsel %vm138, %v1271, 0.0
  %1276 = vadd.xlane.f32.xlu0 %v1275
  %v1277 = vpop.xlane.xlu0 %1276
  %v1278 = vmul.f32 %v1274, %v1050
  %v1279 = vmul.f32 %v1277, %v1050
  %v1280 = vadd.f32 %v1278, 1e-05
  %v1281 = vadd.f32 %v1279, 1e-05
  %v1282 = vrsqrt.pop %v1280
  %v1283 = vrsqrt.pop %v1281
  %v1284 = vmul.f32 %v1268, %v1282
  %v1285 = vmul.f32 %v1269, %v1283
  %v1286 = vmul.f32 %v1284, %v1256
  %v1287 = vmul.f32 %v1285, %v1256
  %v1288 = vadd.f32 %v1286, %v1257
  %v1289 = vadd.f32 %v1287, %v1257
  %v1290 = vmul.f32 %v1288, %v30
  %v1291 = vmul.f32 %v1289, %v31
  %s1292 = scalar_lea.vmem %s2, 64
  %v1293 = vld [vmem:[%s1292] sm:$0xff]
  %v1294 = vld [vmem:[%s1292 + $0x8] sm:$0xff]
  %v1295 = vld [vmem:[%s1292 + $0x10] sm:$0xff]
  %v1296 = vld [vmem:[%s1292 + $0x18] sm:$0xff]
  %v1297 = vld [vmem:[%s1292 + $0x20] sm:$0xff]
  %v1298 = vld [vmem:[%s1292 + $0x28] sm:$0xff]
  %v1299 = vld [vmem:[%s1292 + $0x30] sm:$0xff]
  %v1300 = vld [vmem:[%s1292 + $0x38] sm:$0xff]
  %s1301 = scalar_lea.vmem %s3, 16
  %s1302 = scalar_lea.vmem %s1301, 7
  %v1303 = vld [vmem:[%s1302] ss:$8 sm:$0x3]
  %v1305 = vlaneseq
  %v1306 = vshrl.u32 %v1305, 7
  %v1307 = vsub.s32 0, %v1306
  %v1308 = vrot.slane %v1303, %v1307
  %v1309 = vlaneseq
  %v1310 = vshrl.u32 %v1309, 7
  %v1311 = vsub.s32 1, %v1310
  %v1312 = vrot.slane %v1303, %v1311
  %v1316 = vsel %vm138, %v1290, 0
  %v1319 = vsel %vm138, %v1291, 0
  %1321 = vmatprep.subr.mxu0 0.0
  %1322 = vmatpush1.msra.mxu0 0.0
  %1323 = vmatprep.subr.mxu0 0.0
  %1324 = vmatpush1.msra.mxu0 0.0
  %1325 = vmatprep.subr.mxu0 0.0
  %1326 = vmatpush1.msra.mxu0 0.0
  %1327 = vmatprep.subr.mxu0 0.0
  %1328 = vmatpush1.msra.mxu0 0.0
  %1329 = vmatprep.subr.mxu0 0.0
  %1330 = vmatpush1.msra.mxu0 0.0
  %1331 = vmatprep.subr.mxu0 0.0
  %1332 = vmatpush1.msra.mxu0 0.0
  %1333 = vmatprep.subr.mxu0 0.0
  %1334 = vmatpush1.msra.mxu0 0.0
  %1335 = vmatprep.subr.mxu0 0.0
  %1336 = vmatpush1.msra.mxu0 0.0
  %1337 = vmatprep.subr.mxu0 0.0
  %1338 = vmatpush1.msra.mxu0 0.0
  %1339 = vmatprep.subr.mxu0 0.0
  %1340 = vmatpush1.msra.mxu0 0.0
  %1341 = vmatprep.subr.mxu0 0.0
  %1342 = vmatpush1.msra.mxu0 0.0
  %1343 = vmatprep.subr.mxu0 0.0
  %1344 = vmatpush1.msra.mxu0 0.0
  %1345 = vmatprep.subr.mxu0 %v1300
  %1346 = vmatpush1.msra.mxu0 %v1299
  %1347 = vmatprep.subr.mxu0 %v1298
  %1348 = vmatpush1.msra.mxu0 %v1297
  %1349 = vmatprep.subr.mxu0 %v1296
  %1350 = vmatpush1.msra.mxu0 %v1295
  %1351 = vmatprep.subr.mxu0 %v1294
  %1352 = vmatpush1.msra.mxu0 %v1293
  %1353 = vmatprep.subr.mxu0 0.0
  %1354 = vmatpush2.msra.mxu0 0.0
  %1355 = vmatprep.subr.mxu0 0.0
  %1356 = vmatpush2.msra.mxu0 0.0
  %1357 = vmatprep.subr.mxu0 0.0
  %1358 = vmatpush2.msra.mxu0 0.0
  %1359 = vmatprep.subr.mxu0 0.0
  %1360 = vmatpush2.msra.mxu0 0.0
  %1361 = vmatprep.subr.mxu0 0.0
  %1362 = vmatpush2.msra.mxu0 0.0
  %1363 = vmatprep.subr.mxu0 0.0
  %1364 = vmatpush2.msra.mxu0 0.0
  %1365 = vmatprep.subr.mxu0 0.0
  %1366 = vmatpush2.msra.mxu0 0.0
  %1367 = vmatprep.subr.mxu0 0.0
  %1368 = vmatpush2.msra.mxu0 0.0
  %1369 = vmatprep.subr.mxu0 0.0
  %1370 = vmatpush2.msra.mxu0 0.0
  %1371 = vmatprep.subr.mxu0 0.0
  %1372 = vmatpush2.msra.mxu0 0.0
  %1373 = vmatprep.subr.mxu0 0.0
  %1374 = vmatpush2.msra.mxu0 0.0
  %1375 = vmatprep.subr.mxu0 0.0
  %1376 = vmatpush2.msra.mxu0 0.0
  %1377 = vmatprep.subr.mxu0 0.0
  %1378 = vmatpush2.msra.mxu0 0.0
  %1379 = vmatprep.subr.mxu0 0.0
  %1380 = vmatpush2.msra.mxu0 0.0
  %1381 = vmatprep.subr.mxu0 0.0
  %1382 = vmatpush2.msra.mxu0 0.0
  %1383 = vmatprep.subr.mxu0 0.0
  %1384 = vmatpush2.msra.mxu0 0.0
  %1385 = vmatprep.mubr.f32.mxu0 0.0
  %1386 = vmatmul.mubr.f32.gmra.mxu0 %v1316
  %v1387 = vpop.f32.mrf.mxu0
  %v1388 = vadd.f32 %v1308, %v1387
  %v1389 = vpop.f32.mrf.mxu0
  %v1390 = vadd.f32 %v1312, %v1389
  %1391 = vmatprep.mubr.f32.mxu0 0.0
  %1392 = vmatmul.mubr.f32.gmra.mxu0 %v1319
  %v1393 = vpop.f32.mrf.mxu0
  %v1394 = vadd.f32 %v1308, %v1393
  %v1395 = vpop.f32.mrf.mxu0
  %v1396 = vadd.f32 %v1312, %v1395
  %1397 = vdwg.mxu0
  %1400 = vrot.lane.b32.xlu0 %v1388, 96
  %v1401 = vpop.permute.xlu0 %1400
  %1402 = vrot.lane.b32.xlu0 %v1394, 96
  %v1403 = vpop.permute.xlu0 %1402
  %v1404 = vsel %vm35, %v1388, 0
  %v1406 = vsel %vm35, %v1394, 0
  %v1408 = vsel %vm35, %v1401, 0
  %v1410 = vsel %vm35, %v1403, 0
  %1412 = vmatprep.subr.mxu0 0.0
  %1413 = vmatpush1.xpose.msra.mxu0 0.0
  %1414 = vmatprep.subr.mxu0 0.0
  %1415 = vmatpush1.xpose.msra.mxu0 0.0
  %1416 = vmatprep.subr.mxu0 0.0
  %1417 = vmatpush1.xpose.msra.mxu0 0.0
  %1418 = vmatprep.subr.mxu0 0.0
  %1419 = vmatpush1.xpose.msra.mxu0 0.0
  %1420 = vmatprep.subr.mxu0 0.0
  %1421 = vmatpush1.xpose.msra.mxu0 0.0
  %1422 = vmatprep.subr.mxu0 0.0
  %1423 = vmatpush1.xpose.msra.mxu0 0.0
  %1424 = vmatprep.subr.mxu0 0.0
  %1425 = vmatpush1.xpose.msra.mxu0 0.0
  %1426 = vmatprep.subr.mxu0 0.0
  %1427 = vmatpush1.xpose.msra.mxu0 0.0
  %1428 = vmatprep.subr.mxu0 0.0
  %1429 = vmatpush1.xpose.msra.mxu0 0.0
  %1430 = vmatprep.subr.mxu0 0.0
  %1431 = vmatpush1.xpose.msra.mxu0 0.0
  %1432 = vmatprep.subr.mxu0 0.0
  %1433 = vmatpush1.xpose.msra.mxu0 0.0
  %1434 = vmatprep.subr.mxu0 0.0
  %1435 = vmatpush1.xpose.msra.mxu0 0.0
  %1436 = vmatprep.subr.mxu0 0.0
  %1437 = vmatpush1.xpose.msra.mxu0 0.0
  %1438 = vmatprep.subr.mxu0 0.0
  %1439 = vmatpush1.xpose.msra.mxu0 0.0
  %1440 = vmatprep.subr.mxu0 0.0
  %1441 = vmatpush1.xpose.msra.mxu0 %v1410
  %1442 = vmatprep.subr.mxu0 0.0
  %1443 = vmatpush1.xpose.msra.mxu0 %v1408
  %1444 = vmatprep.subr.mxu0 0.0
  %1445 = vmatpush2.xpose.msra.mxu0 0.0
  %1446 = vmatprep.subr.mxu0 0.0
  %1447 = vmatpush2.xpose.msra.mxu0 0.0
  %1448 = vmatprep.subr.mxu0 0.0
  %1449 = vmatpush2.xpose.msra.mxu0 0.0
  %1450 = vmatprep.subr.mxu0 0.0
  %1451 = vmatpush2.xpose.msra.mxu0 0.0
  %1452 = vmatprep.subr.mxu0 0.0
  %1453 = vmatpush2.xpose.msra.mxu0 0.0
  %1454 = vmatprep.subr.mxu0 0.0
  %1455 = vmatpush2.xpose.msra.mxu0 0.0
  %1456 = vmatprep.subr.mxu0 0.0
  %1457 = vmatpush2.xpose.msra.mxu0 0.0
  %1458 = vmatprep.subr.mxu0 0.0
  %1459 = vmatpush2.xpose.msra.mxu0 0.0
  %1460 = vmatprep.subr.mxu0 0.0
  %1461 = vmatpush2.xpose.msra.mxu0 0.0
  %1462 = vmatprep.subr.mxu0 0.0
  %1463 = vmatpush2.xpose.msra.mxu0 0.0
  %1464 = vmatprep.subr.mxu0 0.0
  %1465 = vmatpush2.xpose.msra.mxu0 0.0
  %1466 = vmatprep.subr.mxu0 0.0
  %1467 = vmatpush2.xpose.msra.mxu0 0.0
  %1468 = vmatprep.subr.mxu0 0.0
  %1469 = vmatpush2.xpose.msra.mxu0 0.0
  %1470 = vmatprep.subr.mxu0 0.0
  %1471 = vmatpush2.xpose.msra.mxu0 0.0
  %1472 = vmatprep.subr.mxu0 0.0
  %1473 = vmatpush2.xpose.msra.mxu0 0.0
  %1474 = vmatprep.subr.mxu0 0.0
  %1475 = vmatpush2.xpose.msra.mxu0 0.0
  %1476 = vmatprep.mubr.f32.mxu0 0.0
  %1477 = vmatmul.mubr.f32.gmra.mxu0 %v1404
  %v1478 = vpop.f32.mrf.mxu0
  %v1479 = vadd.f32 0.0, %v1478
  %v1480 = vpop.f32.mrf.mxu0
  %1481 = vmatprep.mubr.f32.mxu0 0.0
  %1482 = vmatmul.mubr.f32.gmra.mxu0 %v1406
  %v1483 = vpop.f32.mrf.mxu0
  %v1484 = vadd.f32 0.0, %v1483
  %v1485 = vpop.f32.mrf.mxu0
  %1486 = vdwg.mxu0
  %v1487 = vmul.f32 %v1479, 0.35355338
  %v1488 = vmul.f32 %v1484, 0.35355338
  %v1489 = vadd.f32 %v1487, %v32
  %v1490 = vadd.f32 %v1488, %v33
  %v1491 = vsel %vm315, %v1489, -inf
  %1492 = vmax.xlane.f32.xlu0 %v1491
  %v1493 = vpop.xlane.xlu0 %1492
  %v1494 = vsel %vm315, %v1490, -inf
  %1495 = vmax.xlane.f32.xlu0 %v1494
  %v1496 = vpop.xlane.xlu0 %1495
  %v1497 = vsub.f32 %v1489, %v1493
  %v1498 = vsub.f32 %v1490, %v1496
  %v1499 = vmul.f32 %v1497, 1.442695
  %v1500 = vpow.pop %v1499
  %v1501 = vmul.f32 %v1498, 1.442695
  %v1502 = vpow.pop %v1501
  %v1503 = vsel %vm315, %v1500, 0.0
  %1504 = vadd.xlane.f32.xlu0 %v1503
  %v1505 = vpop.xlane.xlu0 %1504
  %v1506 = vsel %vm315, %v1502, 0.0
  %1507 = vadd.xlane.f32.xlu0 %v1506
  %v1508 = vpop.xlane.xlu0 %1507
  %v1509 = vrcp.pop %v1505
  %v1510 = vrcp.pop %v1508
  %v1511 = vmul.f32 %v1500, %v1509
  %v1512 = vmul.f32 %v1502, %v1510
  %1513 = vrot.lane.b32.xlu0 %v1388, 120
  %v1514 = vpop.permute.xlu0 %1513
  %1515 = vrot.lane.b32.xlu0 %v1394, 120
  %v1516 = vpop.permute.xlu0 %1515
  %1517 = vrot.lane.b32.xlu0 %v1388, 88
  %v1518 = vpop.permute.xlu0 %1517
  %1519 = vrot.lane.b32.xlu0 %v1394, 88
  %v1520 = vpop.permute.xlu0 %1519
  %v1521 = vsel %vm35, %v1514, 0
  %v1523 = vsel %vm35, %v1516, 0
  %v1525 = vsel %vm35, %v1518, 0
  %v1527 = vsel %vm35, %v1520, 0
  %1529 = vmatprep.subr.mxu0 0.0
  %1530 = vmatpush1.xpose.msra.mxu0 0.0
  %1531 = vmatprep.subr.mxu0 0.0
  %1532 = vmatpush1.xpose.msra.mxu0 0.0
  %1533 = vmatprep.subr.mxu0 0.0
  %1534 = vmatpush1.xpose.msra.mxu0 0.0
  %1535 = vmatprep.subr.mxu0 0.0
  %1536 = vmatpush1.xpose.msra.mxu0 0.0
  %1537 = vmatprep.subr.mxu0 0.0
  %1538 = vmatpush1.xpose.msra.mxu0 0.0
  %1539 = vmatprep.subr.mxu0 0.0
  %1540 = vmatpush1.xpose.msra.mxu0 0.0
  %1541 = vmatprep.subr.mxu0 0.0
  %1542 = vmatpush1.xpose.msra.mxu0 0.0
  %1543 = vmatprep.subr.mxu0 0.0
  %1544 = vmatpush1.xpose.msra.mxu0 0.0
  %1545 = vmatprep.subr.mxu0 0.0
  %1546 = vmatpush1.xpose.msra.mxu0 0.0
  %1547 = vmatprep.subr.mxu0 0.0
  %1548 = vmatpush1.xpose.msra.mxu0 0.0
  %1549 = vmatprep.subr.mxu0 0.0
  %1550 = vmatpush1.xpose.msra.mxu0 0.0
  %1551 = vmatprep.subr.mxu0 0.0
  %1552 = vmatpush1.xpose.msra.mxu0 0.0
  %1553 = vmatprep.subr.mxu0 0.0
  %1554 = vmatpush1.xpose.msra.mxu0 0.0
  %1555 = vmatprep.subr.mxu0 0.0
  %1556 = vmatpush1.xpose.msra.mxu0 0.0
  %1557 = vmatprep.subr.mxu0 0.0
  %1558 = vmatpush1.xpose.msra.mxu0 %v1527
  %1559 = vmatprep.subr.mxu0 0.0
  %1560 = vmatpush1.xpose.msra.mxu0 %v1525
  %1561 = vmatprep.subr.mxu0 0.0
  %1562 = vmatpush2.xpose.msra.mxu0 0.0
  %1563 = vmatprep.subr.mxu0 0.0
  %1564 = vmatpush2.xpose.msra.mxu0 0.0
  %1565 = vmatprep.subr.mxu0 0.0
  %1566 = vmatpush2.xpose.msra.mxu0 0.0
  %1567 = vmatprep.subr.mxu0 0.0
  %1568 = vmatpush2.xpose.msra.mxu0 0.0
  %1569 = vmatprep.subr.mxu0 0.0
  %1570 = vmatpush2.xpose.msra.mxu0 0.0
  %1571 = vmatprep.subr.mxu0 0.0
  %1572 = vmatpush2.xpose.msra.mxu0 0.0
  %1573 = vmatprep.subr.mxu0 0.0
  %1574 = vmatpush2.xpose.msra.mxu0 0.0
  %1575 = vmatprep.subr.mxu0 0.0
  %1576 = vmatpush2.xpose.msra.mxu0 0.0
  %1577 = vmatprep.subr.mxu0 0.0
  %1578 = vmatpush2.xpose.msra.mxu0 0.0
  %1579 = vmatprep.subr.mxu0 0.0
  %1580 = vmatpush2.xpose.msra.mxu0 0.0
  %1581 = vmatprep.subr.mxu0 0.0
  %1582 = vmatpush2.xpose.msra.mxu0 0.0
  %1583 = vmatprep.subr.mxu0 0.0
  %1584 = vmatpush2.xpose.msra.mxu0 0.0
  %1585 = vmatprep.subr.mxu0 0.0
  %1586 = vmatpush2.xpose.msra.mxu0 0.0
  %1587 = vmatprep.subr.mxu0 0.0
  %1588 = vmatpush2.xpose.msra.mxu0 0.0
  %1589 = vmatprep.subr.mxu0 0.0
  %1590 = vmatpush2.xpose.msra.mxu0 0.0
  %1591 = vmatprep.subr.mxu0 0.0
  %1592 = vmatpush2.xpose.msra.mxu0 0.0
  %1593 = vmatprep.mubr.f32.mxu0 0.0
  %1594 = vmatmul.mubr.f32.gmra.mxu0 %v1521
  %v1595 = vpop.f32.mrf.mxu0
  %v1596 = vadd.f32 0.0, %v1595
  %v1597 = vpop.f32.mrf.mxu0
  %1598 = vmatprep.mubr.f32.mxu0 0.0
  %1599 = vmatmul.mubr.f32.gmra.mxu0 %v1523
  %v1600 = vpop.f32.mrf.mxu0
  %v1601 = vadd.f32 0.0, %v1600
  %v1602 = vpop.f32.mrf.mxu0
  %1603 = vdwg.mxu0
  %v1604 = vmul.f32 %v1596, 0.35355338
  %v1605 = vmul.f32 %v1601, 0.35355338
  %v1606 = vadd.f32 %v1604, %v32
  %v1607 = vadd.f32 %v1605, %v33
  %v1608 = vsel %vm315, %v1606, -inf
  %1609 = vmax.xlane.f32.xlu0 %v1608
  %v1610 = vpop.xlane.xlu0 %1609
  %v1611 = vsel %vm315, %v1607, -inf
  %1612 = vmax.xlane.f32.xlu0 %v1611
  %v1613 = vpop.xlane.xlu0 %1612
  %v1614 = vsub.f32 %v1606, %v1610
  %v1615 = vsub.f32 %v1607, %v1613
  %v1616 = vmul.f32 %v1614, 1.442695
  %v1617 = vpow.pop %v1616
  %v1618 = vmul.f32 %v1615, 1.442695
  %v1619 = vpow.pop %v1618
  %v1620 = vsel %vm315, %v1617, 0.0
  %1621 = vadd.xlane.f32.xlu0 %v1620
  %v1622 = vpop.xlane.xlu0 %1621
  %v1623 = vsel %vm315, %v1619, 0.0
  %1624 = vadd.xlane.f32.xlu0 %v1623
  %v1625 = vpop.xlane.xlu0 %1624
  %v1626 = vrcp.pop %v1622
  %v1627 = vrcp.pop %v1625
  %v1628 = vmul.f32 %v1617, %v1626
  %v1629 = vmul.f32 %v1619, %v1627
  %1630 = vrot.lane.b32.xlu0 %v1388, 32
  %v1631 = vpop.permute.xlu0 %1630
  %1632 = vrot.lane.b32.xlu0 %v1394, 32
  %v1633 = vpop.permute.xlu0 %1632
  %v1637 = vsel %vm315, %v1628, 0
  %v1640 = vsel %vm315, %v1629, 0
  %1642 = vmatprep.subr.mxu0 0.0
  %1643 = vmatpush1.msra.mxu0 0.0
  %1644 = vmatprep.subr.mxu0 0.0
  %1645 = vmatpush1.msra.mxu0 0.0
  %1646 = vmatprep.subr.mxu0 0.0
  %1647 = vmatpush1.msra.mxu0 0.0
  %1648 = vmatprep.subr.mxu0 0.0
  %1649 = vmatpush1.msra.mxu0 0.0
  %1650 = vmatprep.subr.mxu0 0.0
  %1651 = vmatpush1.msra.mxu0 0.0
  %1652 = vmatprep.subr.mxu0 0.0
  %1653 = vmatpush1.msra.mxu0 0.0
  %1654 = vmatprep.subr.mxu0 0.0
  %1655 = vmatpush1.msra.mxu0 0.0
  %1656 = vmatprep.subr.mxu0 0.0
  %1657 = vmatpush1.msra.mxu0 0.0
  %1658 = vmatprep.subr.mxu0 0.0
  %1659 = vmatpush1.msra.mxu0 0.0
  %1660 = vmatprep.subr.mxu0 0.0
  %1661 = vmatpush1.msra.mxu0 0.0
  %1662 = vmatprep.subr.mxu0 0.0
  %1663 = vmatpush1.msra.mxu0 0.0
  %1664 = vmatprep.subr.mxu0 0.0
  %1665 = vmatpush1.msra.mxu0 0.0
  %1666 = vmatprep.subr.mxu0 0.0
  %1667 = vmatpush1.msra.mxu0 0.0
  %1668 = vmatprep.subr.mxu0 0.0
  %1669 = vmatpush1.msra.mxu0 0.0
  %1670 = vmatprep.subr.mxu0 0.0
  %1671 = vmatpush1.msra.mxu0 %v1633
  %1672 = vmatprep.subr.mxu0 0.0
  %1673 = vmatpush1.msra.mxu0 %v1631
  %1674 = vmatprep.subr.mxu0 0.0
  %1675 = vmatpush2.msra.mxu0 0.0
  %1676 = vmatprep.subr.mxu0 0.0
  %1677 = vmatpush2.msra.mxu0 0.0
  %1678 = vmatprep.subr.mxu0 0.0
  %1679 = vmatpush2.msra.mxu0 0.0
  %1680 = vmatprep.subr.mxu0 0.0
  %1681 = vmatpush2.msra.mxu0 0.0
  %1682 = vmatprep.subr.mxu0 0.0
  %1683 = vmatpush2.msra.mxu0 0.0
  %1684 = vmatprep.subr.mxu0 0.0
  %1685 = vmatpush2.msra.mxu0 0.0
  %1686 = vmatprep.subr.mxu0 0.0
  %1687 = vmatpush2.msra.mxu0 0.0
  %1688 = vmatprep.subr.mxu0 0.0
  %1689 = vmatpush2.msra.mxu0 0.0
  %1690 = vmatprep.subr.mxu0 0.0
  %1691 = vmatpush2.msra.mxu0 0.0
  %1692 = vmatprep.subr.mxu0 0.0
  %1693 = vmatpush2.msra.mxu0 0.0
  %1694 = vmatprep.subr.mxu0 0.0
  %1695 = vmatpush2.msra.mxu0 0.0
  %1696 = vmatprep.subr.mxu0 0.0
  %1697 = vmatpush2.msra.mxu0 0.0
  %1698 = vmatprep.subr.mxu0 0.0
  %1699 = vmatpush2.msra.mxu0 0.0
  %1700 = vmatprep.subr.mxu0 0.0
  %1701 = vmatpush2.msra.mxu0 0.0
  %1702 = vmatprep.subr.mxu0 0.0
  %1703 = vmatpush2.msra.mxu0 0.0
  %1704 = vmatprep.subr.mxu0 0.0
  %1705 = vmatpush2.msra.mxu0 0.0
  %1706 = vmatprep.mubr.f32.mxu0 0.0
  %1707 = vmatmul.mubr.f32.gmra.mxu0 %v1637
  %v1708 = vpop.f32.mrf.mxu0
  %v1709 = vadd.f32 0.0, %v1708
  %v1710 = vpop.f32.mrf.mxu0
  %1711 = vmatprep.mubr.f32.mxu0 0.0
  %1712 = vmatmul.mubr.f32.gmra.mxu0 %v1640
  %v1713 = vpop.f32.mrf.mxu0
  %v1714 = vadd.f32 0.0, %v1713
  %v1715 = vpop.f32.mrf.mxu0
  %1716 = vdwg.mxu0
  %1717 = vrot.lane.b32.xlu0 %v1388, 64
  %v1718 = vpop.permute.xlu0 %1717
  %1719 = vrot.lane.b32.xlu0 %v1394, 64
  %v1720 = vpop.permute.xlu0 %1719
  %v1724 = vsel %vm315, %v1511, 0
  %v1727 = vsel %vm315, %v1512, 0
  %1729 = vmatprep.subr.mxu0 0.0
  %1730 = vmatpush1.msra.mxu0 0.0
  %1731 = vmatprep.subr.mxu0 0.0
  %1732 = vmatpush1.msra.mxu0 0.0
  %1733 = vmatprep.subr.mxu0 0.0
  %1734 = vmatpush1.msra.mxu0 0.0
  %1735 = vmatprep.subr.mxu0 0.0
  %1736 = vmatpush1.msra.mxu0 0.0
  %1737 = vmatprep.subr.mxu0 0.0
  %1738 = vmatpush1.msra.mxu0 0.0
  %1739 = vmatprep.subr.mxu0 0.0
  %1740 = vmatpush1.msra.mxu0 0.0
  %1741 = vmatprep.subr.mxu0 0.0
  %1742 = vmatpush1.msra.mxu0 0.0
  %1743 = vmatprep.subr.mxu0 0.0
  %1744 = vmatpush1.msra.mxu0 0.0
  %1745 = vmatprep.subr.mxu0 0.0
  %1746 = vmatpush1.msra.mxu0 0.0
  %1747 = vmatprep.subr.mxu0 0.0
  %1748 = vmatpush1.msra.mxu0 0.0
  %1749 = vmatprep.subr.mxu0 0.0
  %1750 = vmatpush1.msra.mxu0 0.0
  %1751 = vmatprep.subr.mxu0 0.0
  %1752 = vmatpush1.msra.mxu0 0.0
  %1753 = vmatprep.subr.mxu0 0.0
  %1754 = vmatpush1.msra.mxu0 0.0
  %1755 = vmatprep.subr.mxu0 0.0
  %1756 = vmatpush1.msra.mxu0 0.0
  %1757 = vmatprep.subr.mxu0 0.0
  %1758 = vmatpush1.msra.mxu0 %v1720
  %1759 = vmatprep.subr.mxu0 0.0
  %1760 = vmatpush1.msra.mxu0 %v1718
  %1761 = vmatprep.subr.mxu0 0.0
  %1762 = vmatpush2.msra.mxu0 0.0
  %1763 = vmatprep.subr.mxu0 0.0
  %1764 = vmatpush2.msra.mxu0 0.0
  %1765 = vmatprep.subr.mxu0 0.0
  %1766 = vmatpush2.msra.mxu0 0.0
  %1767 = vmatprep.subr.mxu0 0.0
  %1768 = vmatpush2.msra.mxu0 0.0
  %1769 = vmatprep.subr.mxu0 0.0
  %1770 = vmatpush2.msra.mxu0 0.0
  %1771 = vmatprep.subr.mxu0 0.0
  %1772 = vmatpush2.msra.mxu0 0.0
  %1773 = vmatprep.subr.mxu0 0.0
  %1774 = vmatpush2.msra.mxu0 0.0
  %1775 = vmatprep.subr.mxu0 0.0
  %1776 = vmatpush2.msra.mxu0 0.0
  %1777 = vmatprep.subr.mxu0 0.0
  %1778 = vmatpush2.msra.mxu0 0.0
  %1779 = vmatprep.subr.mxu0 0.0
  %1780 = vmatpush2.msra.mxu0 0.0
  %1781 = vmatprep.subr.mxu0 0.0
  %1782 = vmatpush2.msra.mxu0 0.0
  %1783 = vmatprep.subr.mxu0 0.0
  %1784 = vmatpush2.msra.mxu0 0.0
  %1785 = vmatprep.subr.mxu0 0.0
  %1786 = vmatpush2.msra.mxu0 0.0
  %1787 = vmatprep.subr.mxu0 0.0
  %1788 = vmatpush2.msra.mxu0 0.0
  %1789 = vmatprep.subr.mxu0 0.0
  %1790 = vmatpush2.msra.mxu0 0.0
  %1791 = vmatprep.subr.mxu0 0.0
  %1792 = vmatpush2.msra.mxu0 0.0
  %1793 = vmatprep.mubr.f32.mxu0 0.0
  %1794 = vmatmul.mubr.f32.gmra.mxu0 %v1724
  %v1795 = vpop.f32.mrf.mxu0
  %v1796 = vadd.f32 %v1709, %v1795
  %v1797 = vpop.f32.mrf.mxu0
  %1798 = vmatprep.mubr.f32.mxu0 0.0
  %1799 = vmatmul.mubr.f32.gmra.mxu0 %v1727
  %v1800 = vpop.f32.mrf.mxu0
  %v1801 = vadd.f32 %v1714, %v1800
  %v1802 = vpop.f32.mrf.mxu0
  %1803 = vdwg.mxu0
  %1804 = vrot.lane.b32.xlu0 %v1388, 112
  %v1805 = vpop.permute.xlu0 %1804
  %1806 = vrot.lane.b32.xlu0 %v1394, 112
  %v1807 = vpop.permute.xlu0 %1806
  %1808 = vrot.lane.b32.xlu0 %v1388, 80
  %v1809 = vpop.permute.xlu0 %1808
  %1810 = vrot.lane.b32.xlu0 %v1394, 80
  %v1811 = vpop.permute.xlu0 %1810
  %v1812 = vsel %vm35, %v1805, 0
  %v1814 = vsel %vm35, %v1807, 0
  %v1816 = vsel %vm35, %v1809, 0
  %v1818 = vsel %vm35, %v1811, 0
  %1820 = vmatprep.subr.mxu0 0.0
  %1821 = vmatpush1.xpose.msra.mxu0 0.0
  %1822 = vmatprep.subr.mxu0 0.0
  %1823 = vmatpush1.xpose.msra.mxu0 0.0
  %1824 = vmatprep.subr.mxu0 0.0
  %1825 = vmatpush1.xpose.msra.mxu0 0.0
  %1826 = vmatprep.subr.mxu0 0.0
  %1827 = vmatpush1.xpose.msra.mxu0 0.0
  %1828 = vmatprep.subr.mxu0 0.0
  %1829 = vmatpush1.xpose.msra.mxu0 0.0
  %1830 = vmatprep.subr.mxu0 0.0
  %1831 = vmatpush1.xpose.msra.mxu0 0.0
  %1832 = vmatprep.subr.mxu0 0.0
  %1833 = vmatpush1.xpose.msra.mxu0 0.0
  %1834 = vmatprep.subr.mxu0 0.0
  %1835 = vmatpush1.xpose.msra.mxu0 0.0
  %1836 = vmatprep.subr.mxu0 0.0
  %1837 = vmatpush1.xpose.msra.mxu0 0.0
  %1838 = vmatprep.subr.mxu0 0.0
  %1839 = vmatpush1.xpose.msra.mxu0 0.0
  %1840 = vmatprep.subr.mxu0 0.0
  %1841 = vmatpush1.xpose.msra.mxu0 0.0
  %1842 = vmatprep.subr.mxu0 0.0
  %1843 = vmatpush1.xpose.msra.mxu0 0.0
  %1844 = vmatprep.subr.mxu0 0.0
  %1845 = vmatpush1.xpose.msra.mxu0 0.0
  %1846 = vmatprep.subr.mxu0 0.0
  %1847 = vmatpush1.xpose.msra.mxu0 0.0
  %1848 = vmatprep.subr.mxu0 0.0
  %1849 = vmatpush1.xpose.msra.mxu0 %v1818
  %1850 = vmatprep.subr.mxu0 0.0
  %1851 = vmatpush1.xpose.msra.mxu0 %v1816
  %1852 = vmatprep.subr.mxu0 0.0
  %1853 = vmatpush2.xpose.msra.mxu0 0.0
  %1854 = vmatprep.subr.mxu0 0.0
  %1855 = vmatpush2.xpose.msra.mxu0 0.0
  %1856 = vmatprep.subr.mxu0 0.0
  %1857 = vmatpush2.xpose.msra.mxu0 0.0
  %1858 = vmatprep.subr.mxu0 0.0
  %1859 = vmatpush2.xpose.msra.mxu0 0.0
  %1860 = vmatprep.subr.mxu0 0.0
  %1861 = vmatpush2.xpose.msra.mxu0 0.0
  %1862 = vmatprep.subr.mxu0 0.0
  %1863 = vmatpush2.xpose.msra.mxu0 0.0
  %1864 = vmatprep.subr.mxu0 0.0
  %1865 = vmatpush2.xpose.msra.mxu0 0.0
  %1866 = vmatprep.subr.mxu0 0.0
  %1867 = vmatpush2.xpose.msra.mxu0 0.0
  %1868 = vmatprep.subr.mxu0 0.0
  %1869 = vmatpush2.xpose.msra.mxu0 0.0
  %1870 = vmatprep.subr.mxu0 0.0
  %1871 = vmatpush2.xpose.msra.mxu0 0.0
  %1872 = vmatprep.subr.mxu0 0.0
  %1873 = vmatpush2.xpose.msra.mxu0 0.0
  %1874 = vmatprep.subr.mxu0 0.0
  %1875 = vmatpush2.xpose.msra.mxu0 0.0
  %1876 = vmatprep.subr.mxu0 0.0
  %1877 = vmatpush2.xpose.msra.mxu0 0.0
  %1878 = vmatprep.subr.mxu0 0.0
  %1879 = vmatpush2.xpose.msra.mxu0 0.0
  %1880 = vmatprep.subr.mxu0 0.0
  %1881 = vmatpush2.xpose.msra.mxu0 0.0
  %1882 = vmatprep.subr.mxu0 0.0
  %1883 = vmatpush2.xpose.msra.mxu0 0.0
  %1884 = vmatprep.mubr.f32.mxu0 0.0
  %1885 = vmatmul.mubr.f32.gmra.mxu0 %v1812
  %v1886 = vpop.f32.mrf.mxu0
  %v1887 = vadd.f32 0.0, %v1886
  %v1888 = vpop.f32.mrf.mxu0
  %1889 = vmatprep.mubr.f32.mxu0 0.0
  %1890 = vmatmul.mubr.f32.gmra.mxu0 %v1814
  %v1891 = vpop.f32.mrf.mxu0
  %v1892 = vadd.f32 0.0, %v1891
  %v1893 = vpop.f32.mrf.mxu0
  %1894 = vdwg.mxu0
  %v1895 = vmul.f32 %v1887, 0.35355338
  %v1896 = vmul.f32 %v1892, 0.35355338
  %v1897 = vadd.f32 %v1895, %v32
  %v1898 = vadd.f32 %v1896, %v33
  %v1899 = vsel %vm315, %v1897, -inf
  %1900 = vmax.xlane.f32.xlu0 %v1899
  %v1901 = vpop.xlane.xlu0 %1900
  %v1902 = vsel %vm315, %v1898, -inf
  %1903 = vmax.xlane.f32.xlu0 %v1902
  %v1904 = vpop.xlane.xlu0 %1903
  %v1905 = vsub.f32 %v1897, %v1901
  %v1906 = vsub.f32 %v1898, %v1904
  %v1907 = vmul.f32 %v1905, 1.442695
  %v1908 = vpow.pop %v1907
  %v1909 = vmul.f32 %v1906, 1.442695
  %v1910 = vpow.pop %v1909
  %v1911 = vsel %vm315, %v1908, 0.0
  %1912 = vadd.xlane.f32.xlu0 %v1911
  %v1913 = vpop.xlane.xlu0 %1912
  %v1914 = vsel %vm315, %v1910, 0.0
  %1915 = vadd.xlane.f32.xlu0 %v1914
  %v1916 = vpop.xlane.xlu0 %1915
  %v1917 = vrcp.pop %v1913
  %v1918 = vrcp.pop %v1916
  %v1919 = vmul.f32 %v1908, %v1917
  %v1920 = vmul.f32 %v1910, %v1918
  %v1922 = vsel %vm315, %v1919, 0
  %v1925 = vsel %vm315, %v1920, 0
  %1927 = vmatprep.subr.mxu0 0.0
  %1928 = vmatpush1.msra.mxu0 0.0
  %1929 = vmatprep.subr.mxu0 0.0
  %1930 = vmatpush1.msra.mxu0 0.0
  %1931 = vmatprep.subr.mxu0 0.0
  %1932 = vmatpush1.msra.mxu0 0.0
  %1933 = vmatprep.subr.mxu0 0.0
  %1934 = vmatpush1.msra.mxu0 0.0
  %1935 = vmatprep.subr.mxu0 0.0
  %1936 = vmatpush1.msra.mxu0 0.0
  %1937 = vmatprep.subr.mxu0 0.0
  %1938 = vmatpush1.msra.mxu0 0.0
  %1939 = vmatprep.subr.mxu0 0.0
  %1940 = vmatpush1.msra.mxu0 0.0
  %1941 = vmatprep.subr.mxu0 0.0
  %1942 = vmatpush1.msra.mxu0 0.0
  %1943 = vmatprep.subr.mxu0 0.0
  %1944 = vmatpush1.msra.mxu0 0.0
  %1945 = vmatprep.subr.mxu0 0.0
  %1946 = vmatpush1.msra.mxu0 0.0
  %1947 = vmatprep.subr.mxu0 0.0
  %1948 = vmatpush1.msra.mxu0 0.0
  %1949 = vmatprep.subr.mxu0 0.0
  %1950 = vmatpush1.msra.mxu0 0.0
  %1951 = vmatprep.subr.mxu0 0.0
  %1952 = vmatpush1.msra.mxu0 0.0
  %1953 = vmatprep.subr.mxu0 0.0
  %1954 = vmatpush1.msra.mxu0 0.0
  %1955 = vmatprep.subr.mxu0 0.0
  %1956 = vmatpush1.msra.mxu0 %v1396
  %1957 = vmatprep.subr.mxu0 0.0
  %1958 = vmatpush1.msra.mxu0 %v1390
  %1959 = vmatprep.subr.mxu0 0.0
  %1960 = vmatpush2.msra.mxu0 0.0
  %1961 = vmatprep.subr.mxu0 0.0
  %1962 = vmatpush2.msra.mxu0 0.0
  %1963 = vmatprep.subr.mxu0 0.0
  %1964 = vmatpush2.msra.mxu0 0.0
  %1965 = vmatprep.subr.mxu0 0.0
  %1966 = vmatpush2.msra.mxu0 0.0
  %1967 = vmatprep.subr.mxu0 0.0
  %1968 = vmatpush2.msra.mxu0 0.0
  %1969 = vmatprep.subr.mxu0 0.0
  %1970 = vmatpush2.msra.mxu0 0.0
  %1971 = vmatprep.subr.mxu0 0.0
  %1972 = vmatpush2.msra.mxu0 0.0
  %1973 = vmatprep.subr.mxu0 0.0
  %1974 = vmatpush2.msra.mxu0 0.0
  %1975 = vmatprep.subr.mxu0 0.0
  %1976 = vmatpush2.msra.mxu0 0.0
  %1977 = vmatprep.subr.mxu0 0.0
  %1978 = vmatpush2.msra.mxu0 0.0
  %1979 = vmatprep.subr.mxu0 0.0
  %1980 = vmatpush2.msra.mxu0 0.0
  %1981 = vmatprep.subr.mxu0 0.0
  %1982 = vmatpush2.msra.mxu0 0.0
  %1983 = vmatprep.subr.mxu0 0.0
  %1984 = vmatpush2.msra.mxu0 0.0
  %1985 = vmatprep.subr.mxu0 0.0
  %1986 = vmatpush2.msra.mxu0 0.0
  %1987 = vmatprep.subr.mxu0 0.0
  %1988 = vmatpush2.msra.mxu0 0.0
  %1989 = vmatprep.subr.mxu0 0.0
  %1990 = vmatpush2.msra.mxu0 0.0
  %1991 = vmatprep.mubr.f32.mxu0 0.0
  %1992 = vmatmul.mubr.f32.gmra.mxu0 %v1922
  %v1993 = vpop.f32.mrf.mxu0
  %v1994 = vadd.f32 0.0, %v1993
  %v1995 = vpop.f32.mrf.mxu0
  %1996 = vmatprep.mubr.f32.mxu0 0.0
  %1997 = vmatmul.mubr.f32.gmra.mxu0 %v1925
  %v1998 = vpop.f32.mrf.mxu0
  %v1999 = vadd.f32 0.0, %v1998
  %v2000 = vpop.f32.mrf.mxu0
  %2001 = vdwg.mxu0
  %v2002 = vadd.f32 %v1796, %v1994
  %v2003 = vadd.f32 %v1801, %v1999
  %2004 = vrot.lane.b32.xlu0 %v1388, 104
  %v2005 = vpop.permute.xlu0 %2004
  %2006 = vrot.lane.b32.xlu0 %v1394, 104
  %v2007 = vpop.permute.xlu0 %2006
  %2008 = vrot.lane.b32.xlu0 %v1388, 72
  %v2009 = vpop.permute.xlu0 %2008
  %2010 = vrot.lane.b32.xlu0 %v1394, 72
  %v2011 = vpop.permute.xlu0 %2010
  %v2012 = vsel %vm35, %v2005, 0
  %v2014 = vsel %vm35, %v2007, 0
  %v2016 = vsel %vm35, %v2009, 0
  %v2018 = vsel %vm35, %v2011, 0
  %2020 = vmatprep.subr.mxu0 0.0
  %2021 = vmatpush1.xpose.msra.mxu0 0.0
  %2022 = vmatprep.subr.mxu0 0.0
  %2023 = vmatpush1.xpose.msra.mxu0 0.0
  %2024 = vmatprep.subr.mxu0 0.0
  %2025 = vmatpush1.xpose.msra.mxu0 0.0
  %2026 = vmatprep.subr.mxu0 0.0
  %2027 = vmatpush1.xpose.msra.mxu0 0.0
  %2028 = vmatprep.subr.mxu0 0.0
  %2029 = vmatpush1.xpose.msra.mxu0 0.0
  %2030 = vmatprep.subr.mxu0 0.0
  %2031 = vmatpush1.xpose.msra.mxu0 0.0
  %2032 = vmatprep.subr.mxu0 0.0
  %2033 = vmatpush1.xpose.msra.mxu0 0.0
  %2034 = vmatprep.subr.mxu0 0.0
  %2035 = vmatpush1.xpose.msra.mxu0 0.0
  %2036 = vmatprep.subr.mxu0 0.0
  %2037 = vmatpush1.xpose.msra.mxu0 0.0
  %2038 = vmatprep.subr.mxu0 0.0
  %2039 = vmatpush1.xpose.msra.mxu0 0.0
  %2040 = vmatprep.subr.mxu0 0.0
  %2041 = vmatpush1.xpose.msra.mxu0 0.0
  %2042 = vmatprep.subr.mxu0 0.0
  %2043 = vmatpush1.xpose.msra.mxu0 0.0
  %2044 = vmatprep.subr.mxu0 0.0
  %2045 = vmatpush1.xpose.msra.mxu0 0.0
  %2046 = vmatprep.subr.mxu0 0.0
  %2047 = vmatpush1.xpose.msra.mxu0 0.0
  %2048 = vmatprep.subr.mxu0 0.0
  %2049 = vmatpush1.xpose.msra.mxu0 %v2018
  %2050 = vmatprep.subr.mxu0 0.0
  %2051 = vmatpush1.xpose.msra.mxu0 %v2016
  %2052 = vmatprep.subr.mxu0 0.0
  %2053 = vmatpush2.xpose.msra.mxu0 0.0
  %2054 = vmatprep.subr.mxu0 0.0
  %2055 = vmatpush2.xpose.msra.mxu0 0.0
  %2056 = vmatprep.subr.mxu0 0.0
  %2057 = vmatpush2.xpose.msra.mxu0 0.0
  %2058 = vmatprep.subr.mxu0 0.0
  %2059 = vmatpush2.xpose.msra.mxu0 0.0
  %2060 = vmatprep.subr.mxu0 0.0
  %2061 = vmatpush2.xpose.msra.mxu0 0.0
  %2062 = vmatprep.subr.mxu0 0.0
  %2063 = vmatpush2.xpose.msra.mxu0 0.0
  %2064 = vmatprep.subr.mxu0 0.0
  %2065 = vmatpush2.xpose.msra.mxu0 0.0
  %2066 = vmatprep.subr.mxu0 0.0
  %2067 = vmatpush2.xpose.msra.mxu0 0.0
  %2068 = vmatprep.subr.mxu0 0.0
  %2069 = vmatpush2.xpose.msra.mxu0 0.0
  %2070 = vmatprep.subr.mxu0 0.0
  %2071 = vmatpush2.xpose.msra.mxu0 0.0
  %2072 = vmatprep.subr.mxu0 0.0
  %2073 = vmatpush2.xpose.msra.mxu0 0.0
  %2074 = vmatprep.subr.mxu0 0.0
  %2075 = vmatpush2.xpose.msra.mxu0 0.0
  %2076 = vmatprep.subr.mxu0 0.0
  %2077 = vmatpush2.xpose.msra.mxu0 0.0
  %2078 = vmatprep.subr.mxu0 0.0
  %2079 = vmatpush2.xpose.msra.mxu0 0.0
  %2080 = vmatprep.subr.mxu0 0.0
  %2081 = vmatpush2.xpose.msra.mxu0 0.0
  %2082 = vmatprep.subr.mxu0 0.0
  %2083 = vmatpush2.xpose.msra.mxu0 0.0
  %2084 = vmatprep.mubr.f32.mxu0 0.0
  %2085 = vmatmul.mubr.f32.gmra.mxu0 %v2012
  %v2086 = vpop.f32.mrf.mxu0
  %v2087 = vadd.f32 0.0, %v2086
  %v2088 = vpop.f32.mrf.mxu0
  %2089 = vmatprep.mubr.f32.mxu0 0.0
  %2090 = vmatmul.mubr.f32.gmra.mxu0 %v2014
  %v2091 = vpop.f32.mrf.mxu0
  %v2092 = vadd.f32 0.0, %v2091
  %v2093 = vpop.f32.mrf.mxu0
  %2094 = vdwg.mxu0
  %v2095 = vmul.f32 %v2087, 0.35355338
  %v2096 = vmul.f32 %v2092, 0.35355338
  %v2097 = vadd.f32 %v2095, %v32
  %v2098 = vadd.f32 %v2096, %v33
  %v2099 = vsel %vm315, %v2097, -inf
  %2100 = vmax.xlane.f32.xlu0 %v2099
  %v2101 = vpop.xlane.xlu0 %2100
  %v2102 = vsel %vm315, %v2098, -inf
  %2103 = vmax.xlane.f32.xlu0 %v2102
  %v2104 = vpop.xlane.xlu0 %2103
  %v2105 = vsub.f32 %v2097, %v2101
  %v2106 = vsub.f32 %v2098, %v2104
  %v2107 = vmul.f32 %v2105, 1.442695
  %v2108 = vpow.pop %v2107
  %v2109 = vmul.f32 %v2106, 1.442695
  %v2110 = vpow.pop %v2109
  %v2111 = vsel %vm315, %v2108, 0.0
  %2112 = vadd.xlane.f32.xlu0 %v2111
  %v2113 = vpop.xlane.xlu0 %2112
  %v2114 = vsel %vm315, %v2110, 0.0
  %2115 = vadd.xlane.f32.xlu0 %v2114
  %v2116 = vpop.xlane.xlu0 %2115
  %v2117 = vrcp.pop %v2113
  %v2118 = vrcp.pop %v2116
  %v2119 = vmul.f32 %v2108, %v2117
  %v2120 = vmul.f32 %v2110, %v2118
  %2123 = vrot.lane.b32.xlu0 %v1390, 96
  %v2124 = vpop.permute.xlu0 %2123
  %2125 = vrot.lane.b32.xlu0 %v1396, 96
  %v2126 = vpop.permute.xlu0 %2125
  %v2130 = vsel %vm315, %v2119, 0
  %v2133 = vsel %vm315, %v2120, 0
  %2135 = vmatprep.subr.mxu0 0.0
  %2136 = vmatpush1.msra.mxu0 0.0
  %2137 = vmatprep.subr.mxu0 0.0
  %2138 = vmatpush1.msra.mxu0 0.0
  %2139 = vmatprep.subr.mxu0 0.0
  %2140 = vmatpush1.msra.mxu0 0.0
  %2141 = vmatprep.subr.mxu0 0.0
  %2142 = vmatpush1.msra.mxu0 0.0
  %2143 = vmatprep.subr.mxu0 0.0
  %2144 = vmatpush1.msra.mxu0 0.0
  %2145 = vmatprep.subr.mxu0 0.0
  %2146 = vmatpush1.msra.mxu0 0.0
  %2147 = vmatprep.subr.mxu0 0.0
  %2148 = vmatpush1.msra.mxu0 0.0
  %2149 = vmatprep.subr.mxu0 0.0
  %2150 = vmatpush1.msra.mxu0 0.0
  %2151 = vmatprep.subr.mxu0 0.0
  %2152 = vmatpush1.msra.mxu0 0.0
  %2153 = vmatprep.subr.mxu0 0.0
  %2154 = vmatpush1.msra.mxu0 0.0
  %2155 = vmatprep.subr.mxu0 0.0
  %2156 = vmatpush1.msra.mxu0 0.0
  %2157 = vmatprep.subr.mxu0 0.0
  %2158 = vmatpush1.msra.mxu0 0.0
  %2159 = vmatprep.subr.mxu0 0.0
  %2160 = vmatpush1.msra.mxu0 0.0
  %2161 = vmatprep.subr.mxu0 0.0
  %2162 = vmatpush1.msra.mxu0 0.0
  %2163 = vmatprep.subr.mxu0 0.0
  %2164 = vmatpush1.msra.mxu0 %v2126
  %2165 = vmatprep.subr.mxu0 0.0
  %2166 = vmatpush1.msra.mxu0 %v2124
  %2167 = vmatprep.subr.mxu0 0.0
  %2168 = vmatpush2.msra.mxu0 0.0
  %2169 = vmatprep.subr.mxu0 0.0
  %2170 = vmatpush2.msra.mxu0 0.0
  %2171 = vmatprep.subr.mxu0 0.0
  %2172 = vmatpush2.msra.mxu0 0.0
  %2173 = vmatprep.subr.mxu0 0.0
  %2174 = vmatpush2.msra.mxu0 0.0
  %2175 = vmatprep.subr.mxu0 0.0
  %2176 = vmatpush2.msra.mxu0 0.0
  %2177 = vmatprep.subr.mxu0 0.0
  %2178 = vmatpush2.msra.mxu0 0.0
  %2179 = vmatprep.subr.mxu0 0.0
  %2180 = vmatpush2.msra.mxu0 0.0
  %2181 = vmatprep.subr.mxu0 0.0
  %2182 = vmatpush2.msra.mxu0 0.0
  %2183 = vmatprep.subr.mxu0 0.0
  %2184 = vmatpush2.msra.mxu0 0.0
  %2185 = vmatprep.subr.mxu0 0.0
  %2186 = vmatpush2.msra.mxu0 0.0
  %2187 = vmatprep.subr.mxu0 0.0
  %2188 = vmatpush2.msra.mxu0 0.0
  %2189 = vmatprep.subr.mxu0 0.0
  %2190 = vmatpush2.msra.mxu0 0.0
  %2191 = vmatprep.subr.mxu0 0.0
  %2192 = vmatpush2.msra.mxu0 0.0
  %2193 = vmatprep.subr.mxu0 0.0
  %2194 = vmatpush2.msra.mxu0 0.0
  %2195 = vmatprep.subr.mxu0 0.0
  %2196 = vmatpush2.msra.mxu0 0.0
  %2197 = vmatprep.subr.mxu0 0.0
  %2198 = vmatpush2.msra.mxu0 0.0
  %2199 = vmatprep.mubr.f32.mxu0 0.0
  %2200 = vmatmul.mubr.f32.gmra.mxu0 %v2130
  %v2201 = vpop.f32.mrf.mxu0
  %v2202 = vadd.f32 0.0, %v2201
  %v2203 = vpop.f32.mrf.mxu0
  %2204 = vmatprep.mubr.f32.mxu0 0.0
  %2205 = vmatmul.mubr.f32.gmra.mxu0 %v2133
  %v2206 = vpop.f32.mrf.mxu0
  %v2207 = vadd.f32 0.0, %v2206
  %v2208 = vpop.f32.mrf.mxu0
  %2209 = vdwg.mxu0
  %v2210 = vadd.f32 %v2002, %v2202
  %v2211 = vadd.f32 %v2003, %v2207
  %v2212 = vld [vmem:[%s1301] ss:$0 sm:$0xff]
  %v2213 = vadd.f32 %v2210, %v2212
  %v2214 = vadd.f32 %v2211, %v2212
  %v2215 = vld [vmem:[%s1301 + $0x1] ss:$0 sm:$0xff]
  %v2216 = vld [vmem:[%s1301 + $0x2] ss:$0 sm:$0xff]
  %v2217 = vadd.f32 %v2213, %v1290
  %v2218 = vadd.f32 %v2214, %v1291
  %v2219 = vsel %vm138, %v2217, 0.0
  %2220 = vadd.xlane.f32.xlu0 %v2219
  %v2221 = vpop.xlane.xlu0 %2220
  %v2222 = vsel %vm138, %v2218, 0.0
  %2223 = vadd.xlane.f32.xlu0 %v2222
  %v2224 = vpop.xlane.xlu0 %2223
  %v2225 = vmul.f32 %v2221, %v1050
  %v2226 = vmul.f32 %v2224, %v1050
  %v2227 = vsub.f32 %v2217, %v2225
  %v2228 = vsub.f32 %v2218, %v2226
  %v2229 = vmul.f32 %v2227, %v2227
  %v2230 = vmul.f32 %v2228, %v2228
  %v2231 = vsel %vm138, %v2229, 0.0
  %2232 = vadd.xlane.f32.xlu0 %v2231
  %v2233 = vpop.xlane.xlu0 %2232
  %v2234 = vsel %vm138, %v2230, 0.0
  %2235 = vadd.xlane.f32.xlu0 %v2234
  %v2236 = vpop.xlane.xlu0 %2235
  %v2237 = vmul.f32 %v2233, %v1050
  %v2238 = vmul.f32 %v2236, %v1050
  %v2239 = vadd.f32 %v2237, 1e-05
  %v2240 = vadd.f32 %v2238, 1e-05
  %v2241 = vrsqrt.pop %v2239
  %v2242 = vrsqrt.pop %v2240
  %v2243 = vmul.f32 %v2227, %v2241
  %v2244 = vmul.f32 %v2228, %v2242
  %v2245 = vmul.f32 %v2243, %v2215
  %v2246 = vmul.f32 %v2244, %v2215
  %v2247 = vadd.f32 %v2245, %v2216
  %v2248 = vadd.f32 %v2246, %v2216
  %v2249 = vmul.f32 %v2247, %v30
  %v2250 = vmul.f32 %v2248, %v31
  %s2251 = scalar_lea.vmem %s4, 32
  %v2252 = vld [vmem:[%s2251] sm:$0xff]
  %v2253 = vld [vmem:[%s2251 + $0x8] sm:$0xff]
  %v2254 = vld [vmem:[%s2251 + $0x10] sm:$0xff]
  %v2255 = vld [vmem:[%s2251 + $0x18] sm:$0xff]
  %v2256 = vld [vmem:[%s1301 + $0x6] ss:$0 sm:$0xff]
  %v2258 = vsel %vm138, %v2249, 0
  %v2261 = vsel %vm138, %v2250, 0
  %2263 = vmatprep.subr.mxu0 0.0
  %2264 = vmatpush1.msra.mxu0 0.0
  %2265 = vmatprep.subr.mxu0 0.0
  %2266 = vmatpush1.msra.mxu0 0.0
  %2267 = vmatprep.subr.mxu0 0.0
  %2268 = vmatpush1.msra.mxu0 0.0
  %2269 = vmatprep.subr.mxu0 0.0
  %2270 = vmatpush1.msra.mxu0 0.0
  %2271 = vmatprep.subr.mxu0 0.0
  %2272 = vmatpush1.msra.mxu0 0.0
  %2273 = vmatprep.subr.mxu0 0.0
  %2274 = vmatpush1.msra.mxu0 0.0
  %2275 = vmatprep.subr.mxu0 0.0
  %2276 = vmatpush1.msra.mxu0 0.0
  %2277 = vmatprep.subr.mxu0 0.0
  %2278 = vmatpush1.msra.mxu0 0.0
  %2279 = vmatprep.subr.mxu0 0.0
  %2280 = vmatpush1.msra.mxu0 0.0
  %2281 = vmatprep.subr.mxu0 0.0
  %2282 = vmatpush1.msra.mxu0 0.0
  %2283 = vmatprep.subr.mxu0 0.0
  %2284 = vmatpush1.msra.mxu0 0.0
  %2285 = vmatprep.subr.mxu0 0.0
  %2286 = vmatpush1.msra.mxu0 0.0
  %2287 = vmatprep.subr.mxu0 0.0
  %2288 = vmatpush1.msra.mxu0 %v2255
  %2289 = vmatprep.subr.mxu0 0.0
  %2290 = vmatpush1.msra.mxu0 %v2254
  %2291 = vmatprep.subr.mxu0 0.0
  %2292 = vmatpush1.msra.mxu0 %v2253
  %2293 = vmatprep.subr.mxu0 0.0
  %2294 = vmatpush1.msra.mxu0 %v2252
  %2295 = vmatprep.subr.mxu0 0.0
  %2296 = vmatpush2.msra.mxu0 0.0
  %2297 = vmatprep.subr.mxu0 0.0
  %2298 = vmatpush2.msra.mxu0 0.0
  %2299 = vmatprep.subr.mxu0 0.0
  %2300 = vmatpush2.msra.mxu0 0.0
  %2301 = vmatprep.subr.mxu0 0.0
  %2302 = vmatpush2.msra.mxu0 0.0
  %2303 = vmatprep.subr.mxu0 0.0
  %2304 = vmatpush2.msra.mxu0 0.0
  %2305 = vmatprep.subr.mxu0 0.0
  %2306 = vmatpush2.msra.mxu0 0.0
  %2307 = vmatprep.subr.mxu0 0.0
  %2308 = vmatpush2.msra.mxu0 0.0
  %2309 = vmatprep.subr.mxu0 0.0
  %2310 = vmatpush2.msra.mxu0 0.0
  %2311 = vmatprep.subr.mxu0 0.0
  %2312 = vmatpush2.msra.mxu0 0.0
  %2313 = vmatprep.subr.mxu0 0.0
  %2314 = vmatpush2.msra.mxu0 0.0
  %2315 = vmatprep.subr.mxu0 0.0
  %2316 = vmatpush2.msra.mxu0 0.0
  %2317 = vmatprep.subr.mxu0 0.0
  %2318 = vmatpush2.msra.mxu0 0.0
  %2319 = vmatprep.subr.mxu0 0.0
  %2320 = vmatpush2.msra.mxu0 0.0
  %2321 = vmatprep.subr.mxu0 0.0
  %2322 = vmatpush2.msra.mxu0 0.0
  %2323 = vmatprep.subr.mxu0 0.0
  %2324 = vmatpush2.msra.mxu0 0.0
  %2325 = vmatprep.subr.mxu0 0.0
  %2326 = vmatpush2.msra.mxu0 0.0
  %2327 = vmatprep.mubr.f32.mxu0 0.0
  %2328 = vmatmul.mubr.f32.gmra.mxu0 %v2258
  %v2329 = vpop.f32.mrf.mxu0
  %v2330 = vadd.f32 %v2256, %v2329
  %v2331 = vpop.f32.mrf.mxu0
  %2332 = vmatprep.mubr.f32.mxu0 0.0
  %2333 = vmatmul.mubr.f32.gmra.mxu0 %v2261
  %v2334 = vpop.f32.mrf.mxu0
  %v2335 = vadd.f32 %v2256, %v2334
  %v2336 = vpop.f32.mrf.mxu0
  %2337 = vdwg.mxu0
  %v2338 = vmax.f32 %v2330, 0.0
  %v2339 = vmax.f32 %v2335, 0.0
  %s2340 = scalar_lea.vmem %s5, 64
  %v2341 = vld [vmem:[%s2340] sm:$0xff]
  %v2342 = vld [vmem:[%s2340 + $0x8] sm:$0xff]
  %v2343 = vld [vmem:[%s2340 + $0x10] sm:$0xff]
  %v2344 = vld [vmem:[%s2340 + $0x18] sm:$0xff]
  %v2345 = vld [vmem:[%s2340 + $0x20] sm:$0xff]
  %v2346 = vld [vmem:[%s2340 + $0x28] sm:$0xff]
  %v2347 = vld [vmem:[%s2340 + $0x30] sm:$0xff]
  %v2348 = vld [vmem:[%s2340 + $0x38] sm:$0xff]
  %v2349 = vld [vmem:[%s1301 + $0x5] ss:$0 sm:$0xff]
  %v2351 = vsel %vm1174, %v2338, 0
  %v2354 = vsel %vm1174, %v2339, 0
  %2356 = vmatprep.subr.mxu0 0.0
  %2357 = vmatpush1.msra.mxu0 0.0
  %2358 = vmatprep.subr.mxu0 0.0
  %2359 = vmatpush1.msra.mxu0 0.0
  %2360 = vmatprep.subr.mxu0 0.0
  %2361 = vmatpush1.msra.mxu0 0.0
  %2362 = vmatprep.subr.mxu0 0.0
  %2363 = vmatpush1.msra.mxu0 0.0
  %2364 = vmatprep.subr.mxu0 0.0
  %2365 = vmatpush1.msra.mxu0 0.0
  %2366 = vmatprep.subr.mxu0 0.0
  %2367 = vmatpush1.msra.mxu0 0.0
  %2368 = vmatprep.subr.mxu0 0.0
  %2369 = vmatpush1.msra.mxu0 0.0
  %2370 = vmatprep.subr.mxu0 0.0
  %2371 = vmatpush1.msra.mxu0 0.0
  %2372 = vmatprep.subr.mxu0 0.0
  %2373 = vmatpush1.msra.mxu0 %v2348
  %2374 = vmatprep.subr.mxu0 0.0
  %2375 = vmatpush1.msra.mxu0 %v2347
  %2376 = vmatprep.subr.mxu0 0.0
  %2377 = vmatpush1.msra.mxu0 %v2346
  %2378 = vmatprep.subr.mxu0 0.0
  %2379 = vmatpush1.msra.mxu0 %v2345
  %2380 = vmatprep.subr.mxu0 0.0
  %2381 = vmatpush1.msra.mxu0 %v2344
  %2382 = vmatprep.subr.mxu0 0.0
  %2383 = vmatpush1.msra.mxu0 %v2343
  %2384 = vmatprep.subr.mxu0 0.0
  %2385 = vmatpush1.msra.mxu0 %v2342
  %2386 = vmatprep.subr.mxu0 0.0
  %2387 = vmatpush1.msra.mxu0 %v2341
  %2388 = vmatprep.subr.mxu0 0.0
  %2389 = vmatpush2.msra.mxu0 0.0
  %2390 = vmatprep.subr.mxu0 0.0
  %2391 = vmatpush2.msra.mxu0 0.0
  %2392 = vmatprep.subr.mxu0 0.0
  %2393 = vmatpush2.msra.mxu0 0.0
  %2394 = vmatprep.subr.mxu0 0.0
  %2395 = vmatpush2.msra.mxu0 0.0
  %2396 = vmatprep.subr.mxu0 0.0
  %2397 = vmatpush2.msra.mxu0 0.0
  %2398 = vmatprep.subr.mxu0 0.0
  %2399 = vmatpush2.msra.mxu0 0.0
  %2400 = vmatprep.subr.mxu0 0.0
  %2401 = vmatpush2.msra.mxu0 0.0
  %2402 = vmatprep.subr.mxu0 0.0
  %2403 = vmatpush2.msra.mxu0 0.0
  %2404 = vmatprep.subr.mxu0 0.0
  %2405 = vmatpush2.msra.mxu0 0.0
  %2406 = vmatprep.subr.mxu0 0.0
  %2407 = vmatpush2.msra.mxu0 0.0
  %2408 = vmatprep.subr.mxu0 0.0
  %2409 = vmatpush2.msra.mxu0 0.0
  %2410 = vmatprep.subr.mxu0 0.0
  %2411 = vmatpush2.msra.mxu0 0.0
  %2412 = vmatprep.subr.mxu0 0.0
  %2413 = vmatpush2.msra.mxu0 0.0
  %2414 = vmatprep.subr.mxu0 0.0
  %2415 = vmatpush2.msra.mxu0 0.0
  %2416 = vmatprep.subr.mxu0 0.0
  %2417 = vmatpush2.msra.mxu0 0.0
  %2418 = vmatprep.subr.mxu0 0.0
  %2419 = vmatpush2.msra.mxu0 0.0
  %2420 = vmatprep.mubr.f32.mxu0 0.0
  %2421 = vmatmul.mubr.f32.gmra.mxu0 %v2351
  %v2422 = vpop.f32.mrf.mxu0
  %v2423 = vadd.f32 %v2349, %v2422
  %v2424 = vpop.f32.mrf.mxu0
  %2425 = vmatprep.mubr.f32.mxu0 0.0
  %2426 = vmatmul.mubr.f32.gmra.mxu0 %v2354
  %v2427 = vpop.f32.mrf.mxu0
  %v2428 = vadd.f32 %v2349, %v2427
  %v2429 = vpop.f32.mrf.mxu0
  %2430 = vdwg.mxu0
  %v2431 = vld [vmem:[%s1301 + $0x3] ss:$0 sm:$0xff]
  %v2432 = vld [vmem:[%s1301 + $0x4] ss:$0 sm:$0xff]
  %v2433 = vadd.f32 %v2423, %v2249
  %v2434 = vadd.f32 %v2428, %v2250
  %v2435 = vsel %vm138, %v2433, 0.0
  %2436 = vadd.xlane.f32.xlu0 %v2435
  %v2437 = vpop.xlane.xlu0 %2436
  %v2438 = vsel %vm138, %v2434, 0.0
  %2439 = vadd.xlane.f32.xlu0 %v2438
  %v2440 = vpop.xlane.xlu0 %2439
  %v2441 = vmul.f32 %v2437, %v1050
  %v2442 = vmul.f32 %v2440, %v1050
  %v2443 = vsub.f32 %v2433, %v2441
  %v2444 = vsub.f32 %v2434, %v2442
  %v2445 = vmul.f32 %v2443, %v2443
  %v2446 = vmul.f32 %v2444, %v2444
  %v2447 = vsel %vm138, %v2445, 0.0
  %2448 = vadd.xlane.f32.xlu0 %v2447
  %v2449 = vpop.xlane.xlu0 %2448
  %v2450 = vsel %vm138, %v2446, 0.0
  %2451 = vadd.xlane.f32.xlu0 %v2450
  %v2452 = vpop.xlane.xlu0 %2451
  %v2453 = vmul.f32 %v2449, %v1050
  %v2454 = vmul.f32 %v2452, %v1050
  %v2455 = vadd.f32 %v2453, 1e-05
  %v2456 = vadd.f32 %v2454, 1e-05
  %v2457 = vrsqrt.pop %v2455
  %v2458 = vrsqrt.pop %v2456
  %v2459 = vmul.f32 %v2443, %v2457
  %v2460 = vmul.f32 %v2444, %v2458
  %v2461 = vmul.f32 %v2459, %v2431
  %v2462 = vmul.f32 %v2460, %v2431
  %v2463 = vadd.f32 %v2461, %v2432
  %v2464 = vadd.f32 %v2462, %v2432
  %v2465 = vmul.f32 %v2463, %v30
  %v2466 = vmul.f32 %v2464, %v31
  %v2467 = vld [vmem:[%s6] sm:$0xff]
  %v2468 = vld [vmem:[%s6 + $0x8] sm:$0xff]
  %v2469 = vld [vmem:[%s6 + $0x10] sm:$0xff]
  %v2470 = vld [vmem:[%s6 + $0x18] sm:$0xff]
  %v2471 = vld [vmem:[%s6 + $0x20] sm:$0xff]
  %v2472 = vld [vmem:[%s6 + $0x28] sm:$0xff]
  %v2473 = vld [vmem:[%s6 + $0x30] sm:$0xff]
  %v2474 = vld [vmem:[%s6 + $0x38] sm:$0xff]
  %v2475 = vld [vmem:[%s6 + $0x40] sm:$0xff]
  %v2476 = vld [vmem:[%s6 + $0x48] sm:$0xff]
  %v2477 = vld [vmem:[%s6 + $0x50] sm:$0xff]
  %v2478 = vld [vmem:[%s6 + $0x58] sm:$0xff]
  %v2479 = vld [vmem:[%s6 + $0x60] sm:$0xff]
  %v2480 = vld [vmem:[%s6 + $0x68] sm:$0xff]
  %v2481 = vld [vmem:[%s6 + $0x70] sm:$0xff]
  %v2482 = vld [vmem:[%s6 + $0x78] sm:$0xff]
  %v2483 = vld [vmem:[%s6 + $0x80] sm:$0xff]
  %v2484 = vld [vmem:[%s6 + $0x88] sm:$0xff]
  %v2485 = vld [vmem:[%s6 + $0x90] sm:$0xff]
  %v2486 = vld [vmem:[%s6 + $0x98] sm:$0xff]
  %v2487 = vld [vmem:[%s6 + $0xa0] sm:$0xff]
  %v2488 = vld [vmem:[%s6 + $0xa8] sm:$0xff]
  %v2489 = vld [vmem:[%s6 + $0xb0] sm:$0xff]
  %v2490 = vld [vmem:[%s6 + $0xb8] sm:$0x1]
  %v2492 = vsel %vm138, %v2465, 0
  %v2495 = vsel %vm138, %v2466, 0
  %2497 = vmatprep.subr.mxu0 0.0
  %2498 = vmatpush1.msra.mxu0 0.0
  %2499 = vmatprep.subr.mxu0 0.0
  %2500 = vmatpush1.msra.mxu0 0.0
  %2501 = vmatprep.subr.mxu0 0.0
  %2502 = vmatpush1.msra.mxu0 0.0
  %2503 = vmatprep.subr.mxu0 0.0
  %2504 = vmatpush1.msra.mxu0 0.0
  %2505 = vmatprep.subr.mxu0 0.0
  %2506 = vmatpush1.msra.mxu0 0.0
  %2507 = vmatprep.subr.mxu0 0.0
  %2508 = vmatpush1.msra.mxu0 0.0
  %2509 = vmatprep.subr.mxu0 0.0
  %2510 = vmatpush1.msra.mxu0 0.0
  %2511 = vmatprep.subr.mxu0 0.0
  %2512 = vmatpush1.msra.mxu0 0.0
  %2513 = vmatprep.subr.mxu0 0.0
  %2514 = vmatpush1.msra.mxu0 0.0
  %2515 = vmatprep.subr.mxu0 0.0
  %2516 = vmatpush1.msra.mxu0 0.0
  %2517 = vmatprep.subr.mxu0 0.0
  %2518 = vmatpush1.msra.mxu0 0.0
  %2519 = vmatprep.subr.mxu0 0.0
  %2520 = vmatpush1.msra.mxu0 0.0
  %2521 = vmatprep.subr.mxu0 0.0
  %2522 = vmatpush1.msra.mxu0 %v2470
  %2523 = vmatprep.subr.mxu0 0.0
  %2524 = vmatpush1.msra.mxu0 %v2469
  %2525 = vmatprep.subr.mxu0 0.0
  %2526 = vmatpush1.msra.mxu0 %v2468
  %2527 = vmatprep.subr.mxu0 0.0
  %2528 = vmatpush1.msra.mxu0 %v2467
  %2529 = vmatprep.subr.mxu0 0.0
  %2530 = vmatpush2.msra.mxu0 0.0
  %2531 = vmatprep.subr.mxu0 0.0
  %2532 = vmatpush2.msra.mxu0 0.0
  %2533 = vmatprep.subr.mxu0 0.0
  %2534 = vmatpush2.msra.mxu0 0.0
  %2535 = vmatprep.subr.mxu0 0.0
  %2536 = vmatpush2.msra.mxu0 0.0
  %2537 = vmatprep.subr.mxu0 0.0
  %2538 = vmatpush2.msra.mxu0 0.0
  %2539 = vmatprep.subr.mxu0 0.0
  %2540 = vmatpush2.msra.mxu0 0.0
  %2541 = vmatprep.subr.mxu0 0.0
  %2542 = vmatpush2.msra.mxu0 0.0
  %2543 = vmatprep.subr.mxu0 0.0
  %2544 = vmatpush2.msra.mxu0 0.0
  %2545 = vmatprep.subr.mxu0 0.0
  %2546 = vmatpush2.msra.mxu0 0.0
  %2547 = vmatprep.subr.mxu0 0.0
  %2548 = vmatpush2.msra.mxu0 0.0
  %2549 = vmatprep.subr.mxu0 0.0
  %2550 = vmatpush2.msra.mxu0 0.0
  %2551 = vmatprep.subr.mxu0 0.0
  %2552 = vmatpush2.msra.mxu0 0.0
  %2553 = vmatprep.subr.mxu0 0.0
  %2554 = vmatpush2.msra.mxu0 0.0
  %2555 = vmatprep.subr.mxu0 0.0
  %2556 = vmatpush2.msra.mxu0 0.0
  %2557 = vmatprep.subr.mxu0 0.0
  %2558 = vmatpush2.msra.mxu0 0.0
  %2559 = vmatprep.subr.mxu0 0.0
  %2560 = vmatpush2.msra.mxu0 0.0
  %2561 = vmatprep.mubr.f32.mxu0 0.0
  %2562 = vmatmul.mubr.f32.gmra.mxu0 %v2492
  %v2563 = vpop.f32.mrf.mxu0
  %v2564 = vadd.f32 0.0, %v2563
  %v2565 = vpop.f32.mrf.mxu0
  %2566 = vmatprep.mubr.f32.mxu0 0.0
  %2567 = vmatmul.mubr.f32.gmra.mxu0 %v2495
  %v2568 = vpop.f32.mrf.mxu0
  %v2569 = vadd.f32 0.0, %v2568
  %v2570 = vpop.f32.mrf.mxu0
  %2571 = vdwg.mxu0
  %v2572 = vmul.f32 %v2564, %v2471
  %v2573 = vmul.f32 %v2569, %v2472
  %v2575 = vsel %vm315, %v2473, 0
  %2577 = vmatprep.subr.mxu0 0.0
  %2578 = vmatpush1.msra.mxu0 0.0
  %2579 = vmatprep.subr.mxu0 0.0
  %2580 = vmatpush1.msra.mxu0 0.0
  %2581 = vmatprep.subr.mxu0 0.0
  %2582 = vmatpush1.msra.mxu0 0.0
  %2583 = vmatprep.subr.mxu0 0.0
  %2584 = vmatpush1.msra.mxu0 0.0
  %2585 = vmatprep.subr.mxu0 0.0
  %2586 = vmatpush1.msra.mxu0 0.0
  %2587 = vmatprep.subr.mxu0 0.0
  %2588 = vmatpush1.msra.mxu0 0.0
  %2589 = vmatprep.subr.mxu0 0.0
  %2590 = vmatpush1.msra.mxu0 0.0
  %2591 = vmatprep.subr.mxu0 0.0
  %2592 = vmatpush1.msra.mxu0 0.0
  %2593 = vmatprep.subr.mxu0 0.0
  %2594 = vmatpush1.msra.mxu0 0.0
  %2595 = vmatprep.subr.mxu0 0.0
  %2596 = vmatpush1.msra.mxu0 0.0
  %2597 = vmatprep.subr.mxu0 0.0
  %2598 = vmatpush1.msra.mxu0 0.0
  %2599 = vmatprep.subr.mxu0 0.0
  %2600 = vmatpush1.msra.mxu0 0.0
  %2601 = vmatprep.subr.mxu0 0.0
  %2602 = vmatpush1.msra.mxu0 0.0
  %2603 = vmatprep.subr.mxu0 0.0
  %2604 = vmatpush1.msra.mxu0 0.0
  %2605 = vmatprep.subr.mxu0 0.0
  %2606 = vmatpush1.msra.mxu0 %v2573
  %2607 = vmatprep.subr.mxu0 0.0
  %2608 = vmatpush1.msra.mxu0 %v2572
  %2609 = vmatprep.subr.mxu0 0.0
  %2610 = vmatpush2.msra.mxu0 0.0
  %2611 = vmatprep.subr.mxu0 0.0
  %2612 = vmatpush2.msra.mxu0 0.0
  %2613 = vmatprep.subr.mxu0 0.0
  %2614 = vmatpush2.msra.mxu0 0.0
  %2615 = vmatprep.subr.mxu0 0.0
  %2616 = vmatpush2.msra.mxu0 0.0
  %2617 = vmatprep.subr.mxu0 0.0
  %2618 = vmatpush2.msra.mxu0 0.0
  %2619 = vmatprep.subr.mxu0 0.0
  %2620 = vmatpush2.msra.mxu0 0.0
  %2621 = vmatprep.subr.mxu0 0.0
  %2622 = vmatpush2.msra.mxu0 0.0
  %2623 = vmatprep.subr.mxu0 0.0
  %2624 = vmatpush2.msra.mxu0 0.0
  %2625 = vmatprep.subr.mxu0 0.0
  %2626 = vmatpush2.msra.mxu0 0.0
  %2627 = vmatprep.subr.mxu0 0.0
  %2628 = vmatpush2.msra.mxu0 0.0
  %2629 = vmatprep.subr.mxu0 0.0
  %2630 = vmatpush2.msra.mxu0 0.0
  %2631 = vmatprep.subr.mxu0 0.0
  %2632 = vmatpush2.msra.mxu0 0.0
  %2633 = vmatprep.subr.mxu0 0.0
  %2634 = vmatpush2.msra.mxu0 0.0
  %2635 = vmatprep.subr.mxu0 0.0
  %2636 = vmatpush2.msra.mxu0 0.0
  %2637 = vmatprep.subr.mxu0 0.0
  %2638 = vmatpush2.msra.mxu0 0.0
  %2639 = vmatprep.subr.mxu0 0.0
  %2640 = vmatpush2.msra.mxu0 0.0
  %2641 = vmatprep.mubr.f32.mxu0 0.0
  %2642 = vmatmul.mubr.f32.gmra.mxu0 %v2575
  %v2643 = vpop.f32.mrf.mxu0
  %v2644 = vadd.f32 0.0, %v2643
  %v2645 = vpop.f32.mrf.mxu0
  %2646 = vdwg.mxu0
  %v2647 = vlaneseq
  %v2648 = vshrl.u32 %v2647, 7
  %v2649 = vsub.s32 0, %v2648
  %v2650 = vrot.slane %v2490, %v2649
  %2651 = vmatprep.subr.mxu0 0.0
  %2652 = vmatpush1.msra.mxu0 %v2489
  %2653 = vmatprep.subr.mxu0 0.0
  %2654 = vmatpush1.msra.mxu0 %v2488
  %2655 = vmatprep.subr.mxu0 0.0
  %2656 = vmatpush1.msra.mxu0 %v2487
  %2657 = vmatprep.subr.mxu0 0.0
  %2658 = vmatpush1.msra.mxu0 %v2486
  %2659 = vmatprep.subr.mxu0 0.0
  %2660 = vmatpush1.msra.mxu0 %v2485
  %2661 = vmatprep.subr.mxu0 0.0
  %2662 = vmatpush1.msra.mxu0 %v2484
  %2663 = vmatprep.subr.mxu0 0.0
  %2664 = vmatpush1.msra.mxu0 %v2483
  %2665 = vmatprep.subr.mxu0 0.0
  %2666 = vmatpush1.msra.mxu0 %v2482
  %2667 = vmatprep.subr.mxu0 0.0
  %2668 = vmatpush1.msra.mxu0 %v2481
  %2669 = vmatprep.subr.mxu0 0.0
  %2670 = vmatpush1.msra.mxu0 %v2480
  %2671 = vmatprep.subr.mxu0 0.0
  %2672 = vmatpush1.msra.mxu0 %v2479
  %2673 = vmatprep.subr.mxu0 0.0
  %2674 = vmatpush1.msra.mxu0 %v2478
  %2675 = vmatprep.subr.mxu0 0.0
  %2676 = vmatpush1.msra.mxu0 %v2477
  %2677 = vmatprep.subr.mxu0 0.0
  %2678 = vmatpush1.msra.mxu0 %v2476
  %2679 = vmatprep.subr.mxu0 0.0
  %2680 = vmatpush1.msra.mxu0 %v2475
  %2681 = vmatprep.subr.mxu0 0.0
  %2682 = vmatpush1.msra.mxu0 %v2474
  %2683 = vmatprep.subr.mxu0 0.0
  %2684 = vmatpush2.msra.mxu0 0.0
  %2685 = vmatprep.subr.mxu0 0.0
  %2686 = vmatpush2.msra.mxu0 0.0
  %2687 = vmatprep.subr.mxu0 0.0
  %2688 = vmatpush2.msra.mxu0 0.0
  %2689 = vmatprep.subr.mxu0 0.0
  %2690 = vmatpush2.msra.mxu0 0.0
  %2691 = vmatprep.subr.mxu0 0.0
  %2692 = vmatpush2.msra.mxu0 0.0
  %2693 = vmatprep.subr.mxu0 0.0
  %2694 = vmatpush2.msra.mxu0 0.0
  %2695 = vmatprep.subr.mxu0 0.0
  %2696 = vmatpush2.msra.mxu0 0.0
  %2697 = vmatprep.subr.mxu0 0.0
  %2698 = vmatpush2.msra.mxu0 0.0
  %2699 = vmatprep.subr.mxu0 0.0
  %2700 = vmatpush2.msra.mxu0 0.0
  %2701 = vmatprep.subr.mxu0 0.0
  %2702 = vmatpush2.msra.mxu0 0.0
  %2703 = vmatprep.subr.mxu0 0.0
  %2704 = vmatpush2.msra.mxu0 0.0
  %2705 = vmatprep.subr.mxu0 0.0
  %2706 = vmatpush2.msra.mxu0 0.0
  %2707 = vmatprep.subr.mxu0 0.0
  %2708 = vmatpush2.msra.mxu0 0.0
  %2709 = vmatprep.subr.mxu0 0.0
  %2710 = vmatpush2.msra.mxu0 0.0
  %2711 = vmatprep.subr.mxu0 0.0
  %2712 = vmatpush2.msra.mxu0 0.0
  %2713 = vmatprep.subr.mxu0 0.0
  %2714 = vmatpush2.msra.mxu0 0.0
  %2715 = vmatprep.mubr.f32.mxu0 0.0
  %2716 = vmatmul.mubr.f32.gmra.mxu0 %v2644
  %v2717 = vpop.f32.mrf.mxu0
  %v2718 = vadd.f32 %v2650, %v2717
  %v2719 = vpop.f32.mrf.mxu0
  %2720 = vdwg.mxu0
  %2721 = vst [vmem:[%s7] sm:$0xff] %v2718
  // Predicated region
  $region30: #{transformer_forward.1} parent=0 // pred_check
    _
  $region31: #{transformer_forward.1} parent=0 // pred_check_branch
    %2723 = sbr.rel (0) target = $region33
  $region32: #{transformer_forward.1} parent=0 // pred_region
    _
  $region33: #{transformer_forward.1} parent=0 // pred_fallthru
    _
  // Predicated region
  $region34: #{transformer_forward.1} parent=0 // pred_check
    _
  $region35: #{transformer_forward.1} parent=0 // pred_check_branch
    %2725 = sbr.rel (0) target = $region37
  $region36: #{transformer_forward.1} parent=0 // pred_region
    _
  $region37: #{transformer_forward.1} parent=0 // pred_fallthru
    _

</llo_original>
